<compile_context>
chip_gen: v5e
topology: v5e:2x2
jax: 0.10.0
libtpu: 0.0.40
codegen_flags: <defaults>
</compile_context>

<pallas_src>
import functools

import jax
import jax.numpy as jnp
from jax import lax
from jax.experimental import pallas as pl
from jax.experimental.pallas import tpu as pltpu


def _nb1d_kernel(x_ref, w_ref, b_ref, o_ref, hbuf, *, dil):
    """Fused non_bottleneck_1d forward for one batch element.

    x_ref : (1, H, W, Cp)      f32 input tile (channels zero-padded to Cp)
    w_ref : (4, 3, Cp, Cp)     bf16 packed weights [conv, tap, cin, cout], BN folded
    b_ref : (4, Cp)            f32 biases, BN folded
    o_ref : (1, H, W, Cp)      f32 output tile
    hbuf  : (H + 2*D, W, Cp)   bf16 scratch with zero halo along H
    """
    H, W, Cp = x_ref.shape[1], x_ref.shape[2], x_ref.shape[3]
    D = max(1, dil)

    # Zero only the halo rows; the center rows are fully overwritten before every use and
    # the halo is never written by any other store, so this is the only initialization.
    zh = jnp.zeros((D, W, Cp), jnp.bfloat16)
    hbuf[0:D] = zh
    hbuf[D + H:D + H + D] = zh

    # Column index, used to mask the wrapped entries of the rolled W-taps.
    w_iota = lax.broadcasted_iota(jnp.int32, (1, W, Cp), 1)

    def conv_h(idx, d):
        # 3x1 conv (cross-correlation, zero padding d): out[h] = sum_k in[h + d*(k-1)] W_k.
        # Taps are leading-axis (tile-aligned, address-offset) slices of the halo buffer;
        # three accumulating MXU matmuls, f32 accumulation.
        y = jnp.dot(hbuf[D:D + H].reshape(H * W, Cp), w_ref[idx, 1],
                    preferred_element_type=jnp.float32)
        y = y + jnp.dot(hbuf[D - d:D - d + H].reshape(H * W, Cp), w_ref[idx, 0],
                        preferred_element_type=jnp.float32)
        y = y + jnp.dot(hbuf[D + d:D + d + H].reshape(H * W, Cp), w_ref[idx, 2],
                        preferred_element_type=jnp.float32)
        return (y + b_ref[idx:idx + 1, :]).reshape(H, W, Cp)

    def conv_w(t32, idx, d):
        # 1x3 conv: out[w] = sum_k in[w + d*(k-1)] W_k.  W-shifts via XLU roll + edge mask
        # (roll semantics match jnp.roll: rolled[w] = x[w - shift]); no sublane-misaligned
        # slices.  t32 is the f32 activation from the previous stage.
        y = jnp.dot(t32.astype(jnp.bfloat16).reshape(H * W, Cp), w_ref[idx, 1],
                    preferred_element_type=jnp.float32)
        # tap k=0 needs in[w - d]: roll by +d, zero the first d columns.
        tm = jnp.where(w_iota >= d, pltpu.roll(t32, d, axis=1), 0.0)
        y = y + jnp.dot(tm.astype(jnp.bfloat16).reshape(H * W, Cp), w_ref[idx, 0],
                        preferred_element_type=jnp.float32)
        # tap k=2 needs in[w + d]: roll by W-d (== -d mod W), zero the last d columns.
        tp = jnp.where(w_iota < W - d, pltpu.roll(t32, W - d, axis=1), 0.0)
        y = y + jnp.dot(tp.astype(jnp.bfloat16).reshape(H * W, Cp), w_ref[idx, 2],
                        preferred_element_type=jnp.float32)
        return (y + b_ref[idx:idx + 1, :]).reshape(H, W, Cp)

    # Stage 1: conv3x1_1 (d=1) + relu
    hbuf[D:D + H] = x_ref[0].astype(jnp.bfloat16)
    t = jnp.maximum(conv_h(0, 1), 0.0)

    # Stage 2: conv1x3_1 (d=1) + bn1 (folded into weights/bias) + relu
    t = jnp.maximum(conv_w(t, 1, 1), 0.0)

    # Stage 3: conv3x1_2 (dilation d) + relu
    hbuf[D:D + H] = t.astype(jnp.bfloat16)
    t = jnp.maximum(conv_h(2, dil), 0.0)

    # Stage 4: conv1x3_2 (dilation d) + bn2 (folded into weights/bias)
    t = conv_w(t, 3, dil)

    # Dropout2d with p == 0 is identity per the module's guard.  Residual + relu;
    # x_ref is re-read here instead of holding a named f32 copy across all four convs.
    o_ref[0] = jnp.maximum(t + x_ref[0], 0.0).astype(o_ref.dtype)


@functools.partial(jax.jit, static_argnums=(5,))
def non_bottleneck_1d_forward(x_nchw, w_stack, b_stack, bn_scale, bn_shift, dilated):
    """x_nchw (N,C,H,W) f32; w_stack (4,3,C,C) [conv, tap, cin, cout]; b_stack (4,C);
    bn_scale/bn_shift (2,C): inference BN folded as y = x*scale + shift (eps applied)."""
    N, C, H, W = x_nchw.shape
    Cp = ((C + 127) // 128) * 128
    dil = int(dilated)
    if dil < 1:
        raise ValueError("dilated must be >= 1")
    D = max(1, dil)

    # NCHW -> NHWC, lane-dense channel padding (padded channels stay exactly zero through
    # every stage: zero weights/bias on padded cin/cout, relu(0)=0, residual adds zero).
    x = jnp.transpose(x_nchw, (0, 2, 3, 1)).astype(jnp.float32)
    x = jnp.pad(x, ((0, 0), (0, 0), (0, 0), (0, Cp - C)))

    # Fold BN into conv1x3_1 (idx 1) and conv1x3_2 (idx 3) output channels:
    #   bn(Wx + b) = (W*scale) x + (b*scale + shift)
    ones = jnp.ones((C,), jnp.float32)
    zeros = jnp.zeros((C,), jnp.float32)
    scale4 = jnp.stack([ones, bn_scale[0], ones, bn_scale[1]])    # (4, C)
    shift4 = jnp.stack([zeros, bn_shift[0], zeros, bn_shift[1]])  # (4, C)
    w_fold = w_stack.astype(jnp.float32) * scale4[:, None, None, :]
    b_fold = b_stack.astype(jnp.float32) * scale4 + shift4

    # Per-tap packed bf16 weights (4, 3, Cp, Cp); no tap concatenation in the kernel.
    w_packed = jnp.pad(w_fold, ((0, 0), (0, 0), (0, Cp - C), (0, Cp - C))).astype(jnp.bfloat16)
    b_packed = jnp.pad(b_fold, ((0, 0), (0, Cp - C)))

    # VMEM budget from actual buffers (+ headroom for in-kernel temporaries), not a flat cap.
    blk = H * W * Cp * 4                               # one f32 image block
    vmem_bytes = (
        2 * blk                                        # input block, double-buffered
        + 2 * blk                                      # output block, double-buffered
        + 2 * (4 * 3 * Cp * Cp * 2)                    # bf16 weights (pipeline buffers)
        + 2 * (4 * Cp * 4)                             # biases
        + (H + 2 * D) * W * Cp * 2                     # halo scratch
        + 6 * blk                                      # f32/bf16 temporaries headroom
    )
    vmem_limit = int(min(100 * 1024 * 1024, vmem_bytes + 8 * 1024 * 1024))

    kernel = functools.partial(_nb1d_kernel, dil=dil)
    out = pl.pallas_call(
        kernel,
        out_shape=jax.ShapeDtypeStruct((N, H, W, Cp), jnp.float32),
        grid_spec=pltpu.PrefetchScalarGridSpec(
            num_scalar_prefetch=0,
            grid=(N,),
            in_specs=[
                pl.BlockSpec((1, H, W, Cp), lambda n: (n, 0, 0, 0)),
                # Constant index maps -> weights/bias stay VMEM-resident across the grid.
                pl.BlockSpec((4, 3, Cp, Cp), lambda n: (0, 0, 0, 0)),
                pl.BlockSpec((4, Cp), lambda n: (0, 0)),
            ],
            out_specs=pl.BlockSpec((1, H, W, Cp), lambda n: (n, 0, 0, 0)),
            scratch_shapes=[
                pltpu.VMEM((H + 2 * D, W, Cp), jnp.bfloat16),
            ],
        ),
        compiler_params=pltpu.CompilerParams(
            dimension_semantics=("parallel",),
            vmem_limit_bytes=vmem_limit,
        ),
    )(x, w_packed, b_packed)

    out = out[..., :C]
    return jnp.transpose(out, (0, 3, 1, 2))  # NHWC -> NCHW


# -------------------- pure-JAX f32 reference (for verification) --------------------
def _ref_forward(x_nchw, w_stack, b_stack, gamma, beta, mean, var, dilated, eps=1e-3):
    x = jnp.transpose(x_nchw, (0, 2, 3, 1)).astype(jnp.float32)
    C = x.shape[-1]

    def conv(a, idx, d, along_h):
        w = w_stack[idx]                              # (3, Cin, Cout)
        if along_h:
            rhs = w.reshape(3, 1, C, C)
            pad = [(d, d), (0, 0)]
            dil = (d, 1)
        else:
            rhs = w.reshape(1, 3, C, C)
            pad = [(0, 0), (d, d)]
            dil = (1, d)
        y = lax.conv_general_dilated(
            a, rhs, window_strides=(1, 1), padding=pad, rhs_dilation=dil,
            dimension_numbers=("NHWC", "HWIO", "NHWC"),
            precision=lax.Precision.HIGHEST)
        return y + b_stack[idx].reshape(1, 1, 1, C)

    def bn(a, i):
        s = gamma[i] / jnp.sqrt(var[i] + eps)
        return (a - mean[i].reshape(1, 1, 1, C)) * s.reshape(1, 1, 1, C) \
            + beta[i].reshape(1, 1, 1, C)

    out = jax.nn.relu(conv(x, 0, 1, True))
    out = jax.nn.relu(bn(conv(out, 1, 1, False), 0))
    out = jax.nn.relu(conv(out, 2, dilated, True))
    out = bn(conv(out, 3, dilated, False), 1)
    out = jax.nn.relu(out + x)
    return jnp.transpose(out, (0, 3, 1, 2))


if __name__ == "__main__":
    N, C, H, W = 2, 4, 16, 16
    dilated = 2

    key = jax.random.PRNGKey(0)
    kx, kw, kb, kg, kbe, km, kv = jax.random.split(key, 7)

    x = jax.random.normal(kx, (N, C, H, W), jnp.float32)

    # Conv weights stored as (conv_idx, tap, Cin, Cout).
    w_stack = 0.1 * jax.random.normal(kw, (4, 3, C, C), jnp.float32)
    b_stack = 0.05 * jax.random.normal(kb, (4, C), jnp.float32)

    # BatchNorm (inference) parameters for bn1 / bn2.
    gamma = 0.5 + jax.random.uniform(kg, (2, C), jnp.float32)
    beta = 0.1 * jax.random.normal(kbe, (2, C), jnp.float32)
    mean = 0.1 * jax.random.normal(km, (2, C), jnp.float32)
    var = 0.5 + jax.random.uniform(kv, (2, C), jnp.float32)

    eps = 1e-3
    bn_scale = gamma / jnp.sqrt(var + eps)       # (2, C)
    bn_shift = beta - mean * bn_scale            # (2, C)

    out = non_bottleneck_1d_forward(x, w_stack, b_stack, bn_scale, bn_shift, dilated)
    out = jax.block_until_ready(out)

    ref = _ref_forward(x, w_stack, b_stack, gamma, beta, mean, var, dilated, eps)
    ref = jax.block_until_ready(ref)

    assert out.shape == (N, C, H, W) and out.dtype == jnp.float32
    # bf16 MXU operands (f32 accumulation) vs. a pure-f32 reference -> allow ~1e-2 slack.
    assert jnp.allclose(out, ref, rtol=2e-2, atol=2e-2), \
        f"max abs err {jnp.max(jnp.abs(out - ref))}"

    print("KERNEL_OK")
</pallas_src>

<mosaic_0001>
module attributes {stable_mosaic.version = 11 : i64} {
  func.func @_nb1d_kernel(%arg0: i32, %arg1: memref<1x16x16x128xf32, #tpu.memory_space<vmem>>, %arg2: memref<4x3x128x128xbf16, #tpu.memory_space<vmem>>, %arg3: memref<4x128xf32, #tpu.memory_space<vmem>>, %arg4: memref<1x16x16x128xf32, #tpu.memory_space<vmem>>, %arg5: memref<20x16x128xbf16, #tpu.memory_space<vmem>>) attributes {dimension_semantics = [#tpu.dimension_semantics<parallel>], iteration_bounds = array<i64: 2>, scalar_prefetch = 0 : i64, scratch_operands = 1 : i64, tpu.core_type = #tpu.core_type<tc>, window_params = [{transform_indices = @transform_0, window_bounds = array<i64: 1, 16, 16, 128>}, {pipeline_mode = #tpu.pipeline_mode<synchronous>, transform_indices = @transform_1, window_bounds = array<i64: 4, 3, 128, 128>}, {pipeline_mode = #tpu.pipeline_mode<synchronous>, transform_indices = @transform_2, window_bounds = array<i64: 4, 128>}, {transform_indices = @transform_3, window_bounds = array<i64: 1, 16, 16, 128>}]} {
    %cst = arith.constant 0.000000e+00 : bf16
    %0 = vector.broadcast %cst : bf16 to vector<2x16x128xbf16>
    %c0 = arith.constant 0 : index
    %c0_0 = arith.constant 0 : index
    %c0_1 = arith.constant 0 : index
    %1 = vector.load %arg5[%c0, %c0_0, %c0_1] : memref<20x16x128xbf16, #tpu.memory_space<vmem>>, vector<2x16x128xbf16>
    tpu.vector_store %arg5[%c0, %c0_0, %c0_1], %0 {strides = array<i32>} : memref<20x16x128xbf16, #tpu.memory_space<vmem>>, vector<2x16x128xbf16>,
    %c18 = arith.constant 18 : index
    %c0_2 = arith.constant 0 : index
    %c0_3 = arith.constant 0 : index
    %2 = vector.load %arg5[%c18, %c0_2, %c0_3] : memref<20x16x128xbf16, #tpu.memory_space<vmem>>, vector<2x16x128xbf16>
    tpu.vector_store %arg5[%c18, %c0_2, %c0_3], %0 {strides = array<i32>} : memref<20x16x128xbf16, #tpu.memory_space<vmem>>, vector<2x16x128xbf16>,
    %3 = tpu.iota {dimensions = array<i32: 1>} : vector<1x16x128xi32>
    %c0_4 = arith.constant 0 : index
    %c0_5 = arith.constant 0 : index
    %c0_6 = arith.constant 0 : index
    %c0_7 = arith.constant 0 : index
    %4 = vector.load %arg1[%c0_4, %c0_5, %c0_6, %c0_7] : memref<1x16x16x128xf32, #tpu.memory_space<vmem>>, vector<1x16x16x128xf32>
    %5 = vector.shape_cast %4 : vector<1x16x16x128xf32> to vector<16x16x128xf32>
    %6 = arith.truncf %5 : vector<16x16x128xf32> to vector<16x16x128xbf16>
    %c2 = arith.constant 2 : index
    %c0_8 = arith.constant 0 : index
    %c0_9 = arith.constant 0 : index
    %7 = vector.load %arg5[%c2, %c0_8, %c0_9] : memref<20x16x128xbf16, #tpu.memory_space<vmem>>, vector<16x16x128xbf16>
    tpu.vector_store %arg5[%c2, %c0_8, %c0_9], %6 {strides = array<i32>} : memref<20x16x128xbf16, #tpu.memory_space<vmem>>, vector<16x16x128xbf16>,
    %c2_10 = arith.constant 2 : index
    %c0_11 = arith.constant 0 : index
    %c0_12 = arith.constant 0 : index
    %8 = vector.load %arg5[%c2_10, %c0_11, %c0_12] : memref<20x16x128xbf16, #tpu.memory_space<vmem>>, vector<16x16x128xbf16>
    %9 = vector.shape_cast %8 : vector<16x16x128xbf16> to vector<256x128xbf16>
    %c0_13 = arith.constant 0 : index
    %c1 = arith.constant 1 : index
    %c0_14 = arith.constant 0 : index
    %c0_15 = arith.constant 0 : index
    %10 = vector.load %arg2[%c0_13, %c1, %c0_14, %c0_15] : memref<4x3x128x128xbf16, #tpu.memory_space<vmem>>, vector<1x1x128x128xbf16>
    %11 = vector.shape_cast %10 : vector<1x1x128x128xbf16> to vector<128x128xbf16>
    %cst_16 = arith.constant dense<0.000000e+00> : vector<256x128xf32>
    %12 = tpu.matmul %9, %11, %cst_16 {dimension_numbers = #tpu.dot_dimension_numbers<[1], [0], [0], [1], [0, 0, 1, 1], [], []>} : vector<256x128xbf16>, vector<128x128xbf16>, vector<256x128xf32> -> vector<256x128xf32>
    %c1_17 = arith.constant 1 : index
    %c0_18 = arith.constant 0 : index
    %c0_19 = arith.constant 0 : index
    %13 = vector.load %arg5[%c1_17, %c0_18, %c0_19] : memref<20x16x128xbf16, #tpu.memory_space<vmem>>, vector<16x16x128xbf16>
    %14 = vector.shape_cast %13 : vector<16x16x128xbf16> to vector<256x128xbf16>
    %c0_20 = arith.constant 0 : index
    %c0_21 = arith.constant 0 : index
    %c0_22 = arith.constant 0 : index
    %c0_23 = arith.constant 0 : index
    %15 = vector.load %arg2[%c0_20, %c0_21, %c0_22, %c0_23] : memref<4x3x128x128xbf16, #tpu.memory_space<vmem>>, vector<1x1x128x128xbf16>
    %16 = vector.shape_cast %15 : vector<1x1x128x128xbf16> to vector<128x128xbf16>
    %cst_24 = arith.constant dense<0.000000e+00> : vector<256x128xf32>
    %17 = tpu.matmul %14, %16, %cst_24 {dimension_numbers = #tpu.dot_dimension_numbers<[1], [0], [0], [1], [0, 0, 1, 1], [], []>} : vector<256x128xbf16>, vector<128x128xbf16>, vector<256x128xf32> -> vector<256x128xf32>
    %18 = arith.addf %12, %17 : vector<256x128xf32>
    %c3 = arith.constant 3 : index
    %c0_25 = arith.constant 0 : index
    %c0_26 = arith.constant 0 : index
    %19 = vector.load %arg5[%c3, %c0_25, %c0_26] : memref<20x16x128xbf16, #tpu.memory_space<vmem>>, vector<16x16x128xbf16>
    %20 = vector.shape_cast %19 : vector<16x16x128xbf16> to vector<256x128xbf16>
    %c0_27 = arith.constant 0 : index
    %c2_28 = arith.constant 2 : index
    %c0_29 = arith.constant 0 : index
    %c0_30 = arith.constant 0 : index
    %21 = vector.load %arg2[%c0_27, %c2_28, %c0_29, %c0_30] : memref<4x3x128x128xbf16, #tpu.memory_space<vmem>>, vector<1x1x128x128xbf16>
    %22 = vector.shape_cast %21 : vector<1x1x128x128xbf16> to vector<128x128xbf16>
    %cst_31 = arith.constant dense<0.000000e+00> : vector<256x128xf32>
    %23 = tpu.matmul %20, %22, %cst_31 {dimension_numbers = #tpu.dot_dimension_numbers<[1], [0], [0], [1], [0, 0, 1, 1], [], []>} : vector<256x128xbf16>, vector<128x128xbf16>, vector<256x128xf32> -> vector<256x128xf32>
    %24 = arith.addf %18, %23 : vector<256x128xf32>
    %c0_32 = arith.constant 0 : index
    %c0_33 = arith.constant 0 : index
    %25 = vector.load %arg3[%c0_32, %c0_33] : memref<4x128xf32, #tpu.memory_space<vmem>>, vector<1x128xf32>
    %26 = vector.broadcast %25 : vector<1x128xf32> to vector<256x128xf32>
    %27 = arith.addf %24, %26 : vector<256x128xf32>
    %28 = vector.shape_cast %27 : vector<256x128xf32> to vector<16x16x128xf32>
    %cst_34 = arith.constant 0.000000e+00 : f32
    %29 = vector.broadcast %cst_34 : f32 to vector<16x16x128xf32>
    %30 = arith.maximumf %28, %29 : vector<16x16x128xf32>
    %31 = arith.truncf %30 : vector<16x16x128xf32> to vector<16x16x128xbf16>
    %32 = vector.shape_cast %31 : vector<16x16x128xbf16> to vector<256x128xbf16>
    %c1_35 = arith.constant 1 : index
    %c1_36 = arith.constant 1 : index
    %c0_37 = arith.constant 0 : index
    %c0_38 = arith.constant 0 : index
    %33 = vector.load %arg2[%c1_35, %c1_36, %c0_37, %c0_38] : memref<4x3x128x128xbf16, #tpu.memory_space<vmem>>, vector<1x1x128x128xbf16>
    %34 = vector.shape_cast %33 : vector<1x1x128x128xbf16> to vector<128x128xbf16>
    %cst_39 = arith.constant dense<0.000000e+00> : vector<256x128xf32>
    %35 = tpu.matmul %32, %34, %cst_39 {dimension_numbers = #tpu.dot_dimension_numbers<[1], [0], [0], [1], [0, 0, 1, 1], [], []>} : vector<256x128xbf16>, vector<128x128xbf16>, vector<256x128xf32> -> vector<256x128xf32>
    %c1_i32 = arith.constant 1 : i32
    %36 = vector.broadcast %c1_i32 : i32 to vector<1x16x128xi32>
    %37 = arith.cmpi sge, %3, %36 : vector<1x16x128xi32>
    %c1_i32_40 = arith.constant 1 : i32
    %38 = tpu.dynamic_rotate %30 by %c1_i32_40 dim 1 : vector<16x16x128xf32>, i32 -> vector<16x16x128xf32>
    %cst_41 = arith.constant 0.000000e+00 : f32
    %39 = vector.shape_cast %37 : vector<1x16x128xi1> to vector<1x16x128xi1>
    %40 = vector.broadcast %39 : vector<1x16x128xi1> to vector<16x16x128xi1>
    %41 = vector.broadcast %cst_41 : f32 to vector<16x16x128xf32>
    %42 = arith.select %40, %38, %41 : vector<16x16x128xi1>, vector<16x16x128xf32>
    %43 = arith.truncf %42 : vector<16x16x128xf32> to vector<16x16x128xbf16>
    %44 = vector.shape_cast %43 : vector<16x16x128xbf16> to vector<256x128xbf16>
    %c1_42 = arith.constant 1 : index
    %c0_43 = arith.constant 0 : index
    %c0_44 = arith.constant 0 : index
    %c0_45 = arith.constant 0 : index
    %45 = vector.load %arg2[%c1_42, %c0_43, %c0_44, %c0_45] : memref<4x3x128x128xbf16, #tpu.memory_space<vmem>>, vector<1x1x128x128xbf16>
    %46 = vector.shape_cast %45 : vector<1x1x128x128xbf16> to vector<128x128xbf16>
    %cst_46 = arith.constant dense<0.000000e+00> : vector<256x128xf32>
    %47 = tpu.matmul %44, %46, %cst_46 {dimension_numbers = #tpu.dot_dimension_numbers<[1], [0], [0], [1], [0, 0, 1, 1], [], []>} : vector<256x128xbf16>, vector<128x128xbf16>, vector<256x128xf32> -> vector<256x128xf32>
    %48 = arith.addf %35, %47 : vector<256x128xf32>
    %c15_i32 = arith.constant 15 : i32
    %49 = vector.broadcast %c15_i32 : i32 to vector<1x16x128xi32>
    %50 = arith.cmpi slt, %3, %49 : vector<1x16x128xi32>
    %c15_i32_47 = arith.constant 15 : i32
    %51 = tpu.dynamic_rotate %30 by %c15_i32_47 dim 1 : vector<16x16x128xf32>, i32 -> vector<16x16x128xf32>
    %cst_48 = arith.constant 0.000000e+00 : f32
    %52 = vector.shape_cast %50 : vector<1x16x128xi1> to vector<1x16x128xi1>
    %53 = vector.broadcast %52 : vector<1x16x128xi1> to vector<16x16x128xi1>
    %54 = vector.broadcast %cst_48 : f32 to vector<16x16x128xf32>
    %55 = arith.select %53, %51, %54 : vector<16x16x128xi1>, vector<16x16x128xf32>
    %56 = arith.truncf %55 : vector<16x16x128xf32> to vector<16x16x128xbf16>
    %57 = vector.shape_cast %56 : vector<16x16x128xbf16> to vector<256x128xbf16>
    %c1_49 = arith.constant 1 : index
    %c2_50 = arith.constant 2 : index
    %c0_51 = arith.constant 0 : index
    %c0_52 = arith.constant 0 : index
    %58 = vector.load %arg2[%c1_49, %c2_50, %c0_51, %c0_52] : memref<4x3x128x128xbf16, #tpu.memory_space<vmem>>, vector<1x1x128x128xbf16>
    %59 = vector.shape_cast %58 : vector<1x1x128x128xbf16> to vector<128x128xbf16>
    %cst_53 = arith.constant dense<0.000000e+00> : vector<256x128xf32>
    %60 = tpu.matmul %57, %59, %cst_53 {dimension_numbers = #tpu.dot_dimension_numbers<[1], [0], [0], [1], [0, 0, 1, 1], [], []>} : vector<256x128xbf16>, vector<128x128xbf16>, vector<256x128xf32> -> vector<256x128xf32>
    %61 = arith.addf %48, %60 : vector<256x128xf32>
    %c1_54 = arith.constant 1 : index
    %c0_55 = arith.constant 0 : index
    %62 = vector.load %arg3[%c1_54, %c0_55] : memref<4x128xf32, #tpu.memory_space<vmem>>, vector<1x128xf32>
    %63 = vector.broadcast %62 : vector<1x128xf32> to vector<256x128xf32>
    %64 = arith.addf %61, %63 : vector<256x128xf32>
    %65 = vector.shape_cast %64 : vector<256x128xf32> to vector<16x16x128xf32>
    %cst_56 = arith.constant 0.000000e+00 : f32
    %66 = vector.broadcast %cst_56 : f32 to vector<16x16x128xf32>
    %67 = arith.maximumf %65, %66 : vector<16x16x128xf32>
    %68 = arith.truncf %67 : vector<16x16x128xf32> to vector<16x16x128xbf16>
    %c2_57 = arith.constant 2 : index
    %c0_58 = arith.constant 0 : index
    %c0_59 = arith.constant 0 : index
    %69 = vector.load %arg5[%c2_57, %c0_58, %c0_59] : memref<20x16x128xbf16, #tpu.memory_space<vmem>>, vector<16x16x128xbf16>
    tpu.vector_store %arg5[%c2_57, %c0_58, %c0_59], %68 {strides = array<i32>} : memref<20x16x128xbf16, #tpu.memory_space<vmem>>, vector<16x16x128xbf16>,
    %c2_60 = arith.constant 2 : index
    %c0_61 = arith.constant 0 : index
    %c0_62 = arith.constant 0 : index
    %70 = vector.load %arg5[%c2_60, %c0_61, %c0_62] : memref<20x16x128xbf16, #tpu.memory_space<vmem>>, vector<16x16x128xbf16>
    %71 = vector.shape_cast %70 : vector<16x16x128xbf16> to vector<256x128xbf16>
    %c2_63 = arith.constant 2 : index
    %c1_64 = arith.constant 1 : index
    %c0_65 = arith.constant 0 : index
    %c0_66 = arith.constant 0 : index
    %72 = vector.load %arg2[%c2_63, %c1_64, %c0_65, %c0_66] : memref<4x3x128x128xbf16, #tpu.memory_space<vmem>>, vector<1x1x128x128xbf16>
    %73 = vector.shape_cast %72 : vector<1x1x128x128xbf16> to vector<128x128xbf16>
    %cst_67 = arith.constant dense<0.000000e+00> : vector<256x128xf32>
    %74 = tpu.matmul %71, %73, %cst_67 {dimension_numbers = #tpu.dot_dimension_numbers<[1], [0], [0], [1], [0, 0, 1, 1], [], []>} : vector<256x128xbf16>, vector<128x128xbf16>, vector<256x128xf32> -> vector<256x128xf32>
    %c0_68 = arith.constant 0 : index
    %c0_69 = arith.constant 0 : index
    %c0_70 = arith.constant 0 : index
    %75 = vector.load %arg5[%c0_68, %c0_69, %c0_70] : memref<20x16x128xbf16, #tpu.memory_space<vmem>>, vector<16x16x128xbf16>
    %76 = vector.shape_cast %75 : vector<16x16x128xbf16> to vector<256x128xbf16>
    %c2_71 = arith.constant 2 : index
    %c0_72 = arith.constant 0 : index
    %c0_73 = arith.constant 0 : index
    %c0_74 = arith.constant 0 : index
    %77 = vector.load %arg2[%c2_71, %c0_72, %c0_73, %c0_74] : memref<4x3x128x128xbf16, #tpu.memory_space<vmem>>, vector<1x1x128x128xbf16>
    %78 = vector.shape_cast %77 : vector<1x1x128x128xbf16> to vector<128x128xbf16>
    %cst_75 = arith.constant dense<0.000000e+00> : vector<256x128xf32>
    %79 = tpu.matmul %76, %78, %cst_75 {dimension_numbers = #tpu.dot_dimension_numbers<[1], [0], [0], [1], [0, 0, 1, 1], [], []>} : vector<256x128xbf16>, vector<128x128xbf16>, vector<256x128xf32> -> vector<256x128xf32>
    %80 = arith.addf %74, %79 : vector<256x128xf32>
    %c4 = arith.constant 4 : index
    %c0_76 = arith.constant 0 : index
    %c0_77 = arith.constant 0 : index
    %81 = vector.load %arg5[%c4, %c0_76, %c0_77] : memref<20x16x128xbf16, #tpu.memory_space<vmem>>, vector<16x16x128xbf16>
    %82 = vector.shape_cast %81 : vector<16x16x128xbf16> to vector<256x128xbf16>
    %c2_78 = arith.constant 2 : index
    %c2_79 = arith.constant 2 : index
    %c0_80 = arith.constant 0 : index
    %c0_81 = arith.constant 0 : index
    %83 = vector.load %arg2[%c2_78, %c2_79, %c0_80, %c0_81] : memref<4x3x128x128xbf16, #tpu.memory_space<vmem>>, vector<1x1x128x128xbf16>
    %84 = vector.shape_cast %83 : vector<1x1x128x128xbf16> to vector<128x128xbf16>
    %cst_82 = arith.constant dense<0.000000e+00> : vector<256x128xf32>
    %85 = tpu.matmul %82, %84, %cst_82 {dimension_numbers = #tpu.dot_dimension_numbers<[1], [0], [0], [1], [0, 0, 1, 1], [], []>} : vector<256x128xbf16>, vector<128x128xbf16>, vector<256x128xf32> -> vector<256x128xf32>
    %86 = arith.addf %80, %85 : vector<256x128xf32>
    %c2_83 = arith.constant 2 : index
    %c0_84 = arith.constant 0 : index
    %87 = vector.load %arg3[%c2_83, %c0_84] : memref<4x128xf32, #tpu.memory_space<vmem>>, vector<1x128xf32>
    %88 = vector.broadcast %87 : vector<1x128xf32> to vector<256x128xf32>
    %89 = arith.addf %86, %88 : vector<256x128xf32>
    %90 = vector.shape_cast %89 : vector<256x128xf32> to vector<16x16x128xf32>
    %cst_85 = arith.constant 0.000000e+00 : f32
    %91 = vector.broadcast %cst_85 : f32 to vector<16x16x128xf32>
    %92 = arith.maximumf %90, %91 : vector<16x16x128xf32>
    %93 = arith.truncf %92 : vector<16x16x128xf32> to vector<16x16x128xbf16>
    %94 = vector.shape_cast %93 : vector<16x16x128xbf16> to vector<256x128xbf16>
    %c3_86 = arith.constant 3 : index
    %c1_87 = arith.constant 1 : index
    %c0_88 = arith.constant 0 : index
    %c0_89 = arith.constant 0 : index
    %95 = vector.load %arg2[%c3_86, %c1_87, %c0_88, %c0_89] : memref<4x3x128x128xbf16, #tpu.memory_space<vmem>>, vector<1x1x128x128xbf16>
    %96 = vector.shape_cast %95 : vector<1x1x128x128xbf16> to vector<128x128xbf16>
    %cst_90 = arith.constant dense<0.000000e+00> : vector<256x128xf32>
    %97 = tpu.matmul %94, %96, %cst_90 {dimension_numbers = #tpu.dot_dimension_numbers<[1], [0], [0], [1], [0, 0, 1, 1], [], []>} : vector<256x128xbf16>, vector<128x128xbf16>, vector<256x128xf32> -> vector<256x128xf32>
    %c2_i32 = arith.constant 2 : i32
    %98 = vector.broadcast %c2_i32 : i32 to vector<1x16x128xi32>
    %99 = arith.cmpi sge, %3, %98 : vector<1x16x128xi32>
    %c2_i32_91 = arith.constant 2 : i32
    %100 = tpu.dynamic_rotate %92 by %c2_i32_91 dim 1 : vector<16x16x128xf32>, i32 -> vector<16x16x128xf32>
    %cst_92 = arith.constant 0.000000e+00 : f32
    %101 = vector.shape_cast %99 : vector<1x16x128xi1> to vector<1x16x128xi1>
    %102 = vector.broadcast %101 : vector<1x16x128xi1> to vector<16x16x128xi1>
    %103 = vector.broadcast %cst_92 : f32 to vector<16x16x128xf32>
    %104 = arith.select %102, %100, %103 : vector<16x16x128xi1>, vector<16x16x128xf32>
    %105 = arith.truncf %104 : vector<16x16x128xf32> to vector<16x16x128xbf16>
    %106 = vector.shape_cast %105 : vector<16x16x128xbf16> to vector<256x128xbf16>
    %c3_93 = arith.constant 3 : index
    %c0_94 = arith.constant 0 : index
    %c0_95 = arith.constant 0 : index
    %c0_96 = arith.constant 0 : index
    %107 = vector.load %arg2[%c3_93, %c0_94, %c0_95, %c0_96] : memref<4x3x128x128xbf16, #tpu.memory_space<vmem>>, vector<1x1x128x128xbf16>
    %108 = vector.shape_cast %107 : vector<1x1x128x128xbf16> to vector<128x128xbf16>
    %cst_97 = arith.constant dense<0.000000e+00> : vector<256x128xf32>
    %109 = tpu.matmul %106, %108, %cst_97 {dimension_numbers = #tpu.dot_dimension_numbers<[1], [0], [0], [1], [0, 0, 1, 1], [], []>} : vector<256x128xbf16>, vector<128x128xbf16>, vector<256x128xf32> -> vector<256x128xf32>
    %110 = arith.addf %97, %109 : vector<256x128xf32>
    %c14_i32 = arith.constant 14 : i32
    %111 = vector.broadcast %c14_i32 : i32 to vector<1x16x128xi32>
    %112 = arith.cmpi slt, %3, %111 : vector<1x16x128xi32>
    %c14_i32_98 = arith.constant 14 : i32
    %113 = tpu.dynamic_rotate %92 by %c14_i32_98 dim 1 : vector<16x16x128xf32>, i32 -> vector<16x16x128xf32>
    %cst_99 = arith.constant 0.000000e+00 : f32
    %114 = vector.shape_cast %112 : vector<1x16x128xi1> to vector<1x16x128xi1>
    %115 = vector.broadcast %114 : vector<1x16x128xi1> to vector<16x16x128xi1>
    %116 = vector.broadcast %cst_99 : f32 to vector<16x16x128xf32>
    %117 = arith.select %115, %113, %116 : vector<16x16x128xi1>, vector<16x16x128xf32>
    %118 = arith.truncf %117 : vector<16x16x128xf32> to vector<16x16x128xbf16>
    %119 = vector.shape_cast %118 : vector<16x16x128xbf16> to vector<256x128xbf16>
    %c3_100 = arith.constant 3 : index
    %c2_101 = arith.constant 2 : index
    %c0_102 = arith.constant 0 : index
    %c0_103 = arith.constant 0 : index
    %120 = vector.load %arg2[%c3_100, %c2_101, %c0_102, %c0_103] : memref<4x3x128x128xbf16, #tpu.memory_space<vmem>>, vector<1x1x128x128xbf16>
    %121 = vector.shape_cast %120 : vector<1x1x128x128xbf16> to vector<128x128xbf16>
    %cst_104 = arith.constant dense<0.000000e+00> : vector<256x128xf32>
    %122 = tpu.matmul %119, %121, %cst_104 {dimension_numbers = #tpu.dot_dimension_numbers<[1], [0], [0], [1], [0, 0, 1, 1], [], []>} : vector<256x128xbf16>, vector<128x128xbf16>, vector<256x128xf32> -> vector<256x128xf32>
    %123 = arith.addf %110, %122 : vector<256x128xf32>
    %c3_105 = arith.constant 3 : index
    %c0_106 = arith.constant 0 : index
    %124 = vector.load %arg3[%c3_105, %c0_106] : memref<4x128xf32, #tpu.memory_space<vmem>>, vector<1x128xf32>
    %125 = vector.broadcast %124 : vector<1x128xf32> to vector<256x128xf32>
    %126 = arith.addf %123, %125 : vector<256x128xf32>
    %127 = vector.shape_cast %126 : vector<256x128xf32> to vector<16x16x128xf32>
    %c0_107 = arith.constant 0 : index
    %c0_108 = arith.constant 0 : index
    %c0_109 = arith.constant 0 : index
    %c0_110 = arith.constant 0 : index
    %128 = vector.load %arg1[%c0_107, %c0_108, %c0_109, %c0_110] : memref<1x16x16x128xf32, #tpu.memory_space<vmem>>, vector<1x16x16x128xf32>
    %129 = vector.shape_cast %128 : vector<1x16x16x128xf32> to vector<16x16x128xf32>
    %130 = arith.addf %127, %129 : vector<16x16x128xf32>
    %cst_111 = arith.constant 0.000000e+00 : f32
    %131 = vector.broadcast %cst_111 : f32 to vector<16x16x128xf32>
    %132 = arith.maximumf %130, %131 : vector<16x16x128xf32>
    %c0_112 = arith.constant 0 : index
    %c0_113 = arith.constant 0 : index
    %c0_114 = arith.constant 0 : index
    %c0_115 = arith.constant 0 : index
    %133 = vector.load %arg4[%c0_112, %c0_113, %c0_114, %c0_115] : memref<1x16x16x128xf32, #tpu.memory_space<vmem>>, vector<1x16x16x128xf32>
    %134 = vector.shape_cast %133 : vector<1x16x16x128xf32> to vector<16x16x128xf32>
    %135 = vector.shape_cast %132 : vector<16x16x128xf32> to vector<1x16x16x128xf32>
    tpu.vector_store %arg4[%c0_112, %c0_113, %c0_114, %c0_115], %135 {strides = array<i32>} : memref<1x16x16x128xf32, #tpu.memory_space<vmem>>, vector<1x16x16x128xf32>,
    return
  }
  func.func @transform_0(%arg0: i32) -> (i32, i32, i32, i32) {
    %c0_i32 = arith.constant 0 : i32
    %c0_i32_0 = arith.constant 0 : i32
    %c0_i32_1 = arith.constant 0 : i32
    %c0_i32_2 = arith.constant 0 : i32
    return %arg0, %c0_i32, %c0_i32_0, %c0_i32_1 : i32, i32, i32, i32
  }
  func.func @transform_1(%arg0: i32) -> (i32, i32, i32, i32) {
    %c0_i32 = arith.constant 0 : i32
    %c0_i32_0 = arith.constant 0 : i32
    %c0_i32_1 = arith.constant 0 : i32
    %c0_i32_2 = arith.constant 0 : i32
    %c0_i32_3 = arith.constant 0 : i32
    return %c0_i32, %c0_i32_0, %c0_i32_1, %c0_i32_2 : i32, i32, i32, i32
  }
  func.func @transform_2(%arg0: i32) -> (i32, i32) {
    %c0_i32 = arith.constant 0 : i32
    %c0_i32_0 = arith.constant 0 : i32
    %c0_i32_1 = arith.constant 0 : i32
    return %c0_i32, %c0_i32_0 : i32, i32
  }
  func.func @transform_3(%arg0: i32) -> (i32, i32, i32, i32) {
    %c0_i32 = arith.constant 0 : i32
    %c0_i32_0 = arith.constant 0 : i32
    %c0_i32_1 = arith.constant 0 : i32
    %c0_i32_2 = arith.constant 0 : i32
    return %arg0, %c0_i32, %c0_i32_0, %c0_i32_1 : i32, i32, i32, i32
  }
}

</mosaic_0001>

<llo_original>
// kernel: non_bottleneck_1d_forward.1
$region0: #{non_bottleneck_1d_forward.1}
  #allocation0 [shape = 'u32[]', space=smem, size = 0x4, offset = 0x4, fixed_abs, tag = 'smem constant byte address 0x4 - core index']
  #allocation1 [shape = 'u32[72,128]{1,0:T(1,128)}', space=vmem, size = 0x9000, scoped, tag = 'internal scratch']
  #allocation2 [shape = 'bf16[20,16,128]{2,1,0:T(8,128)(2,1)}', space=vmem, size = 0x14000, scoped, tag = 'scratch operand']
  %s0 = inlined_call_operand.vmem [shape: f32[2,16,16,128], index: 0, kind: input, shape index: {}]
  %s1 = inlined_call_operand.vmem [shape: bf16[4,3,128,128], index: 1, kind: input, shape index: {}]
  %s2 = inlined_call_operand.vmem [shape: f32[4,128], index: 2, kind: input, shape index: {}]
  %s3 = inlined_call_operand.vmem [shape: f32[2,16,16,128], index: 3, kind: output, shape index: {}]
  %s4 = sld [smem:[#allocation0]]
  $region45: #{non_bottleneck_1d_forward.1} parent=0
    _
  %s6 = ssub.s32 1, %s4
  %s7 = scalar_select 0, %s6, %s4
  loop: start=0, step=1, limit=4
  $region2: #{non_bottleneck_1d_forward.1} parent=0 // loop_pre_header
    _
  $region3: #{non_bottleneck_1d_forward.1} parent=0 // loop_header
    %s9 = sphi 0, %s13
    %p10 = scmp.ge.s32.totalorder %s9, 4
    %s19 = sphi 0, %s21
    %s22 = sphi 0, %s19
    %s23 = sphi 0, %s22
    %s39 = sphi 0, %s23
    %s43 = sphi 0, %s43
    %s45 = sphi 0, %s43
    %s46 = sphi 0, %s45
    %s60 = sphi 0, %s46
    %s64 = sphi 0, %s64
    %s66 = sphi 0, %s64
    %s67 = sphi 0, %s66
    %s81 = sphi 0, %s67
    %s87 = sphi 0, %s89
    %s90 = sphi 0, %s87
    %s91 = sphi 0, %s90
    %s107 = sphi 0, %s91
  $region4: #{non_bottleneck_1d_forward.1} parent=0 // loop_header_branch
    %12 = sbr.rel (%p10) target = $region8
  $region5: #{non_bottleneck_1d_forward.1} parent=0 // loop_body
    %s14 = ssub.s32 %s9, 1
    %s15 = ssub.s32 %s9, 2
    %s16 = sadd.s32 %s9, 1
    %s17 = ssub.s32 %s9, %s16
    %p18 = scmp.eq.s32.totalorder %s17, 0
    %s20 = sadd.s32 %s19, 1
    %s21 = scalar_select %p18, %s19, %s20
    %p24 = pneg %p18
    %p25 = scmp.eq.s32.totalorder %s9, 1
    %p26 = por %p24, %p25
    %p27 = scmp.ne.s32.totalorder %s19, %s22
    %p28 = scmp.eq.s32.totalorder %s9, 0
    %p29 = por %p27, %p28
    %p30 = scmp.ne.s32.totalorder %s19, %s22
    %p31 = scmp.eq.s32.totalorder %s14, 1
    %p32 = por %p30, %p31
    %p33 = scmp.ne.s32.totalorder %s22, %s23
    %p34 = scmp.eq.s32.totalorder %s14, 0
    %p35 = por %p33, %p34
    %p36 = scmp.ne.s32.totalorder %s22, %s23
    %p37 = scmp.eq.s32.totalorder %s15, 1
    %p38 = por %p36, %p37
    %p40 = scmp.ne.s32.totalorder %s23, %s39
    %p41 = scmp.eq.s32.totalorder %s15, 0
    %p42 = por %p40, %p41
    %s44 = sadd.s32 %s43, 1
    %p47 = scmp.eq.s32.totalorder %s9, 1
    %p48 = scmp.ne.s32.totalorder %s43, %s45
    %p49 = scmp.eq.s32.totalorder %s9, 0
    %p50 = por %p48, %p49
    %p51 = scmp.ne.s32.totalorder %s43, %s45
    %p52 = scmp.eq.s32.totalorder %s14, 1
    %p53 = por %p51, %p52
    %p54 = scmp.ne.s32.totalorder %s45, %s46
    %p55 = scmp.eq.s32.totalorder %s14, 0
    %p56 = por %p54, %p55
    %p57 = scmp.ne.s32.totalorder %s45, %s46
    %p58 = scmp.eq.s32.totalorder %s15, 1
    %p59 = por %p57, %p58
    %p61 = scmp.ne.s32.totalorder %s46, %s60
    %p62 = scmp.eq.s32.totalorder %s15, 0
    %p63 = por %p61, %p62
    %s65 = sadd.s32 %s64, 1
    %p68 = scmp.eq.s32.totalorder %s9, 1
    %p69 = scmp.ne.s32.totalorder %s64, %s66
    %p70 = scmp.eq.s32.totalorder %s9, 0
    %p71 = por %p69, %p70
    %p72 = scmp.ne.s32.totalorder %s64, %s66
    %p73 = scmp.eq.s32.totalorder %s14, 1
    %p74 = por %p72, %p73
    %p75 = scmp.ne.s32.totalorder %s66, %s67
    %p76 = scmp.eq.s32.totalorder %s14, 0
    %p77 = por %p75, %p76
    %p78 = scmp.ne.s32.totalorder %s66, %s67
    %p79 = scmp.eq.s32.totalorder %s15, 1
    %p80 = por %p78, %p79
    %p82 = scmp.ne.s32.totalorder %s67, %s81
    %p83 = scmp.eq.s32.totalorder %s15, 0
    %p84 = por %p82, %p83
    %s85 = ssub.s32 %s9, %s16
    %p86 = scmp.eq.s32.totalorder %s85, 0
    %s88 = sadd.s32 %s87, 1
    %s89 = scalar_select %p86, %s87, %s88
    %p92 = pneg %p86
    %p93 = scmp.eq.s32.totalorder %s9, 1
    %p94 = por %p92, %p93
    %p95 = scmp.ne.s32.totalorder %s87, %s90
    %p96 = scmp.eq.s32.totalorder %s9, 0
    %p97 = por %p95, %p96
    %p98 = scmp.ne.s32.totalorder %s87, %s90
    %p99 = scmp.eq.s32.totalorder %s14, 1
    %p100 = por %p98, %p99
    %p101 = scmp.ne.s32.totalorder %s90, %s91
    %p102 = scmp.eq.s32.totalorder %s14, 0
    %p103 = por %p101, %p102
    %p104 = scmp.ne.s32.totalorder %s90, %s91
    %p105 = scmp.eq.s32.totalorder %s15, 1
    %p106 = por %p104, %p105
    %p108 = scmp.ne.s32.totalorder %s91, %s107
    %p109 = scmp.eq.s32.totalorder %s15, 0
    %p110 = por %p108, %p109
    %p111 = scmp.le.s32.totalorder 1, %s9
    %p112 = scmp.lt.s32.totalorder %s9, 3
    %p113 = pnand %p111, %p112
    %p114 = pneg %p113
    // Predicated region
    $region9: #{non_bottleneck_1d_forward.1} parent=5 // pred_check
      _
    $region10: #{non_bottleneck_1d_forward.1} parent=5 // pred_check_branch
      %116 = sbr.rel (%p113) target = $region12
    $region11: #{non_bottleneck_1d_forward.1} parent=5 // pred_region
      %s117 = ssub.s32 %s9, 1
      // Predicated region
      $region13: #{non_bottleneck_1d_forward.1} parent=11 // pred_check
        %p118 = pneg %p56
      $region14: #{non_bottleneck_1d_forward.1} parent=11 // pred_check_branch
        %120 = sbr.rel (%p118) target = $region16
      $region15: #{non_bottleneck_1d_forward.1} parent=11 // pred_region
        _
      $region16: #{non_bottleneck_1d_forward.1} parent=11 // pred_fallthru
        _
      // Predicated region
      $region17: #{non_bottleneck_1d_forward.1} parent=11 // pred_check
        %p121 = pneg %p77
      $region18: #{non_bottleneck_1d_forward.1} parent=11 // pred_check_branch
        %123 = sbr.rel (%p121) target = $region20
      $region19: #{non_bottleneck_1d_forward.1} parent=11 // pred_region
        _
      $region20: #{non_bottleneck_1d_forward.1} parent=11 // pred_fallthru
        _
    $region12: #{non_bottleneck_1d_forward.1} parent=5 // pred_fallthru
      _
    %p124 = scmp.lt.s32.totalorder %s9, 2
    // Predicated region
    $region21: #{non_bottleneck_1d_forward.1} parent=5 // pred_check
      %p125 = pneg %p124
    $region22: #{non_bottleneck_1d_forward.1} parent=5 // pred_check_branch
      %127 = sbr.rel (%p125) target = $region24
    $region23: #{non_bottleneck_1d_forward.1} parent=5 // pred_region
      // Predicated region
      $region25: #{non_bottleneck_1d_forward.1} parent=23 // pred_check
        %p128 = pneg %p29
      $region26: #{non_bottleneck_1d_forward.1} parent=23 // pred_check_branch
        %130 = sbr.rel (%p128) target = $region28
      $region27: #{non_bottleneck_1d_forward.1} parent=23 // pred_region
        %p131 = scmp.lt.s32.totalorder %s9, 1
        %s132 = scalar_select %p131, %s9, 1
        %s133 = smul.addr %s132, 32
        %s134 = smul.addr %s133, 8
        %s135 = scalar_lea.vmem %s0, %s134
      $region28: #{non_bottleneck_1d_forward.1} parent=23 // pred_fallthru
        _
    $region24: #{non_bottleneck_1d_forward.1} parent=5 // pred_fallthru
      _
    %p136 = scmp.le.s32.totalorder 1, %s9
    %p137 = scmp.lt.s32.totalorder %s9, 3
    %p138 = pnand %p136, %p137
    %p139 = pneg %p138
    // Predicated region
    $region29: #{non_bottleneck_1d_forward.1} parent=5 // pred_check
      _
    $region30: #{non_bottleneck_1d_forward.1} parent=5 // pred_check_branch
      %141 = sbr.rel (%p138) target = $region32
    $region31: #{non_bottleneck_1d_forward.1} parent=5 // pred_region
      %s142 = ssub.s32 %s9, 1
      %p143 = scmp.lt.s32.totalorder %s14, 1
      %s144 = scalar_select %p143, %s14, 1
      %s145 = smul.addr %s144, 32
      %s146 = smul.addr %s145, 8
      %s147 = scalar_lea.vmem %s0, %s146
      %p148 = pneg %p35
      %p149 = pneg %p32
      %p150 = pneg %p56
      %p151 = pneg %p53
      %p152 = pneg %p77
      %p153 = pneg %p74
      %p154 = pneg %p103
      %p155 = pneg %p100
      %p156 = scmp.lt.s32.totalorder %s14, 1
      %s157 = scalar_select %p156, %s14, 1
      %s158 = smul.addr %s157, 32
      %s159 = smul.addr %s158, 8
      %s160 = scalar_lea.vmem %s3, %s159
      %p161 = scmp.lt.s32.totalorder %s14, 1
      %s162 = scalar_select %p161, %s14, 1
      %s163 = smul.addr %s162, 32
      %s164 = smul.addr %s163, 8
      %s165 = scalar_lea.vmem %s0, %s164
      %p166 = scmp.lt.s32.totalorder %s14, 1
      %s167 = scalar_select %p166, %s14, 1
      %s168 = smul.addr %s167, 32
      %s169 = smul.addr %s168, 8
      %s170 = scalar_lea.vmem %s3, %s169
      %172 = vst [vmem:[#allocation2] sm:$0xf] 0
      %173 = vst [vmem:[#allocation2 + $0x4] sm:$0xf] 0
      %174 = vst [vmem:[#allocation2 + $0x8] sm:$0xf] 0
      %175 = vst [vmem:[#allocation2 + $0xc] sm:$0xf] 0
      %s176 = scalar_lea.vmem [#allocation2], 144
      %177 = vst [vmem:[%s176] sm:$0xf] 0
      %178 = vst [vmem:[%s176 + $0x4] sm:$0xf] 0
      %179 = vst [vmem:[%s176 + $0x8] sm:$0xf] 0
      %180 = vst [vmem:[%s176 + $0xc] sm:$0xf] 0
      %v181 = vlaneseq
      %v182 = vshrl.u32 %v181, 7
      %v183 = vadd.s32 %v182, 8
      %v184 = vld [vmem:[%s165] sm:$0xff]
      %v185 = vld [vmem:[%s165 + $0x8] sm:$0xff]
      %v186 = vld [vmem:[%s165 + $0x10] sm:$0xff]
      %v187 = vld [vmem:[%s165 + $0x18] sm:$0xff]
      %v188 = vld [vmem:[%s165 + $0x20] sm:$0xff]
      %v189 = vld [vmem:[%s165 + $0x28] sm:$0xff]
      %v190 = vld [vmem:[%s165 + $0x30] sm:$0xff]
      %v191 = vld [vmem:[%s165 + $0x38] sm:$0xff]
      %v192 = vld [vmem:[%s165 + $0x40] sm:$0xff]
      %v193 = vld [vmem:[%s165 + $0x48] sm:$0xff]
      %v194 = vld [vmem:[%s165 + $0x50] sm:$0xff]
      %v195 = vld [vmem:[%s165 + $0x58] sm:$0xff]
      %v196 = vld [vmem:[%s165 + $0x60] sm:$0xff]
      %v197 = vld [vmem:[%s165 + $0x68] sm:$0xff]
      %v198 = vld [vmem:[%s165 + $0x70] sm:$0xff]
      %v199 = vld [vmem:[%s165 + $0x78] sm:$0xff]
      %v200 = vld [vmem:[%s165 + $0x80] sm:$0xff]
      %v201 = vld [vmem:[%s165 + $0x88] sm:$0xff]
      %v202 = vld [vmem:[%s165 + $0x90] sm:$0xff]
      %v203 = vld [vmem:[%s165 + $0x98] sm:$0xff]
      %v204 = vld [vmem:[%s165 + $0xa0] sm:$0xff]
      %v205 = vld [vmem:[%s165 + $0xa8] sm:$0xff]
      %v206 = vld [vmem:[%s165 + $0xb0] sm:$0xff]
      %v207 = vld [vmem:[%s165 + $0xb8] sm:$0xff]
      %v208 = vld [vmem:[%s165 + $0xc0] sm:$0xff]
      %v209 = vld [vmem:[%s165 + $0xc8] sm:$0xff]
      %v210 = vld [vmem:[%s165 + $0xd0] sm:$0xff]
      %v211 = vld [vmem:[%s165 + $0xd8] sm:$0xff]
      %v212 = vld [vmem:[%s165 + $0xe0] sm:$0xff]
      %v213 = vld [vmem:[%s165 + $0xe8] sm:$0xff]
      %v214 = vld [vmem:[%s165 + $0xf0] sm:$0xff]
      %v215 = vld [vmem:[%s165 + $0xf8] sm:$0xff]
      %v216 = vpack.c.bf16 %v184, %v184
      %v217 = vpack.c.bf16 %v185, %v185
      %v218 = vpack.c.bf16 %v186, %v186
      %v219 = vpack.c.bf16 %v187, %v187
      %v220 = vpack.c.bf16 %v188, %v188
      %v221 = vpack.c.bf16 %v189, %v189
      %v222 = vpack.c.bf16 %v190, %v190
      %v223 = vpack.c.bf16 %v191, %v191
      %v224 = vpack.c.bf16 %v192, %v192
      %v225 = vpack.c.bf16 %v193, %v193
      %v226 = vpack.c.bf16 %v194, %v194
      %v227 = vpack.c.bf16 %v195, %v195
      %v228 = vpack.c.bf16 %v196, %v196
      %v229 = vpack.c.bf16 %v197, %v197
      %v230 = vpack.c.bf16 %v198, %v198
      %v231 = vpack.c.bf16 %v199, %v199
      %v232 = vpack.c.bf16 %v200, %v200
      %v233 = vpack.c.bf16 %v201, %v201
      %v234 = vpack.c.bf16 %v202, %v202
      %v235 = vpack.c.bf16 %v203, %v203
      %v236 = vpack.c.bf16 %v204, %v204
      %v237 = vpack.c.bf16 %v205, %v205
      %v238 = vpack.c.bf16 %v206, %v206
      %v239 = vpack.c.bf16 %v207, %v207
      %v240 = vpack.c.bf16 %v208, %v208
      %v241 = vpack.c.bf16 %v209, %v209
      %v242 = vpack.c.bf16 %v210, %v210
      %v243 = vpack.c.bf16 %v211, %v211
      %v244 = vpack.c.bf16 %v212, %v212
      %v245 = vpack.c.bf16 %v213, %v213
      %v246 = vpack.c.bf16 %v214, %v214
      %v247 = vpack.c.bf16 %v215, %v215
      %s248 = scalar_lea.vmem [#allocation2], 16
      %249 = vst [vmem:[%s248] sm:$0xf] %v216
      %250 = vst [vmem:[%s248 + $0x4] sm:$0xf] %v217
      %251 = vst [vmem:[%s248 + $0x8] sm:$0xf] %v218
      %252 = vst [vmem:[%s248 + $0xc] sm:$0xf] %v219
      %253 = vst [vmem:[%s248 + $0x10] sm:$0xf] %v220
      %254 = vst [vmem:[%s248 + $0x14] sm:$0xf] %v221
      %255 = vst [vmem:[%s248 + $0x18] sm:$0xf] %v222
      %256 = vst [vmem:[%s248 + $0x1c] sm:$0xf] %v223
      %257 = vst [vmem:[%s248 + $0x20] sm:$0xf] %v224
      %258 = vst [vmem:[%s248 + $0x24] sm:$0xf] %v225
      %259 = vst [vmem:[%s248 + $0x28] sm:$0xf] %v226
      %260 = vst [vmem:[%s248 + $0x2c] sm:$0xf] %v227
      %261 = vst [vmem:[%s248 + $0x30] sm:$0xf] %v228
      %262 = vst [vmem:[%s248 + $0x34] sm:$0xf] %v229
      %263 = vst [vmem:[%s248 + $0x38] sm:$0xf] %v230
      %264 = vst [vmem:[%s248 + $0x3c] sm:$0xf] %v231
      %265 = vst [vmem:[%s248 + $0x40] sm:$0xf] %v232
      %266 = vst [vmem:[%s248 + $0x44] sm:$0xf] %v233
      %267 = vst [vmem:[%s248 + $0x48] sm:$0xf] %v234
      %268 = vst [vmem:[%s248 + $0x4c] sm:$0xf] %v235
      %269 = vst [vmem:[%s248 + $0x50] sm:$0xf] %v236
      %270 = vst [vmem:[%s248 + $0x54] sm:$0xf] %v237
      %271 = vst [vmem:[%s248 + $0x58] sm:$0xf] %v238
      %272 = vst [vmem:[%s248 + $0x5c] sm:$0xf] %v239
      %273 = vst [vmem:[%s248 + $0x60] sm:$0xf] %v240
      %274 = vst [vmem:[%s248 + $0x64] sm:$0xf] %v241
      %275 = vst [vmem:[%s248 + $0x68] sm:$0xf] %v242
      %276 = vst [vmem:[%s248 + $0x6c] sm:$0xf] %v243
      %277 = vst [vmem:[%s248 + $0x70] sm:$0xf] %v244
      %278 = vst [vmem:[%s248 + $0x74] sm:$0xf] %v245
      %279 = vst [vmem:[%s248 + $0x78] sm:$0xf] %v246
      %280 = vst [vmem:[%s248 + $0x7c] sm:$0xf] %v247
      %v281 = vld [vmem:[%s248] sm:$0xf]
      %v282 = vld [vmem:[%s248 + $0x4] sm:$0xf]
      %v283 = vld [vmem:[%s248 + $0x8] sm:$0xf]
      %v284 = vld [vmem:[%s248 + $0xc] sm:$0xf]
      %v285 = vld [vmem:[%s248 + $0x10] sm:$0xf]
      %v286 = vld [vmem:[%s248 + $0x14] sm:$0xf]
      %v287 = vld [vmem:[%s248 + $0x18] sm:$0xf]
      %v288 = vld [vmem:[%s248 + $0x1c] sm:$0xf]
      %v289 = vld [vmem:[%s248 + $0x20] sm:$0xf]
      %v290 = vld [vmem:[%s248 + $0x24] sm:$0xf]
      %v291 = vld [vmem:[%s248 + $0x28] sm:$0xf]
      %v292 = vld [vmem:[%s248 + $0x2c] sm:$0xf]
      %v293 = vld [vmem:[%s248 + $0x30] sm:$0xf]
      %v294 = vld [vmem:[%s248 + $0x34] sm:$0xf]
      %v295 = vld [vmem:[%s248 + $0x38] sm:$0xf]
      %v296 = vld [vmem:[%s248 + $0x3c] sm:$0xf]
      %v297 = vld [vmem:[%s248 + $0x40] sm:$0xf]
      %v298 = vld [vmem:[%s248 + $0x44] sm:$0xf]
      %v299 = vld [vmem:[%s248 + $0x48] sm:$0xf]
      %v300 = vld [vmem:[%s248 + $0x4c] sm:$0xf]
      %v301 = vld [vmem:[%s248 + $0x50] sm:$0xf]
      %v302 = vld [vmem:[%s248 + $0x54] sm:$0xf]
      %v303 = vld [vmem:[%s248 + $0x58] sm:$0xf]
      %v304 = vld [vmem:[%s248 + $0x5c] sm:$0xf]
      %v305 = vld [vmem:[%s248 + $0x60] sm:$0xf]
      %v306 = vld [vmem:[%s248 + $0x64] sm:$0xf]
      %v307 = vld [vmem:[%s248 + $0x68] sm:$0xf]
      %v308 = vld [vmem:[%s248 + $0x6c] sm:$0xf]
      %v309 = vld [vmem:[%s248 + $0x70] sm:$0xf]
      %v310 = vld [vmem:[%s248 + $0x74] sm:$0xf]
      %v311 = vld [vmem:[%s248 + $0x78] sm:$0xf]
      %v312 = vld [vmem:[%s248 + $0x7c] sm:$0xf]
      %s313 = scalar_lea.vmem %s1, 64
      %v314 = vld [vmem:[%s313] sm:$0xf]
      %v315 = vld [vmem:[%s313 + $0x4] sm:$0xf]
      %v316 = vld [vmem:[%s313 + $0x8] sm:$0xf]
      %v317 = vld [vmem:[%s313 + $0xc] sm:$0xf]
      %v318 = vld [vmem:[%s313 + $0x10] sm:$0xf]
      %v319 = vld [vmem:[%s313 + $0x14] sm:$0xf]
      %v320 = vld [vmem:[%s313 + $0x18] sm:$0xf]
      %v321 = vld [vmem:[%s313 + $0x1c] sm:$0xf]
      %v322 = vld [vmem:[%s313 + $0x20] sm:$0xf]
      %v323 = vld [vmem:[%s313 + $0x24] sm:$0xf]
      %v324 = vld [vmem:[%s313 + $0x28] sm:$0xf]
      %v325 = vld [vmem:[%s313 + $0x2c] sm:$0xf]
      %v326 = vld [vmem:[%s313 + $0x30] sm:$0xf]
      %v327 = vld [vmem:[%s313 + $0x34] sm:$0xf]
      %v328 = vld [vmem:[%s313 + $0x38] sm:$0xf]
      %v329 = vld [vmem:[%s313 + $0x3c] sm:$0xf]
      %s330 = scalar_lea.vmem [#allocation2], 8
      %v331 = vld [vmem:[%s330] sm:$0xf]
      %v332 = vld [vmem:[%s330 + $0x4] sm:$0xf]
      %v333 = vld [vmem:[%s330 + $0x8] sm:$0xf]
      %v334 = vld [vmem:[%s330 + $0xc] sm:$0xf]
      %v335 = vld [vmem:[%s330 + $0x10] sm:$0xf]
      %v336 = vld [vmem:[%s330 + $0x14] sm:$0xf]
      %v337 = vld [vmem:[%s330 + $0x18] sm:$0xf]
      %v338 = vld [vmem:[%s330 + $0x1c] sm:$0xf]
      %v339 = vld [vmem:[%s330 + $0x20] sm:$0xf]
      %v340 = vld [vmem:[%s330 + $0x24] sm:$0xf]
      %v341 = vld [vmem:[%s330 + $0x28] sm:$0xf]
      %v342 = vld [vmem:[%s330 + $0x2c] sm:$0xf]
      %v343 = vld [vmem:[%s330 + $0x30] sm:$0xf]
      %v344 = vld [vmem:[%s330 + $0x34] sm:$0xf]
      %v345 = vld [vmem:[%s330 + $0x38] sm:$0xf]
      %v346 = vld [vmem:[%s330 + $0x3c] sm:$0xf]
      %v347 = vld [vmem:[%s330 + $0x40] sm:$0xf]
      %v348 = vld [vmem:[%s330 + $0x44] sm:$0xf]
      %v349 = vld [vmem:[%s330 + $0x48] sm:$0xf]
      %v350 = vld [vmem:[%s330 + $0x4c] sm:$0xf]
      %v351 = vld [vmem:[%s330 + $0x50] sm:$0xf]
      %v352 = vld [vmem:[%s330 + $0x54] sm:$0xf]
      %v353 = vld [vmem:[%s330 + $0x58] sm:$0xf]
      %v354 = vld [vmem:[%s330 + $0x5c] sm:$0xf]
      %v355 = vld [vmem:[%s330 + $0x60] sm:$0xf]
      %v356 = vld [vmem:[%s330 + $0x64] sm:$0xf]
      %v357 = vld [vmem:[%s330 + $0x68] sm:$0xf]
      %v358 = vld [vmem:[%s330 + $0x6c] sm:$0xf]
      %v359 = vld [vmem:[%s330 + $0x70] sm:$0xf]
      %v360 = vld [vmem:[%s330 + $0x74] sm:$0xf]
      %v361 = vld [vmem:[%s330 + $0x78] sm:$0xf]
      %v362 = vld [vmem:[%s330 + $0x7c] sm:$0xf]
      %v363 = vld [vmem:[%s1] sm:$0xf]
      %v364 = vld [vmem:[%s1 + $0x4] sm:$0xf]
      %v365 = vld [vmem:[%s1 + $0x8] sm:$0xf]
      %v366 = vld [vmem:[%s1 + $0xc] sm:$0xf]
      %v367 = vld [vmem:[%s1 + $0x10] sm:$0xf]
      %v368 = vld [vmem:[%s1 + $0x14] sm:$0xf]
      %v369 = vld [vmem:[%s1 + $0x18] sm:$0xf]
      %v370 = vld [vmem:[%s1 + $0x1c] sm:$0xf]
      %v371 = vld [vmem:[%s1 + $0x20] sm:$0xf]
      %v372 = vld [vmem:[%s1 + $0x24] sm:$0xf]
      %v373 = vld [vmem:[%s1 + $0x28] sm:$0xf]
      %v374 = vld [vmem:[%s1 + $0x2c] sm:$0xf]
      %v375 = vld [vmem:[%s1 + $0x30] sm:$0xf]
      %v376 = vld [vmem:[%s1 + $0x34] sm:$0xf]
      %v377 = vld [vmem:[%s1 + $0x38] sm:$0xf]
      %v378 = vld [vmem:[%s1 + $0x3c] sm:$0xf]
      %v411 = vunpack.c.l.b16 %v331
      %v412 = vunpack.c.l.b16 %v332
      %v413 = vunpack.c.l.b16 %v333
      %v414 = vunpack.c.l.b16 %v334
      %v415 = vunpack.c.l.b16 %v335
      %v416 = vunpack.c.l.b16 %v336
      %v417 = vunpack.c.l.b16 %v337
      %v418 = vunpack.c.l.b16 %v338
      %v419 = vunpack.c.l.b16 %v339
      %v420 = vunpack.c.l.b16 %v340
      %v421 = vunpack.c.l.b16 %v341
      %v422 = vunpack.c.l.b16 %v342
      %v423 = vunpack.c.l.b16 %v343
      %v424 = vunpack.c.l.b16 %v344
      %v425 = vunpack.c.l.b16 %v345
      %v426 = vunpack.c.l.b16 %v346
      %v427 = vunpack.c.l.b16 %v347
      %v428 = vunpack.c.l.b16 %v348
      %v429 = vunpack.c.l.b16 %v349
      %v430 = vunpack.c.l.b16 %v350
      %v431 = vunpack.c.l.b16 %v351
      %v432 = vunpack.c.l.b16 %v352
      %v433 = vunpack.c.l.b16 %v353
      %v434 = vunpack.c.l.b16 %v354
      %v435 = vunpack.c.l.b16 %v355
      %v436 = vunpack.c.l.b16 %v356
      %v437 = vunpack.c.l.b16 %v357
      %v438 = vunpack.c.l.b16 %v358
      %v439 = vunpack.c.l.b16 %v359
      %v440 = vunpack.c.l.b16 %v360
      %v441 = vunpack.c.l.b16 %v361
      %v442 = vunpack.c.l.b16 %v362
      %v443 = vpack.c.b16 %v412, %v411
      %v444 = vpack.c.b16 %v414, %v413
      %v445 = vpack.c.b16 %v416, %v415
      %v446 = vpack.c.b16 %v418, %v417
      %v447 = vpack.c.b16 %v420, %v419
      %v448 = vpack.c.b16 %v422, %v421
      %v449 = vpack.c.b16 %v424, %v423
      %v450 = vpack.c.b16 %v426, %v425
      %v451 = vpack.c.b16 %v428, %v427
      %v452 = vpack.c.b16 %v430, %v429
      %v453 = vpack.c.b16 %v432, %v431
      %v454 = vpack.c.b16 %v434, %v433
      %v455 = vpack.c.b16 %v436, %v435
      %v456 = vpack.c.b16 %v438, %v437
      %v457 = vpack.c.b16 %v440, %v439
      %v458 = vpack.c.b16 %v442, %v441
      %v491 = vunpack.c.l.b16 %v363
      %v492 = vunpack.c.l.b16 %v364
      %v493 = vunpack.c.l.b16 %v365
      %v494 = vunpack.c.l.b16 %v366
      %v495 = vunpack.c.l.b16 %v367
      %v496 = vunpack.c.l.b16 %v368
      %v497 = vunpack.c.l.b16 %v369
      %v498 = vunpack.c.l.b16 %v370
      %v499 = vunpack.c.l.b16 %v371
      %v500 = vunpack.c.l.b16 %v372
      %v501 = vunpack.c.l.b16 %v373
      %v502 = vunpack.c.l.b16 %v374
      %v503 = vunpack.c.l.b16 %v375
      %v504 = vunpack.c.l.b16 %v376
      %v505 = vunpack.c.l.b16 %v377
      %v506 = vunpack.c.l.b16 %v378
      %v507 = vpack.c.b16 %v492, %v491
      %v508 = vpack.c.b16 %v494, %v493
      %v509 = vpack.c.b16 %v496, %v495
      %v510 = vpack.c.b16 %v498, %v497
      %v511 = vpack.c.b16 %v500, %v499
      %v512 = vpack.c.b16 %v502, %v501
      %v513 = vpack.c.b16 %v504, %v503
      %v514 = vpack.c.b16 %v506, %v505
      %523 = vmatpush.bf16.msra.mxu0 %v514
      %524 = vmatpush.bf16.msra.mxu0 %v513
      %525 = vmatpush.bf16.msra.mxu0 %v512
      %526 = vmatpush.bf16.msra.mxu0 %v511
      %527 = vmatpush.bf16.msra.mxu0 %v510
      %528 = vmatpush.bf16.msra.mxu0 %v509
      %529 = vmatpush.bf16.msra.mxu0 %v508
      %530 = vmatpush.bf16.msra.mxu0 %v507
      %531 = vmatmul.bf16.gmra.mxu0 %v443
      %v532 = vpop.f32.mrf.mxu0
      %v533 = vadd.f32 0.0, %v532
      %v534 = vpop.f32.mrf.mxu0
      %v535 = vadd.f32 0.0, %v534
      %536 = vmatmul.bf16.gmra.mxu0 %v444
      %v537 = vpop.f32.mrf.mxu0
      %v538 = vadd.f32 0.0, %v537
      %v539 = vpop.f32.mrf.mxu0
      %v540 = vadd.f32 0.0, %v539
      %541 = vmatmul.bf16.gmra.mxu0 %v445
      %v542 = vpop.f32.mrf.mxu0
      %v543 = vadd.f32 0.0, %v542
      %v544 = vpop.f32.mrf.mxu0
      %v545 = vadd.f32 0.0, %v544
      %546 = vmatmul.bf16.gmra.mxu0 %v446
      %v547 = vpop.f32.mrf.mxu0
      %v548 = vadd.f32 0.0, %v547
      %v549 = vpop.f32.mrf.mxu0
      %v550 = vadd.f32 0.0, %v549
      %551 = vmatmul.bf16.gmra.mxu0 %v447
      %v552 = vpop.f32.mrf.mxu0
      %v553 = vadd.f32 0.0, %v552
      %v554 = vpop.f32.mrf.mxu0
      %v555 = vadd.f32 0.0, %v554
      %556 = vmatmul.bf16.gmra.mxu0 %v448
      %v557 = vpop.f32.mrf.mxu0
      %v558 = vadd.f32 0.0, %v557
      %v559 = vpop.f32.mrf.mxu0
      %v560 = vadd.f32 0.0, %v559
      %561 = vmatmul.bf16.gmra.mxu0 %v449
      %v562 = vpop.f32.mrf.mxu0
      %v563 = vadd.f32 0.0, %v562
      %v564 = vpop.f32.mrf.mxu0
      %v565 = vadd.f32 0.0, %v564
      %566 = vmatmul.bf16.gmra.mxu0 %v450
      %v567 = vpop.f32.mrf.mxu0
      %v568 = vadd.f32 0.0, %v567
      %v569 = vpop.f32.mrf.mxu0
      %v570 = vadd.f32 0.0, %v569
      %571 = vmatmul.bf16.gmra.mxu0 %v451
      %v572 = vpop.f32.mrf.mxu0
      %v573 = vadd.f32 0.0, %v572
      %v574 = vpop.f32.mrf.mxu0
      %v575 = vadd.f32 0.0, %v574
      %576 = vmatmul.bf16.gmra.mxu0 %v452
      %v577 = vpop.f32.mrf.mxu0
      %v578 = vadd.f32 0.0, %v577
      %v579 = vpop.f32.mrf.mxu0
      %v580 = vadd.f32 0.0, %v579
      %581 = vmatmul.bf16.gmra.mxu0 %v453
      %v582 = vpop.f32.mrf.mxu0
      %v583 = vadd.f32 0.0, %v582
      %v584 = vpop.f32.mrf.mxu0
      %v585 = vadd.f32 0.0, %v584
      %586 = vmatmul.bf16.gmra.mxu0 %v454
      %v587 = vpop.f32.mrf.mxu0
      %v588 = vadd.f32 0.0, %v587
      %v589 = vpop.f32.mrf.mxu0
      %v590 = vadd.f32 0.0, %v589
      %591 = vmatmul.bf16.gmra.mxu0 %v455
      %v592 = vpop.f32.mrf.mxu0
      %v593 = vadd.f32 0.0, %v592
      %v594 = vpop.f32.mrf.mxu0
      %v595 = vadd.f32 0.0, %v594
      %596 = vmatmul.bf16.gmra.mxu0 %v456
      %v597 = vpop.f32.mrf.mxu0
      %v598 = vadd.f32 0.0, %v597
      %v599 = vpop.f32.mrf.mxu0
      %v600 = vadd.f32 0.0, %v599
      %601 = vmatmul.bf16.gmra.mxu0 %v457
      %v602 = vpop.f32.mrf.mxu0
      %v603 = vadd.f32 0.0, %v602
      %v604 = vpop.f32.mrf.mxu0
      %v605 = vadd.f32 0.0, %v604
      %606 = vmatmul.bf16.gmra.mxu0 %v458
      %v607 = vpop.f32.mrf.mxu0
      %v608 = vadd.f32 0.0, %v607
      %v609 = vpop.f32.mrf.mxu0
      %v610 = vadd.f32 0.0, %v609
      %611 = vdwg.mxu0
      %v644 = vunpack.c.l.b16 %v281
      %v645 = vunpack.c.l.b16 %v282
      %v646 = vunpack.c.l.b16 %v283
      %v647 = vunpack.c.l.b16 %v284
      %v648 = vunpack.c.l.b16 %v285
      %v649 = vunpack.c.l.b16 %v286
      %v650 = vunpack.c.l.b16 %v287
      %v651 = vunpack.c.l.b16 %v288
      %v652 = vunpack.c.l.b16 %v289
      %v653 = vunpack.c.l.b16 %v290
      %v654 = vunpack.c.l.b16 %v291
      %v655 = vunpack.c.l.b16 %v292
      %v656 = vunpack.c.l.b16 %v293
      %v657 = vunpack.c.l.b16 %v294
      %v658 = vunpack.c.l.b16 %v295
      %v659 = vunpack.c.l.b16 %v296
      %v660 = vunpack.c.l.b16 %v297
      %v661 = vunpack.c.l.b16 %v298
      %v662 = vunpack.c.l.b16 %v299
      %v663 = vunpack.c.l.b16 %v300
      %v664 = vunpack.c.l.b16 %v301
      %v665 = vunpack.c.l.b16 %v302
      %v666 = vunpack.c.l.b16 %v303
      %v667 = vunpack.c.l.b16 %v304
      %v668 = vunpack.c.l.b16 %v305
      %v669 = vunpack.c.l.b16 %v306
      %v670 = vunpack.c.l.b16 %v307
      %v671 = vunpack.c.l.b16 %v308
      %v672 = vunpack.c.l.b16 %v309
      %v673 = vunpack.c.l.b16 %v310
      %v674 = vunpack.c.l.b16 %v311
      %v675 = vunpack.c.l.b16 %v312
      %v676 = vpack.c.b16 %v645, %v644
      %v677 = vpack.c.b16 %v647, %v646
      %v678 = vpack.c.b16 %v649, %v648
      %v679 = vpack.c.b16 %v651, %v650
      %v680 = vpack.c.b16 %v653, %v652
      %v681 = vpack.c.b16 %v655, %v654
      %v682 = vpack.c.b16 %v657, %v656
      %v683 = vpack.c.b16 %v659, %v658
      %v684 = vpack.c.b16 %v661, %v660
      %v685 = vpack.c.b16 %v663, %v662
      %v686 = vpack.c.b16 %v665, %v664
      %v687 = vpack.c.b16 %v667, %v666
      %v688 = vpack.c.b16 %v669, %v668
      %v689 = vpack.c.b16 %v671, %v670
      %v690 = vpack.c.b16 %v673, %v672
      %v691 = vpack.c.b16 %v675, %v674
      %v724 = vunpack.c.l.b16 %v314
      %v725 = vunpack.c.l.b16 %v315
      %v726 = vunpack.c.l.b16 %v316
      %v727 = vunpack.c.l.b16 %v317
      %v728 = vunpack.c.l.b16 %v318
      %v729 = vunpack.c.l.b16 %v319
      %v730 = vunpack.c.l.b16 %v320
      %v731 = vunpack.c.l.b16 %v321
      %v732 = vunpack.c.l.b16 %v322
      %v733 = vunpack.c.l.b16 %v323
      %v734 = vunpack.c.l.b16 %v324
      %v735 = vunpack.c.l.b16 %v325
      %v736 = vunpack.c.l.b16 %v326
      %v737 = vunpack.c.l.b16 %v327
      %v738 = vunpack.c.l.b16 %v328
      %v739 = vunpack.c.l.b16 %v329
      %v740 = vpack.c.b16 %v725, %v724
      %v741 = vpack.c.b16 %v727, %v726
      %v742 = vpack.c.b16 %v729, %v728
      %v743 = vpack.c.b16 %v731, %v730
      %v744 = vpack.c.b16 %v733, %v732
      %v745 = vpack.c.b16 %v735, %v734
      %v746 = vpack.c.b16 %v737, %v736
      %v747 = vpack.c.b16 %v739, %v738
      %756 = vmatpush.bf16.msra.mxu0 %v747
      %757 = vmatpush.bf16.msra.mxu0 %v746
      %758 = vmatpush.bf16.msra.mxu0 %v745
      %759 = vmatpush.bf16.msra.mxu0 %v744
      %760 = vmatpush.bf16.msra.mxu0 %v743
      %761 = vmatpush.bf16.msra.mxu0 %v742
      %762 = vmatpush.bf16.msra.mxu0 %v741
      %763 = vmatpush.bf16.msra.mxu0 %v740
      %764 = vmatmul.bf16.gmra.mxu0 %v676
      %v765 = vpop.f32.mrf.mxu0
      %v766 = vadd.f32 %v533, %v765
      %v767 = vpop.f32.mrf.mxu0
      %v768 = vadd.f32 %v535, %v767
      %769 = vmatmul.bf16.gmra.mxu0 %v677
      %v770 = vpop.f32.mrf.mxu0
      %v771 = vadd.f32 %v538, %v770
      %v772 = vpop.f32.mrf.mxu0
      %v773 = vadd.f32 %v540, %v772
      %774 = vmatmul.bf16.gmra.mxu0 %v678
      %v775 = vpop.f32.mrf.mxu0
      %v776 = vadd.f32 %v543, %v775
      %v777 = vpop.f32.mrf.mxu0
      %v778 = vadd.f32 %v545, %v777
      %779 = vmatmul.bf16.gmra.mxu0 %v679
      %v780 = vpop.f32.mrf.mxu0
      %v781 = vadd.f32 %v548, %v780
      %v782 = vpop.f32.mrf.mxu0
      %v783 = vadd.f32 %v550, %v782
      %784 = vmatmul.bf16.gmra.mxu0 %v680
      %v785 = vpop.f32.mrf.mxu0
      %v786 = vadd.f32 %v553, %v785
      %v787 = vpop.f32.mrf.mxu0
      %v788 = vadd.f32 %v555, %v787
      %789 = vmatmul.bf16.gmra.mxu0 %v681
      %v790 = vpop.f32.mrf.mxu0
      %v791 = vadd.f32 %v558, %v790
      %v792 = vpop.f32.mrf.mxu0
      %v793 = vadd.f32 %v560, %v792
      %794 = vmatmul.bf16.gmra.mxu0 %v682
      %v795 = vpop.f32.mrf.mxu0
      %v796 = vadd.f32 %v563, %v795
      %v797 = vpop.f32.mrf.mxu0
      %v798 = vadd.f32 %v565, %v797
      %799 = vmatmul.bf16.gmra.mxu0 %v683
      %v800 = vpop.f32.mrf.mxu0
      %v801 = vadd.f32 %v568, %v800
      %v802 = vpop.f32.mrf.mxu0
      %v803 = vadd.f32 %v570, %v802
      %804 = vmatmul.bf16.gmra.mxu0 %v684
      %v805 = vpop.f32.mrf.mxu0
      %v806 = vadd.f32 %v573, %v805
      %v807 = vpop.f32.mrf.mxu0
      %v808 = vadd.f32 %v575, %v807
      %809 = vmatmul.bf16.gmra.mxu0 %v685
      %v810 = vpop.f32.mrf.mxu0
      %v811 = vadd.f32 %v578, %v810
      %v812 = vpop.f32.mrf.mxu0
      %v813 = vadd.f32 %v580, %v812
      %814 = vmatmul.bf16.gmra.mxu0 %v686
      %v815 = vpop.f32.mrf.mxu0
      %v816 = vadd.f32 %v583, %v815
      %v817 = vpop.f32.mrf.mxu0
      %v818 = vadd.f32 %v585, %v817
      %819 = vmatmul.bf16.gmra.mxu0 %v687
      %v820 = vpop.f32.mrf.mxu0
      %v821 = vadd.f32 %v588, %v820
      %v822 = vpop.f32.mrf.mxu0
      %v823 = vadd.f32 %v590, %v822
      %824 = vmatmul.bf16.gmra.mxu0 %v688
      %v825 = vpop.f32.mrf.mxu0
      %v826 = vadd.f32 %v593, %v825
      %v827 = vpop.f32.mrf.mxu0
      %v828 = vadd.f32 %v595, %v827
      %829 = vmatmul.bf16.gmra.mxu0 %v689
      %v830 = vpop.f32.mrf.mxu0
      %v831 = vadd.f32 %v598, %v830
      %v832 = vpop.f32.mrf.mxu0
      %v833 = vadd.f32 %v600, %v832
      %834 = vmatmul.bf16.gmra.mxu0 %v690
      %v835 = vpop.f32.mrf.mxu0
      %v836 = vadd.f32 %v603, %v835
      %v837 = vpop.f32.mrf.mxu0
      %v838 = vadd.f32 %v605, %v837
      %839 = vmatmul.bf16.gmra.mxu0 %v691
      %v840 = vpop.f32.mrf.mxu0
      %v841 = vadd.f32 %v608, %v840
      %v842 = vpop.f32.mrf.mxu0
      %v843 = vadd.f32 %v610, %v842
      %844 = vdwg.mxu0
      %s845 = scalar_lea.vmem [#allocation2], 24
      %v846 = vld [vmem:[%s845] sm:$0xf]
      %v847 = vld [vmem:[%s845 + $0x4] sm:$0xf]
      %v848 = vld [vmem:[%s845 + $0x8] sm:$0xf]
      %v849 = vld [vmem:[%s845 + $0xc] sm:$0xf]
      %v850 = vld [vmem:[%s845 + $0x10] sm:$0xf]
      %v851 = vld [vmem:[%s845 + $0x14] sm:$0xf]
      %v852 = vld [vmem:[%s845 + $0x18] sm:$0xf]
      %v853 = vld [vmem:[%s845 + $0x1c] sm:$0xf]
      %v854 = vld [vmem:[%s845 + $0x20] sm:$0xf]
      %v855 = vld [vmem:[%s845 + $0x24] sm:$0xf]
      %v856 = vld [vmem:[%s845 + $0x28] sm:$0xf]
      %v857 = vld [vmem:[%s845 + $0x2c] sm:$0xf]
      %v858 = vld [vmem:[%s845 + $0x30] sm:$0xf]
      %v859 = vld [vmem:[%s845 + $0x34] sm:$0xf]
      %v860 = vld [vmem:[%s845 + $0x38] sm:$0xf]
      %v861 = vld [vmem:[%s845 + $0x3c] sm:$0xf]
      %v862 = vld [vmem:[%s845 + $0x40] sm:$0xf]
      %v863 = vld [vmem:[%s845 + $0x44] sm:$0xf]
      %v864 = vld [vmem:[%s845 + $0x48] sm:$0xf]
      %v865 = vld [vmem:[%s845 + $0x4c] sm:$0xf]
      %v866 = vld [vmem:[%s845 + $0x50] sm:$0xf]
      %v867 = vld [vmem:[%s845 + $0x54] sm:$0xf]
      %v868 = vld [vmem:[%s845 + $0x58] sm:$0xf]
      %v869 = vld [vmem:[%s845 + $0x5c] sm:$0xf]
      %v870 = vld [vmem:[%s845 + $0x60] sm:$0xf]
      %v871 = vld [vmem:[%s845 + $0x64] sm:$0xf]
      %v872 = vld [vmem:[%s845 + $0x68] sm:$0xf]
      %v873 = vld [vmem:[%s845 + $0x6c] sm:$0xf]
      %v874 = vld [vmem:[%s845 + $0x70] sm:$0xf]
      %v875 = vld [vmem:[%s845 + $0x74] sm:$0xf]
      %v876 = vld [vmem:[%s845 + $0x78] sm:$0xf]
      %v877 = vld [vmem:[%s845 + $0x7c] sm:$0xf]
      %s878 = scalar_lea.vmem %s1, 128
      %v879 = vld [vmem:[%s878] sm:$0xf]
      %v880 = vld [vmem:[%s878 + $0x4] sm:$0xf]
      %v881 = vld [vmem:[%s878 + $0x8] sm:$0xf]
      %v882 = vld [vmem:[%s878 + $0xc] sm:$0xf]
      %v883 = vld [vmem:[%s878 + $0x10] sm:$0xf]
      %v884 = vld [vmem:[%s878 + $0x14] sm:$0xf]
      %v885 = vld [vmem:[%s878 + $0x18] sm:$0xf]
      %v886 = vld [vmem:[%s878 + $0x1c] sm:$0xf]
      %v887 = vld [vmem:[%s878 + $0x20] sm:$0xf]
      %v888 = vld [vmem:[%s878 + $0x24] sm:$0xf]
      %v889 = vld [vmem:[%s878 + $0x28] sm:$0xf]
      %v890 = vld [vmem:[%s878 + $0x2c] sm:$0xf]
      %v891 = vld [vmem:[%s878 + $0x30] sm:$0xf]
      %v892 = vld [vmem:[%s878 + $0x34] sm:$0xf]
      %v893 = vld [vmem:[%s878 + $0x38] sm:$0xf]
      %v894 = vld [vmem:[%s878 + $0x3c] sm:$0xf]
      %v927 = vunpack.c.l.b16 %v846
      %v928 = vunpack.c.l.b16 %v847
      %v929 = vunpack.c.l.b16 %v848
      %v930 = vunpack.c.l.b16 %v849
      %v931 = vunpack.c.l.b16 %v850
      %v932 = vunpack.c.l.b16 %v851
      %v933 = vunpack.c.l.b16 %v852
      %v934 = vunpack.c.l.b16 %v853
      %v935 = vunpack.c.l.b16 %v854
      %v936 = vunpack.c.l.b16 %v855
      %v937 = vunpack.c.l.b16 %v856
      %v938 = vunpack.c.l.b16 %v857
      %v939 = vunpack.c.l.b16 %v858
      %v940 = vunpack.c.l.b16 %v859
      %v941 = vunpack.c.l.b16 %v860
      %v942 = vunpack.c.l.b16 %v861
      %v943 = vunpack.c.l.b16 %v862
      %v944 = vunpack.c.l.b16 %v863
      %v945 = vunpack.c.l.b16 %v864
      %v946 = vunpack.c.l.b16 %v865
      %v947 = vunpack.c.l.b16 %v866
      %v948 = vunpack.c.l.b16 %v867
      %v949 = vunpack.c.l.b16 %v868
      %v950 = vunpack.c.l.b16 %v869
      %v951 = vunpack.c.l.b16 %v870
      %v952 = vunpack.c.l.b16 %v871
      %v953 = vunpack.c.l.b16 %v872
      %v954 = vunpack.c.l.b16 %v873
      %v955 = vunpack.c.l.b16 %v874
      %v956 = vunpack.c.l.b16 %v875
      %v957 = vunpack.c.l.b16 %v876
      %v958 = vunpack.c.l.b16 %v877
      %v959 = vpack.c.b16 %v928, %v927
      %v960 = vpack.c.b16 %v930, %v929
      %v961 = vpack.c.b16 %v932, %v931
      %v962 = vpack.c.b16 %v934, %v933
      %v963 = vpack.c.b16 %v936, %v935
      %v964 = vpack.c.b16 %v938, %v937
      %v965 = vpack.c.b16 %v940, %v939
      %v966 = vpack.c.b16 %v942, %v941
      %v967 = vpack.c.b16 %v944, %v943
      %v968 = vpack.c.b16 %v946, %v945
      %v969 = vpack.c.b16 %v948, %v947
      %v970 = vpack.c.b16 %v950, %v949
      %v971 = vpack.c.b16 %v952, %v951
      %v972 = vpack.c.b16 %v954, %v953
      %v973 = vpack.c.b16 %v956, %v955
      %v974 = vpack.c.b16 %v958, %v957
      %v1007 = vunpack.c.l.b16 %v879
      %v1008 = vunpack.c.l.b16 %v880
      %v1009 = vunpack.c.l.b16 %v881
      %v1010 = vunpack.c.l.b16 %v882
      %v1011 = vunpack.c.l.b16 %v883
      %v1012 = vunpack.c.l.b16 %v884
      %v1013 = vunpack.c.l.b16 %v885
      %v1014 = vunpack.c.l.b16 %v886
      %v1015 = vunpack.c.l.b16 %v887
      %v1016 = vunpack.c.l.b16 %v888
      %v1017 = vunpack.c.l.b16 %v889
      %v1018 = vunpack.c.l.b16 %v890
      %v1019 = vunpack.c.l.b16 %v891
      %v1020 = vunpack.c.l.b16 %v892
      %v1021 = vunpack.c.l.b16 %v893
      %v1022 = vunpack.c.l.b16 %v894
      %v1023 = vpack.c.b16 %v1008, %v1007
      %v1024 = vpack.c.b16 %v1010, %v1009
      %v1025 = vpack.c.b16 %v1012, %v1011
      %v1026 = vpack.c.b16 %v1014, %v1013
      %v1027 = vpack.c.b16 %v1016, %v1015
      %v1028 = vpack.c.b16 %v1018, %v1017
      %v1029 = vpack.c.b16 %v1020, %v1019
      %v1030 = vpack.c.b16 %v1022, %v1021
      %1039 = vmatpush.bf16.msra.mxu0 %v1030
      %1040 = vmatpush.bf16.msra.mxu0 %v1029
      %1041 = vmatpush.bf16.msra.mxu0 %v1028
      %1042 = vmatpush.bf16.msra.mxu0 %v1027
      %1043 = vmatpush.bf16.msra.mxu0 %v1026
      %1044 = vmatpush.bf16.msra.mxu0 %v1025
      %1045 = vmatpush.bf16.msra.mxu0 %v1024
      %1046 = vmatpush.bf16.msra.mxu0 %v1023
      %1047 = vmatmul.bf16.gmra.mxu0 %v959
      %v1048 = vpop.f32.mrf.mxu0
      %v1049 = vadd.f32 0.0, %v1048
      %v1050 = vpop.f32.mrf.mxu0
      %v1051 = vadd.f32 0.0, %v1050
      %1052 = vmatmul.bf16.gmra.mxu0 %v960
      %v1053 = vpop.f32.mrf.mxu0
      %v1054 = vadd.f32 0.0, %v1053
      %v1055 = vpop.f32.mrf.mxu0
      %v1056 = vadd.f32 0.0, %v1055
      %1057 = vmatmul.bf16.gmra.mxu0 %v961
      %v1058 = vpop.f32.mrf.mxu0
      %v1059 = vadd.f32 0.0, %v1058
      %v1060 = vpop.f32.mrf.mxu0
      %v1061 = vadd.f32 0.0, %v1060
      %1062 = vmatmul.bf16.gmra.mxu0 %v962
      %v1063 = vpop.f32.mrf.mxu0
      %v1064 = vadd.f32 0.0, %v1063
      %v1065 = vpop.f32.mrf.mxu0
      %v1066 = vadd.f32 0.0, %v1065
      %1067 = vmatmul.bf16.gmra.mxu0 %v963
      %v1068 = vpop.f32.mrf.mxu0
      %v1069 = vadd.f32 0.0, %v1068
      %v1070 = vpop.f32.mrf.mxu0
      %v1071 = vadd.f32 0.0, %v1070
      %1072 = vmatmul.bf16.gmra.mxu0 %v964
      %v1073 = vpop.f32.mrf.mxu0
      %v1074 = vadd.f32 0.0, %v1073
      %v1075 = vpop.f32.mrf.mxu0
      %v1076 = vadd.f32 0.0, %v1075
      %1077 = vmatmul.bf16.gmra.mxu0 %v965
      %v1078 = vpop.f32.mrf.mxu0
      %v1079 = vadd.f32 0.0, %v1078
      %v1080 = vpop.f32.mrf.mxu0
      %v1081 = vadd.f32 0.0, %v1080
      %1082 = vmatmul.bf16.gmra.mxu0 %v966
      %v1083 = vpop.f32.mrf.mxu0
      %v1084 = vadd.f32 0.0, %v1083
      %v1085 = vpop.f32.mrf.mxu0
      %v1086 = vadd.f32 0.0, %v1085
      %1087 = vmatmul.bf16.gmra.mxu0 %v967
      %v1088 = vpop.f32.mrf.mxu0
      %v1089 = vadd.f32 0.0, %v1088
      %v1090 = vpop.f32.mrf.mxu0
      %v1091 = vadd.f32 0.0, %v1090
      %1092 = vmatmul.bf16.gmra.mxu0 %v968
      %v1093 = vpop.f32.mrf.mxu0
      %v1094 = vadd.f32 0.0, %v1093
      %v1095 = vpop.f32.mrf.mxu0
      %v1096 = vadd.f32 0.0, %v1095
      %1097 = vmatmul.bf16.gmra.mxu0 %v969
      %v1098 = vpop.f32.mrf.mxu0
      %v1099 = vadd.f32 0.0, %v1098
      %v1100 = vpop.f32.mrf.mxu0
      %v1101 = vadd.f32 0.0, %v1100
      %1102 = vmatmul.bf16.gmra.mxu0 %v970
      %v1103 = vpop.f32.mrf.mxu0
      %v1104 = vadd.f32 0.0, %v1103
      %v1105 = vpop.f32.mrf.mxu0
      %v1106 = vadd.f32 0.0, %v1105
      %1107 = vmatmul.bf16.gmra.mxu0 %v971
      %v1108 = vpop.f32.mrf.mxu0
      %v1109 = vadd.f32 0.0, %v1108
      %v1110 = vpop.f32.mrf.mxu0
      %v1111 = vadd.f32 0.0, %v1110
      %1112 = vmatmul.bf16.gmra.mxu0 %v972
      %v1113 = vpop.f32.mrf.mxu0
      %v1114 = vadd.f32 0.0, %v1113
      %v1115 = vpop.f32.mrf.mxu0
      %v1116 = vadd.f32 0.0, %v1115
      %1117 = vmatmul.bf16.gmra.mxu0 %v973
      %v1118 = vpop.f32.mrf.mxu0
      %v1119 = vadd.f32 0.0, %v1118
      %v1120 = vpop.f32.mrf.mxu0
      %v1121 = vadd.f32 0.0, %v1120
      %1122 = vmatmul.bf16.gmra.mxu0 %v974
      %v1123 = vpop.f32.mrf.mxu0
      %v1124 = vadd.f32 0.0, %v1123
      %v1125 = vpop.f32.mrf.mxu0
      %v1126 = vadd.f32 0.0, %v1125
      %1127 = vdwg.mxu0
      %v1128 = vadd.f32 %v766, %v1049
      %v1129 = vadd.f32 %v768, %v1051
      %v1130 = vadd.f32 %v771, %v1054
      %v1131 = vadd.f32 %v773, %v1056
      %v1132 = vadd.f32 %v776, %v1059
      %v1133 = vadd.f32 %v778, %v1061
      %v1134 = vadd.f32 %v781, %v1064
      %v1135 = vadd.f32 %v783, %v1066
      %v1136 = vadd.f32 %v786, %v1069
      %v1137 = vadd.f32 %v788, %v1071
      %v1138 = vadd.f32 %v791, %v1074
      %v1139 = vadd.f32 %v793, %v1076
      %v1140 = vadd.f32 %v796, %v1079
      %v1141 = vadd.f32 %v798, %v1081
      %v1142 = vadd.f32 %v801, %v1084
      %v1143 = vadd.f32 %v803, %v1086
      %v1144 = vadd.f32 %v806, %v1089
      %v1145 = vadd.f32 %v808, %v1091
      %v1146 = vadd.f32 %v811, %v1094
      %v1147 = vadd.f32 %v813, %v1096
      %v1148 = vadd.f32 %v816, %v1099
      %v1149 = vadd.f32 %v818, %v1101
      %v1150 = vadd.f32 %v821, %v1104
      %v1151 = vadd.f32 %v823, %v1106
      %v1152 = vadd.f32 %v826, %v1109
      %v1153 = vadd.f32 %v828, %v1111
      %v1154 = vadd.f32 %v831, %v1114
      %v1155 = vadd.f32 %v833, %v1116
      %v1156 = vadd.f32 %v836, %v1119
      %v1157 = vadd.f32 %v838, %v1121
      %v1158 = vadd.f32 %v841, %v1124
      %v1159 = vadd.f32 %v843, %v1126
      %v1160 = vld [vmem:[%s2] sm:$0x1]
      %v1161 = vperm.slane %v1160, 0
      %v1162 = vadd.f32 %v1128, %v1161
      %v1163 = vadd.f32 %v1129, %v1161
      %v1164 = vadd.f32 %v1130, %v1161
      %v1165 = vadd.f32 %v1131, %v1161
      %v1166 = vadd.f32 %v1132, %v1161
      %v1167 = vadd.f32 %v1133, %v1161
      %v1168 = vadd.f32 %v1134, %v1161
      %v1169 = vadd.f32 %v1135, %v1161
      %v1170 = vadd.f32 %v1136, %v1161
      %v1171 = vadd.f32 %v1137, %v1161
      %v1172 = vadd.f32 %v1138, %v1161
      %v1173 = vadd.f32 %v1139, %v1161
      %v1174 = vadd.f32 %v1140, %v1161
      %v1175 = vadd.f32 %v1141, %v1161
      %v1176 = vadd.f32 %v1142, %v1161
      %v1177 = vadd.f32 %v1143, %v1161
      %v1178 = vadd.f32 %v1144, %v1161
      %v1179 = vadd.f32 %v1145, %v1161
      %v1180 = vadd.f32 %v1146, %v1161
      %v1181 = vadd.f32 %v1147, %v1161
      %v1182 = vadd.f32 %v1148, %v1161
      %v1183 = vadd.f32 %v1149, %v1161
      %v1184 = vadd.f32 %v1150, %v1161
      %v1185 = vadd.f32 %v1151, %v1161
      %v1186 = vadd.f32 %v1152, %v1161
      %v1187 = vadd.f32 %v1153, %v1161
      %v1188 = vadd.f32 %v1154, %v1161
      %v1189 = vadd.f32 %v1155, %v1161
      %v1190 = vadd.f32 %v1156, %v1161
      %v1191 = vadd.f32 %v1157, %v1161
      %v1192 = vadd.f32 %v1158, %v1161
      %v1193 = vadd.f32 %v1159, %v1161
      %v1194 = vmax.f32 %v1162, 0.0
      %v1195 = vmax.f32 %v1163, 0.0
      %v1196 = vmax.f32 %v1164, 0.0
      %v1197 = vmax.f32 %v1165, 0.0
      %v1198 = vmax.f32 %v1166, 0.0
      %v1199 = vmax.f32 %v1167, 0.0
      %v1200 = vmax.f32 %v1168, 0.0
      %v1201 = vmax.f32 %v1169, 0.0
      %v1202 = vmax.f32 %v1170, 0.0
      %v1203 = vmax.f32 %v1171, 0.0
      %v1204 = vmax.f32 %v1172, 0.0
      %v1205 = vmax.f32 %v1173, 0.0
      %v1206 = vmax.f32 %v1174, 0.0
      %v1207 = vmax.f32 %v1175, 0.0
      %v1208 = vmax.f32 %v1176, 0.0
      %v1209 = vmax.f32 %v1177, 0.0
      %v1210 = vmax.f32 %v1178, 0.0
      %v1211 = vmax.f32 %v1179, 0.0
      %v1212 = vmax.f32 %v1180, 0.0
      %v1213 = vmax.f32 %v1181, 0.0
      %v1214 = vmax.f32 %v1182, 0.0
      %v1215 = vmax.f32 %v1183, 0.0
      %v1216 = vmax.f32 %v1184, 0.0
      %v1217 = vmax.f32 %v1185, 0.0
      %v1218 = vmax.f32 %v1186, 0.0
      %v1219 = vmax.f32 %v1187, 0.0
      %v1220 = vmax.f32 %v1188, 0.0
      %v1221 = vmax.f32 %v1189, 0.0
      %v1222 = vmax.f32 %v1190, 0.0
      %v1223 = vmax.f32 %v1191, 0.0
      %v1224 = vmax.f32 %v1192, 0.0
      %v1225 = vmax.f32 %v1193, 0.0
      %v1226 = vpack.c.bf16 %v1194, %v1194
      %v1227 = vpack.c.bf16 %v1195, %v1195
      %v1228 = vpack.c.bf16 %v1196, %v1196
      %v1229 = vpack.c.bf16 %v1197, %v1197
      %v1230 = vpack.c.bf16 %v1198, %v1198
      %v1231 = vpack.c.bf16 %v1199, %v1199
      %v1232 = vpack.c.bf16 %v1200, %v1200
      %v1233 = vpack.c.bf16 %v1201, %v1201
      %v1234 = vpack.c.bf16 %v1202, %v1202
      %v1235 = vpack.c.bf16 %v1203, %v1203
      %v1236 = vpack.c.bf16 %v1204, %v1204
      %v1237 = vpack.c.bf16 %v1205, %v1205
      %v1238 = vpack.c.bf16 %v1206, %v1206
      %v1239 = vpack.c.bf16 %v1207, %v1207
      %v1240 = vpack.c.bf16 %v1208, %v1208
      %v1241 = vpack.c.bf16 %v1209, %v1209
      %v1242 = vpack.c.bf16 %v1210, %v1210
      %v1243 = vpack.c.bf16 %v1211, %v1211
      %v1244 = vpack.c.bf16 %v1212, %v1212
      %v1245 = vpack.c.bf16 %v1213, %v1213
      %v1246 = vpack.c.bf16 %v1214, %v1214
      %v1247 = vpack.c.bf16 %v1215, %v1215
      %v1248 = vpack.c.bf16 %v1216, %v1216
      %v1249 = vpack.c.bf16 %v1217, %v1217
      %v1250 = vpack.c.bf16 %v1218, %v1218
      %v1251 = vpack.c.bf16 %v1219, %v1219
      %v1252 = vpack.c.bf16 %v1220, %v1220
      %v1253 = vpack.c.bf16 %v1221, %v1221
      %v1254 = vpack.c.bf16 %v1222, %v1222
      %v1255 = vpack.c.bf16 %v1223, %v1223
      %v1256 = vpack.c.bf16 %v1224, %v1224
      %v1257 = vpack.c.bf16 %v1225, %v1225
      %s1258 = scalar_lea.vmem %s1, 256
      %v1259 = vld [vmem:[%s1258] sm:$0xf]
      %v1260 = vld [vmem:[%s1258 + $0x4] sm:$0xf]
      %v1261 = vld [vmem:[%s1258 + $0x8] sm:$0xf]
      %v1262 = vld [vmem:[%s1258 + $0xc] sm:$0xf]
      %v1263 = vld [vmem:[%s1258 + $0x10] sm:$0xf]
      %v1264 = vld [vmem:[%s1258 + $0x14] sm:$0xf]
      %v1265 = vld [vmem:[%s1258 + $0x18] sm:$0xf]
      %v1266 = vld [vmem:[%s1258 + $0x1c] sm:$0xf]
      %v1267 = vld [vmem:[%s1258 + $0x20] sm:$0xf]
      %v1268 = vld [vmem:[%s1258 + $0x24] sm:$0xf]
      %v1269 = vld [vmem:[%s1258 + $0x28] sm:$0xf]
      %v1270 = vld [vmem:[%s1258 + $0x2c] sm:$0xf]
      %v1271 = vld [vmem:[%s1258 + $0x30] sm:$0xf]
      %v1272 = vld [vmem:[%s1258 + $0x34] sm:$0xf]
      %v1273 = vld [vmem:[%s1258 + $0x38] sm:$0xf]
      %v1274 = vld [vmem:[%s1258 + $0x3c] sm:$0xf]
      %vm1275 = vcmp.ge.s32.totalorder %v182, 1
      %vm1276 = vcmp.ge.s32.totalorder %v183, 1
      %v1277 = vrot.slane %v1194, 7
      %v1278 = vrot.slane %v1196, 7
      %v1279 = vrot.slane %v1198, 7
      %v1280 = vrot.slane %v1200, 7
      %v1281 = vrot.slane %v1202, 7
      %v1282 = vrot.slane %v1204, 7
      %v1283 = vrot.slane %v1206, 7
      %v1284 = vrot.slane %v1208, 7
      %v1285 = vrot.slane %v1210, 7
      %v1286 = vrot.slane %v1212, 7
      %v1287 = vrot.slane %v1214, 7
      %v1288 = vrot.slane %v1216, 7
      %v1289 = vrot.slane %v1218, 7
      %v1290 = vrot.slane %v1220, 7
      %v1291 = vrot.slane %v1222, 7
      %v1292 = vrot.slane %v1224, 7
      %v1293 = vrot.slane %v1195, 7
      %v1294 = vrot.slane %v1197, 7
      %v1295 = vrot.slane %v1199, 7
      %v1296 = vrot.slane %v1201, 7
      %v1297 = vrot.slane %v1203, 7
      %v1298 = vrot.slane %v1205, 7
      %v1299 = vrot.slane %v1207, 7
      %v1300 = vrot.slane %v1209, 7
      %v1301 = vrot.slane %v1211, 7
      %v1302 = vrot.slane %v1213, 7
      %v1303 = vrot.slane %v1215, 7
      %v1304 = vrot.slane %v1217, 7
      %v1305 = vrot.slane %v1219, 7
      %v1306 = vrot.slane %v1221, 7
      %v1307 = vrot.slane %v1223, 7
      %v1308 = vrot.slane %v1225, 7
      %vm1309 = vcmp.lt.s32.totalorder %v182, 1
      %v1310 = vsel %vm1309, %v1277, %v1293
      %v1311 = vsel %vm1309, %v1278, %v1294
      %v1312 = vsel %vm1309, %v1279, %v1295
      %v1313 = vsel %vm1309, %v1280, %v1296
      %v1314 = vsel %vm1309, %v1281, %v1297
      %v1315 = vsel %vm1309, %v1282, %v1298
      %v1316 = vsel %vm1309, %v1283, %v1299
      %v1317 = vsel %vm1309, %v1284, %v1300
      %v1318 = vsel %vm1309, %v1285, %v1301
      %v1319 = vsel %vm1309, %v1286, %v1302
      %v1320 = vsel %vm1309, %v1287, %v1303
      %v1321 = vsel %vm1309, %v1288, %v1304
      %v1322 = vsel %vm1309, %v1289, %v1305
      %v1323 = vsel %vm1309, %v1290, %v1306
      %v1324 = vsel %vm1309, %v1291, %v1307
      %v1325 = vsel %vm1309, %v1292, %v1308
      %v1326 = vsel %vm1309, %v1293, %v1277
      %v1327 = vsel %vm1309, %v1294, %v1278
      %v1328 = vsel %vm1309, %v1295, %v1279
      %v1329 = vsel %vm1309, %v1296, %v1280
      %v1330 = vsel %vm1309, %v1297, %v1281
      %v1331 = vsel %vm1309, %v1298, %v1282
      %v1332 = vsel %vm1309, %v1299, %v1283
      %v1333 = vsel %vm1309, %v1300, %v1284
      %v1334 = vsel %vm1309, %v1301, %v1285
      %v1335 = vsel %vm1309, %v1302, %v1286
      %v1336 = vsel %vm1309, %v1303, %v1287
      %v1337 = vsel %vm1309, %v1304, %v1288
      %v1338 = vsel %vm1309, %v1305, %v1289
      %v1339 = vsel %vm1309, %v1306, %v1290
      %v1340 = vsel %vm1309, %v1307, %v1291
      %v1341 = vsel %vm1309, %v1308, %v1292
      %v1342 = vsel %vm1275, 1, 0
      %v1343 = vsel %vm1276, 1, 0
      %vm1344 = vcmp.eq.s32.totalorder %v1342, 1
      %vm1345 = vcmp.eq.s32.totalorder %v1343, 1
      %v1346 = vsel %vm1344, %v1326, 0.0
      %v1347 = vsel %vm1345, %v1310, 0.0
      %v1348 = vsel %vm1344, %v1327, 0.0
      %v1349 = vsel %vm1345, %v1311, 0.0
      %v1350 = vsel %vm1344, %v1328, 0.0
      %v1351 = vsel %vm1345, %v1312, 0.0
      %v1352 = vsel %vm1344, %v1329, 0.0
      %v1353 = vsel %vm1345, %v1313, 0.0
      %v1354 = vsel %vm1344, %v1330, 0.0
      %v1355 = vsel %vm1345, %v1314, 0.0
      %v1356 = vsel %vm1344, %v1331, 0.0
      %v1357 = vsel %vm1345, %v1315, 0.0
      %v1358 = vsel %vm1344, %v1332, 0.0
      %v1359 = vsel %vm1345, %v1316, 0.0
      %v1360 = vsel %vm1344, %v1333, 0.0
      %v1361 = vsel %vm1345, %v1317, 0.0
      %v1362 = vsel %vm1344, %v1334, 0.0
      %v1363 = vsel %vm1345, %v1318, 0.0
      %v1364 = vsel %vm1344, %v1335, 0.0
      %v1365 = vsel %vm1345, %v1319, 0.0
      %v1366 = vsel %vm1344, %v1336, 0.0
      %v1367 = vsel %vm1345, %v1320, 0.0
      %v1368 = vsel %vm1344, %v1337, 0.0
      %v1369 = vsel %vm1345, %v1321, 0.0
      %v1370 = vsel %vm1344, %v1338, 0.0
      %v1371 = vsel %vm1345, %v1322, 0.0
      %v1372 = vsel %vm1344, %v1339, 0.0
      %v1373 = vsel %vm1345, %v1323, 0.0
      %v1374 = vsel %vm1344, %v1340, 0.0
      %v1375 = vsel %vm1345, %v1324, 0.0
      %v1376 = vsel %vm1344, %v1341, 0.0
      %v1377 = vsel %vm1345, %v1325, 0.0
      %v1378 = vpack.c.bf16 %v1346, %v1346
      %v1379 = vpack.c.bf16 %v1347, %v1347
      %v1380 = vpack.c.bf16 %v1348, %v1348
      %v1381 = vpack.c.bf16 %v1349, %v1349
      %v1382 = vpack.c.bf16 %v1350, %v1350
      %v1383 = vpack.c.bf16 %v1351, %v1351
      %v1384 = vpack.c.bf16 %v1352, %v1352
      %v1385 = vpack.c.bf16 %v1353, %v1353
      %v1386 = vpack.c.bf16 %v1354, %v1354
      %v1387 = vpack.c.bf16 %v1355, %v1355
      %v1388 = vpack.c.bf16 %v1356, %v1356
      %v1389 = vpack.c.bf16 %v1357, %v1357
      %v1390 = vpack.c.bf16 %v1358, %v1358
      %v1391 = vpack.c.bf16 %v1359, %v1359
      %v1392 = vpack.c.bf16 %v1360, %v1360
      %v1393 = vpack.c.bf16 %v1361, %v1361
      %v1394 = vpack.c.bf16 %v1362, %v1362
      %v1395 = vpack.c.bf16 %v1363, %v1363
      %v1396 = vpack.c.bf16 %v1364, %v1364
      %v1397 = vpack.c.bf16 %v1365, %v1365
      %v1398 = vpack.c.bf16 %v1366, %v1366
      %v1399 = vpack.c.bf16 %v1367, %v1367
      %v1400 = vpack.c.bf16 %v1368, %v1368
      %v1401 = vpack.c.bf16 %v1369, %v1369
      %v1402 = vpack.c.bf16 %v1370, %v1370
      %v1403 = vpack.c.bf16 %v1371, %v1371
      %v1404 = vpack.c.bf16 %v1372, %v1372
      %v1405 = vpack.c.bf16 %v1373, %v1373
      %v1406 = vpack.c.bf16 %v1374, %v1374
      %v1407 = vpack.c.bf16 %v1375, %v1375
      %v1408 = vpack.c.bf16 %v1376, %v1376
      %v1409 = vpack.c.bf16 %v1377, %v1377
      %s1410 = scalar_lea.vmem %s1, 192
      %v1411 = vld [vmem:[%s1410] sm:$0xf]
      %v1412 = vld [vmem:[%s1410 + $0x4] sm:$0xf]
      %v1413 = vld [vmem:[%s1410 + $0x8] sm:$0xf]
      %v1414 = vld [vmem:[%s1410 + $0xc] sm:$0xf]
      %v1415 = vld [vmem:[%s1410 + $0x10] sm:$0xf]
      %v1416 = vld [vmem:[%s1410 + $0x14] sm:$0xf]
      %v1417 = vld [vmem:[%s1410 + $0x18] sm:$0xf]
      %v1418 = vld [vmem:[%s1410 + $0x1c] sm:$0xf]
      %v1419 = vld [vmem:[%s1410 + $0x20] sm:$0xf]
      %v1420 = vld [vmem:[%s1410 + $0x24] sm:$0xf]
      %v1421 = vld [vmem:[%s1410 + $0x28] sm:$0xf]
      %v1422 = vld [vmem:[%s1410 + $0x2c] sm:$0xf]
      %v1423 = vld [vmem:[%s1410 + $0x30] sm:$0xf]
      %v1424 = vld [vmem:[%s1410 + $0x34] sm:$0xf]
      %v1425 = vld [vmem:[%s1410 + $0x38] sm:$0xf]
      %v1426 = vld [vmem:[%s1410 + $0x3c] sm:$0xf]
      %v1459 = vunpack.c.l.b16 %v1378
      %v1460 = vunpack.c.l.b16 %v1379
      %v1461 = vunpack.c.l.b16 %v1380
      %v1462 = vunpack.c.l.b16 %v1381
      %v1463 = vunpack.c.l.b16 %v1382
      %v1464 = vunpack.c.l.b16 %v1383
      %v1465 = vunpack.c.l.b16 %v1384
      %v1466 = vunpack.c.l.b16 %v1385
      %v1467 = vunpack.c.l.b16 %v1386
      %v1468 = vunpack.c.l.b16 %v1387
      %v1469 = vunpack.c.l.b16 %v1388
      %v1470 = vunpack.c.l.b16 %v1389
      %v1471 = vunpack.c.l.b16 %v1390
      %v1472 = vunpack.c.l.b16 %v1391
      %v1473 = vunpack.c.l.b16 %v1392
      %v1474 = vunpack.c.l.b16 %v1393
      %v1475 = vunpack.c.l.b16 %v1394
      %v1476 = vunpack.c.l.b16 %v1395
      %v1477 = vunpack.c.l.b16 %v1396
      %v1478 = vunpack.c.l.b16 %v1397
      %v1479 = vunpack.c.l.b16 %v1398
      %v1480 = vunpack.c.l.b16 %v1399
      %v1481 = vunpack.c.l.b16 %v1400
      %v1482 = vunpack.c.l.b16 %v1401
      %v1483 = vunpack.c.l.b16 %v1402
      %v1484 = vunpack.c.l.b16 %v1403
      %v1485 = vunpack.c.l.b16 %v1404
      %v1486 = vunpack.c.l.b16 %v1405
      %v1487 = vunpack.c.l.b16 %v1406
      %v1488 = vunpack.c.l.b16 %v1407
      %v1489 = vunpack.c.l.b16 %v1408
      %v1490 = vunpack.c.l.b16 %v1409
      %v1491 = vpack.c.b16 %v1460, %v1459
      %v1492 = vpack.c.b16 %v1462, %v1461
      %v1493 = vpack.c.b16 %v1464, %v1463
      %v1494 = vpack.c.b16 %v1466, %v1465
      %v1495 = vpack.c.b16 %v1468, %v1467
      %v1496 = vpack.c.b16 %v1470, %v1469
      %v1497 = vpack.c.b16 %v1472, %v1471
      %v1498 = vpack.c.b16 %v1474, %v1473
      %v1499 = vpack.c.b16 %v1476, %v1475
      %v1500 = vpack.c.b16 %v1478, %v1477
      %v1501 = vpack.c.b16 %v1480, %v1479
      %v1502 = vpack.c.b16 %v1482, %v1481
      %v1503 = vpack.c.b16 %v1484, %v1483
      %v1504 = vpack.c.b16 %v1486, %v1485
      %v1505 = vpack.c.b16 %v1488, %v1487
      %v1506 = vpack.c.b16 %v1490, %v1489
      %v1539 = vunpack.c.l.b16 %v1411
      %v1540 = vunpack.c.l.b16 %v1412
      %v1541 = vunpack.c.l.b16 %v1413
      %v1542 = vunpack.c.l.b16 %v1414
      %v1543 = vunpack.c.l.b16 %v1415
      %v1544 = vunpack.c.l.b16 %v1416
      %v1545 = vunpack.c.l.b16 %v1417
      %v1546 = vunpack.c.l.b16 %v1418
      %v1547 = vunpack.c.l.b16 %v1419
      %v1548 = vunpack.c.l.b16 %v1420
      %v1549 = vunpack.c.l.b16 %v1421
      %v1550 = vunpack.c.l.b16 %v1422
      %v1551 = vunpack.c.l.b16 %v1423
      %v1552 = vunpack.c.l.b16 %v1424
      %v1553 = vunpack.c.l.b16 %v1425
      %v1554 = vunpack.c.l.b16 %v1426
      %v1555 = vpack.c.b16 %v1540, %v1539
      %v1556 = vpack.c.b16 %v1542, %v1541
      %v1557 = vpack.c.b16 %v1544, %v1543
      %v1558 = vpack.c.b16 %v1546, %v1545
      %v1559 = vpack.c.b16 %v1548, %v1547
      %v1560 = vpack.c.b16 %v1550, %v1549
      %v1561 = vpack.c.b16 %v1552, %v1551
      %v1562 = vpack.c.b16 %v1554, %v1553
      %1571 = vmatpush.bf16.msra.mxu0 %v1562
      %1572 = vmatpush.bf16.msra.mxu0 %v1561
      %1573 = vmatpush.bf16.msra.mxu0 %v1560
      %1574 = vmatpush.bf16.msra.mxu0 %v1559
      %1575 = vmatpush.bf16.msra.mxu0 %v1558
      %1576 = vmatpush.bf16.msra.mxu0 %v1557
      %1577 = vmatpush.bf16.msra.mxu0 %v1556
      %1578 = vmatpush.bf16.msra.mxu0 %v1555
      %1579 = vmatmul.bf16.gmra.mxu0 %v1491
      %v1580 = vpop.f32.mrf.mxu0
      %v1581 = vadd.f32 0.0, %v1580
      %v1582 = vpop.f32.mrf.mxu0
      %v1583 = vadd.f32 0.0, %v1582
      %1584 = vmatmul.bf16.gmra.mxu0 %v1492
      %v1585 = vpop.f32.mrf.mxu0
      %v1586 = vadd.f32 0.0, %v1585
      %v1587 = vpop.f32.mrf.mxu0
      %v1588 = vadd.f32 0.0, %v1587
      %1589 = vmatmul.bf16.gmra.mxu0 %v1493
      %v1590 = vpop.f32.mrf.mxu0
      %v1591 = vadd.f32 0.0, %v1590
      %v1592 = vpop.f32.mrf.mxu0
      %v1593 = vadd.f32 0.0, %v1592
      %1594 = vmatmul.bf16.gmra.mxu0 %v1494
      %v1595 = vpop.f32.mrf.mxu0
      %v1596 = vadd.f32 0.0, %v1595
      %v1597 = vpop.f32.mrf.mxu0
      %v1598 = vadd.f32 0.0, %v1597
      %1599 = vmatmul.bf16.gmra.mxu0 %v1495
      %v1600 = vpop.f32.mrf.mxu0
      %v1601 = vadd.f32 0.0, %v1600
      %v1602 = vpop.f32.mrf.mxu0
      %v1603 = vadd.f32 0.0, %v1602
      %1604 = vmatmul.bf16.gmra.mxu0 %v1496
      %v1605 = vpop.f32.mrf.mxu0
      %v1606 = vadd.f32 0.0, %v1605
      %v1607 = vpop.f32.mrf.mxu0
      %v1608 = vadd.f32 0.0, %v1607
      %1609 = vmatmul.bf16.gmra.mxu0 %v1497
      %v1610 = vpop.f32.mrf.mxu0
      %v1611 = vadd.f32 0.0, %v1610
      %v1612 = vpop.f32.mrf.mxu0
      %v1613 = vadd.f32 0.0, %v1612
      %1614 = vmatmul.bf16.gmra.mxu0 %v1498
      %v1615 = vpop.f32.mrf.mxu0
      %v1616 = vadd.f32 0.0, %v1615
      %v1617 = vpop.f32.mrf.mxu0
      %v1618 = vadd.f32 0.0, %v1617
      %1619 = vmatmul.bf16.gmra.mxu0 %v1499
      %v1620 = vpop.f32.mrf.mxu0
      %v1621 = vadd.f32 0.0, %v1620
      %v1622 = vpop.f32.mrf.mxu0
      %v1623 = vadd.f32 0.0, %v1622
      %1624 = vmatmul.bf16.gmra.mxu0 %v1500
      %v1625 = vpop.f32.mrf.mxu0
      %v1626 = vadd.f32 0.0, %v1625
      %v1627 = vpop.f32.mrf.mxu0
      %v1628 = vadd.f32 0.0, %v1627
      %1629 = vmatmul.bf16.gmra.mxu0 %v1501
      %v1630 = vpop.f32.mrf.mxu0
      %v1631 = vadd.f32 0.0, %v1630
      %v1632 = vpop.f32.mrf.mxu0
      %v1633 = vadd.f32 0.0, %v1632
      %1634 = vmatmul.bf16.gmra.mxu0 %v1502
      %v1635 = vpop.f32.mrf.mxu0
      %v1636 = vadd.f32 0.0, %v1635
      %v1637 = vpop.f32.mrf.mxu0
      %v1638 = vadd.f32 0.0, %v1637
      %1639 = vmatmul.bf16.gmra.mxu0 %v1503
      %v1640 = vpop.f32.mrf.mxu0
      %v1641 = vadd.f32 0.0, %v1640
      %v1642 = vpop.f32.mrf.mxu0
      %v1643 = vadd.f32 0.0, %v1642
      %1644 = vmatmul.bf16.gmra.mxu0 %v1504
      %v1645 = vpop.f32.mrf.mxu0
      %v1646 = vadd.f32 0.0, %v1645
      %v1647 = vpop.f32.mrf.mxu0
      %v1648 = vadd.f32 0.0, %v1647
      %1649 = vmatmul.bf16.gmra.mxu0 %v1505
      %v1650 = vpop.f32.mrf.mxu0
      %v1651 = vadd.f32 0.0, %v1650
      %v1652 = vpop.f32.mrf.mxu0
      %v1653 = vadd.f32 0.0, %v1652
      %1654 = vmatmul.bf16.gmra.mxu0 %v1506
      %v1655 = vpop.f32.mrf.mxu0
      %v1656 = vadd.f32 0.0, %v1655
      %v1657 = vpop.f32.mrf.mxu0
      %v1658 = vadd.f32 0.0, %v1657
      %1659 = vdwg.mxu0
      %v1692 = vunpack.c.l.b16 %v1226
      %v1693 = vunpack.c.l.b16 %v1227
      %v1694 = vunpack.c.l.b16 %v1228
      %v1695 = vunpack.c.l.b16 %v1229
      %v1696 = vunpack.c.l.b16 %v1230
      %v1697 = vunpack.c.l.b16 %v1231
      %v1698 = vunpack.c.l.b16 %v1232
      %v1699 = vunpack.c.l.b16 %v1233
      %v1700 = vunpack.c.l.b16 %v1234
      %v1701 = vunpack.c.l.b16 %v1235
      %v1702 = vunpack.c.l.b16 %v1236
      %v1703 = vunpack.c.l.b16 %v1237
      %v1704 = vunpack.c.l.b16 %v1238
      %v1705 = vunpack.c.l.b16 %v1239
      %v1706 = vunpack.c.l.b16 %v1240
      %v1707 = vunpack.c.l.b16 %v1241
      %v1708 = vunpack.c.l.b16 %v1242
      %v1709 = vunpack.c.l.b16 %v1243
      %v1710 = vunpack.c.l.b16 %v1244
      %v1711 = vunpack.c.l.b16 %v1245
      %v1712 = vunpack.c.l.b16 %v1246
      %v1713 = vunpack.c.l.b16 %v1247
      %v1714 = vunpack.c.l.b16 %v1248
      %v1715 = vunpack.c.l.b16 %v1249
      %v1716 = vunpack.c.l.b16 %v1250
      %v1717 = vunpack.c.l.b16 %v1251
      %v1718 = vunpack.c.l.b16 %v1252
      %v1719 = vunpack.c.l.b16 %v1253
      %v1720 = vunpack.c.l.b16 %v1254
      %v1721 = vunpack.c.l.b16 %v1255
      %v1722 = vunpack.c.l.b16 %v1256
      %v1723 = vunpack.c.l.b16 %v1257
      %v1724 = vpack.c.b16 %v1693, %v1692
      %v1725 = vpack.c.b16 %v1695, %v1694
      %v1726 = vpack.c.b16 %v1697, %v1696
      %v1727 = vpack.c.b16 %v1699, %v1698
      %v1728 = vpack.c.b16 %v1701, %v1700
      %v1729 = vpack.c.b16 %v1703, %v1702
      %v1730 = vpack.c.b16 %v1705, %v1704
      %v1731 = vpack.c.b16 %v1707, %v1706
      %v1732 = vpack.c.b16 %v1709, %v1708
      %v1733 = vpack.c.b16 %v1711, %v1710
      %v1734 = vpack.c.b16 %v1713, %v1712
      %v1735 = vpack.c.b16 %v1715, %v1714
      %v1736 = vpack.c.b16 %v1717, %v1716
      %v1737 = vpack.c.b16 %v1719, %v1718
      %v1738 = vpack.c.b16 %v1721, %v1720
      %v1739 = vpack.c.b16 %v1723, %v1722
      %v1772 = vunpack.c.l.b16 %v1259
      %v1773 = vunpack.c.l.b16 %v1260
      %v1774 = vunpack.c.l.b16 %v1261
      %v1775 = vunpack.c.l.b16 %v1262
      %v1776 = vunpack.c.l.b16 %v1263
      %v1777 = vunpack.c.l.b16 %v1264
      %v1778 = vunpack.c.l.b16 %v1265
      %v1779 = vunpack.c.l.b16 %v1266
      %v1780 = vunpack.c.l.b16 %v1267
      %v1781 = vunpack.c.l.b16 %v1268
      %v1782 = vunpack.c.l.b16 %v1269
      %v1783 = vunpack.c.l.b16 %v1270
      %v1784 = vunpack.c.l.b16 %v1271
      %v1785 = vunpack.c.l.b16 %v1272
      %v1786 = vunpack.c.l.b16 %v1273
      %v1787 = vunpack.c.l.b16 %v1274
      %v1788 = vpack.c.b16 %v1773, %v1772
      %v1789 = vpack.c.b16 %v1775, %v1774
      %v1790 = vpack.c.b16 %v1777, %v1776
      %v1791 = vpack.c.b16 %v1779, %v1778
      %v1792 = vpack.c.b16 %v1781, %v1780
      %v1793 = vpack.c.b16 %v1783, %v1782
      %v1794 = vpack.c.b16 %v1785, %v1784
      %v1795 = vpack.c.b16 %v1787, %v1786
      %1804 = vmatpush.bf16.msra.mxu0 %v1795
      %1805 = vmatpush.bf16.msra.mxu0 %v1794
      %1806 = vmatpush.bf16.msra.mxu0 %v1793
      %1807 = vmatpush.bf16.msra.mxu0 %v1792
      %1808 = vmatpush.bf16.msra.mxu0 %v1791
      %1809 = vmatpush.bf16.msra.mxu0 %v1790
      %1810 = vmatpush.bf16.msra.mxu0 %v1789
      %1811 = vmatpush.bf16.msra.mxu0 %v1788
      %1812 = vmatmul.bf16.gmra.mxu0 %v1724
      %v1813 = vpop.f32.mrf.mxu0
      %v1814 = vadd.f32 %v1581, %v1813
      %v1815 = vpop.f32.mrf.mxu0
      %v1816 = vadd.f32 %v1583, %v1815
      %1817 = vmatmul.bf16.gmra.mxu0 %v1725
      %v1818 = vpop.f32.mrf.mxu0
      %v1819 = vadd.f32 %v1586, %v1818
      %v1820 = vpop.f32.mrf.mxu0
      %v1821 = vadd.f32 %v1588, %v1820
      %1822 = vmatmul.bf16.gmra.mxu0 %v1726
      %v1823 = vpop.f32.mrf.mxu0
      %v1824 = vadd.f32 %v1591, %v1823
      %v1825 = vpop.f32.mrf.mxu0
      %v1826 = vadd.f32 %v1593, %v1825
      %1827 = vmatmul.bf16.gmra.mxu0 %v1727
      %v1828 = vpop.f32.mrf.mxu0
      %v1829 = vadd.f32 %v1596, %v1828
      %v1830 = vpop.f32.mrf.mxu0
      %v1831 = vadd.f32 %v1598, %v1830
      %1832 = vmatmul.bf16.gmra.mxu0 %v1728
      %v1833 = vpop.f32.mrf.mxu0
      %v1834 = vadd.f32 %v1601, %v1833
      %v1835 = vpop.f32.mrf.mxu0
      %v1836 = vadd.f32 %v1603, %v1835
      %1837 = vmatmul.bf16.gmra.mxu0 %v1729
      %v1838 = vpop.f32.mrf.mxu0
      %v1839 = vadd.f32 %v1606, %v1838
      %v1840 = vpop.f32.mrf.mxu0
      %v1841 = vadd.f32 %v1608, %v1840
      %1842 = vmatmul.bf16.gmra.mxu0 %v1730
      %v1843 = vpop.f32.mrf.mxu0
      %v1844 = vadd.f32 %v1611, %v1843
      %v1845 = vpop.f32.mrf.mxu0
      %v1846 = vadd.f32 %v1613, %v1845
      %1847 = vmatmul.bf16.gmra.mxu0 %v1731
      %v1848 = vpop.f32.mrf.mxu0
      %v1849 = vadd.f32 %v1616, %v1848
      %v1850 = vpop.f32.mrf.mxu0
      %v1851 = vadd.f32 %v1618, %v1850
      %1852 = vmatmul.bf16.gmra.mxu0 %v1732
      %v1853 = vpop.f32.mrf.mxu0
      %v1854 = vadd.f32 %v1621, %v1853
      %v1855 = vpop.f32.mrf.mxu0
      %v1856 = vadd.f32 %v1623, %v1855
      %1857 = vmatmul.bf16.gmra.mxu0 %v1733
      %v1858 = vpop.f32.mrf.mxu0
      %v1859 = vadd.f32 %v1626, %v1858
      %v1860 = vpop.f32.mrf.mxu0
      %v1861 = vadd.f32 %v1628, %v1860
      %1862 = vmatmul.bf16.gmra.mxu0 %v1734
      %v1863 = vpop.f32.mrf.mxu0
      %v1864 = vadd.f32 %v1631, %v1863
      %v1865 = vpop.f32.mrf.mxu0
      %v1866 = vadd.f32 %v1633, %v1865
      %1867 = vmatmul.bf16.gmra.mxu0 %v1735
      %v1868 = vpop.f32.mrf.mxu0
      %v1869 = vadd.f32 %v1636, %v1868
      %v1870 = vpop.f32.mrf.mxu0
      %v1871 = vadd.f32 %v1638, %v1870
      %1872 = vmatmul.bf16.gmra.mxu0 %v1736
      %v1873 = vpop.f32.mrf.mxu0
      %v1874 = vadd.f32 %v1641, %v1873
      %v1875 = vpop.f32.mrf.mxu0
      %v1876 = vadd.f32 %v1643, %v1875
      %1877 = vmatmul.bf16.gmra.mxu0 %v1737
      %v1878 = vpop.f32.mrf.mxu0
      %v1879 = vadd.f32 %v1646, %v1878
      %v1880 = vpop.f32.mrf.mxu0
      %v1881 = vadd.f32 %v1648, %v1880
      %1882 = vmatmul.bf16.gmra.mxu0 %v1738
      %v1883 = vpop.f32.mrf.mxu0
      %v1884 = vadd.f32 %v1651, %v1883
      %v1885 = vpop.f32.mrf.mxu0
      %v1886 = vadd.f32 %v1653, %v1885
      %1887 = vmatmul.bf16.gmra.mxu0 %v1739
      %v1888 = vpop.f32.mrf.mxu0
      %v1889 = vadd.f32 %v1656, %v1888
      %v1890 = vpop.f32.mrf.mxu0
      %v1891 = vadd.f32 %v1658, %v1890
      %1892 = vdwg.mxu0
      %vm1893 = vcmp.lt.s32.totalorder %v182, 15
      %vm1894 = vcmp.lt.s32.totalorder %v183, 15
      %v1895 = vrot.slane %v1194, 1
      %v1896 = vrot.slane %v1196, 1
      %v1897 = vrot.slane %v1198, 1
      %v1898 = vrot.slane %v1200, 1
      %v1899 = vrot.slane %v1202, 1
      %v1900 = vrot.slane %v1204, 1
      %v1901 = vrot.slane %v1206, 1
      %v1902 = vrot.slane %v1208, 1
      %v1903 = vrot.slane %v1210, 1
      %v1904 = vrot.slane %v1212, 1
      %v1905 = vrot.slane %v1214, 1
      %v1906 = vrot.slane %v1216, 1
      %v1907 = vrot.slane %v1218, 1
      %v1908 = vrot.slane %v1220, 1
      %v1909 = vrot.slane %v1222, 1
      %v1910 = vrot.slane %v1224, 1
      %v1911 = vrot.slane %v1195, 1
      %v1912 = vrot.slane %v1197, 1
      %v1913 = vrot.slane %v1199, 1
      %v1914 = vrot.slane %v1201, 1
      %v1915 = vrot.slane %v1203, 1
      %v1916 = vrot.slane %v1205, 1
      %v1917 = vrot.slane %v1207, 1
      %v1918 = vrot.slane %v1209, 1
      %v1919 = vrot.slane %v1211, 1
      %v1920 = vrot.slane %v1213, 1
      %v1921 = vrot.slane %v1215, 1
      %v1922 = vrot.slane %v1217, 1
      %v1923 = vrot.slane %v1219, 1
      %v1924 = vrot.slane %v1221, 1
      %v1925 = vrot.slane %v1223, 1
      %v1926 = vrot.slane %v1225, 1
      %vm1927 = vcmp.lt.s32.totalorder %v182, 7
      %v1928 = vsel %vm1927, %v1895, %v1911
      %v1929 = vsel %vm1927, %v1896, %v1912
      %v1930 = vsel %vm1927, %v1897, %v1913
      %v1931 = vsel %vm1927, %v1898, %v1914
      %v1932 = vsel %vm1927, %v1899, %v1915
      %v1933 = vsel %vm1927, %v1900, %v1916
      %v1934 = vsel %vm1927, %v1901, %v1917
      %v1935 = vsel %vm1927, %v1902, %v1918
      %v1936 = vsel %vm1927, %v1903, %v1919
      %v1937 = vsel %vm1927, %v1904, %v1920
      %v1938 = vsel %vm1927, %v1905, %v1921
      %v1939 = vsel %vm1927, %v1906, %v1922
      %v1940 = vsel %vm1927, %v1907, %v1923
      %v1941 = vsel %vm1927, %v1908, %v1924
      %v1942 = vsel %vm1927, %v1909, %v1925
      %v1943 = vsel %vm1927, %v1910, %v1926
      %v1944 = vsel %vm1927, %v1911, %v1895
      %v1945 = vsel %vm1927, %v1912, %v1896
      %v1946 = vsel %vm1927, %v1913, %v1897
      %v1947 = vsel %vm1927, %v1914, %v1898
      %v1948 = vsel %vm1927, %v1915, %v1899
      %v1949 = vsel %vm1927, %v1916, %v1900
      %v1950 = vsel %vm1927, %v1917, %v1901
      %v1951 = vsel %vm1927, %v1918, %v1902
      %v1952 = vsel %vm1927, %v1919, %v1903
      %v1953 = vsel %vm1927, %v1920, %v1904
      %v1954 = vsel %vm1927, %v1921, %v1905
      %v1955 = vsel %vm1927, %v1922, %v1906
      %v1956 = vsel %vm1927, %v1923, %v1907
      %v1957 = vsel %vm1927, %v1924, %v1908
      %v1958 = vsel %vm1927, %v1925, %v1909
      %v1959 = vsel %vm1927, %v1926, %v1910
      %v1960 = vsel %vm1893, 1, 0
      %v1961 = vsel %vm1894, 1, 0
      %vm1962 = vcmp.eq.s32.totalorder %v1960, 1
      %vm1963 = vcmp.eq.s32.totalorder %v1961, 1
      %v1964 = vsel %vm1962, %v1928, 0.0
      %v1965 = vsel %vm1963, %v1944, 0.0
      %v1966 = vsel %vm1962, %v1929, 0.0
      %v1967 = vsel %vm1963, %v1945, 0.0
      %v1968 = vsel %vm1962, %v1930, 0.0
      %v1969 = vsel %vm1963, %v1946, 0.0
      %v1970 = vsel %vm1962, %v1931, 0.0
      %v1971 = vsel %vm1963, %v1947, 0.0
      %v1972 = vsel %vm1962, %v1932, 0.0
      %v1973 = vsel %vm1963, %v1948, 0.0
      %v1974 = vsel %vm1962, %v1933, 0.0
      %v1975 = vsel %vm1963, %v1949, 0.0
      %v1976 = vsel %vm1962, %v1934, 0.0
      %v1977 = vsel %vm1963, %v1950, 0.0
      %v1978 = vsel %vm1962, %v1935, 0.0
      %v1979 = vsel %vm1963, %v1951, 0.0
      %v1980 = vsel %vm1962, %v1936, 0.0
      %v1981 = vsel %vm1963, %v1952, 0.0
      %v1982 = vsel %vm1962, %v1937, 0.0
      %v1983 = vsel %vm1963, %v1953, 0.0
      %v1984 = vsel %vm1962, %v1938, 0.0
      %v1985 = vsel %vm1963, %v1954, 0.0
      %v1986 = vsel %vm1962, %v1939, 0.0
      %v1987 = vsel %vm1963, %v1955, 0.0
      %v1988 = vsel %vm1962, %v1940, 0.0
      %v1989 = vsel %vm1963, %v1956, 0.0
      %v1990 = vsel %vm1962, %v1941, 0.0
      %v1991 = vsel %vm1963, %v1957, 0.0
      %v1992 = vsel %vm1962, %v1942, 0.0
      %v1993 = vsel %vm1963, %v1958, 0.0
      %v1994 = vsel %vm1962, %v1943, 0.0
      %v1995 = vsel %vm1963, %v1959, 0.0
      %v1996 = vpack.c.bf16 %v1964, %v1964
      %v1997 = vpack.c.bf16 %v1965, %v1965
      %v1998 = vpack.c.bf16 %v1966, %v1966
      %v1999 = vpack.c.bf16 %v1967, %v1967
      %v2000 = vpack.c.bf16 %v1968, %v1968
      %v2001 = vpack.c.bf16 %v1969, %v1969
      %v2002 = vpack.c.bf16 %v1970, %v1970
      %v2003 = vpack.c.bf16 %v1971, %v1971
      %v2004 = vpack.c.bf16 %v1972, %v1972
      %v2005 = vpack.c.bf16 %v1973, %v1973
      %v2006 = vpack.c.bf16 %v1974, %v1974
      %v2007 = vpack.c.bf16 %v1975, %v1975
      %v2008 = vpack.c.bf16 %v1976, %v1976
      %v2009 = vpack.c.bf16 %v1977, %v1977
      %v2010 = vpack.c.bf16 %v1978, %v1978
      %v2011 = vpack.c.bf16 %v1979, %v1979
      %v2012 = vpack.c.bf16 %v1980, %v1980
      %v2013 = vpack.c.bf16 %v1981, %v1981
      %v2014 = vpack.c.bf16 %v1982, %v1982
      %v2015 = vpack.c.bf16 %v1983, %v1983
      %v2016 = vpack.c.bf16 %v1984, %v1984
      %v2017 = vpack.c.bf16 %v1985, %v1985
      %v2018 = vpack.c.bf16 %v1986, %v1986
      %v2019 = vpack.c.bf16 %v1987, %v1987
      %v2020 = vpack.c.bf16 %v1988, %v1988
      %v2021 = vpack.c.bf16 %v1989, %v1989
      %v2022 = vpack.c.bf16 %v1990, %v1990
      %v2023 = vpack.c.bf16 %v1991, %v1991
      %v2024 = vpack.c.bf16 %v1992, %v1992
      %v2025 = vpack.c.bf16 %v1993, %v1993
      %v2026 = vpack.c.bf16 %v1994, %v1994
      %v2027 = vpack.c.bf16 %v1995, %v1995
      %s2028 = scalar_lea.vmem %s1, 320
      %v2029 = vld [vmem:[%s2028] sm:$0xf]
      %v2030 = vld [vmem:[%s2028 + $0x4] sm:$0xf]
      %v2031 = vld [vmem:[%s2028 + $0x8] sm:$0xf]
      %v2032 = vld [vmem:[%s2028 + $0xc] sm:$0xf]
      %v2033 = vld [vmem:[%s2028 + $0x10] sm:$0xf]
      %v2034 = vld [vmem:[%s2028 + $0x14] sm:$0xf]
      %v2035 = vld [vmem:[%s2028 + $0x18] sm:$0xf]
      %v2036 = vld [vmem:[%s2028 + $0x1c] sm:$0xf]
      %v2037 = vld [vmem:[%s2028 + $0x20] sm:$0xf]
      %v2038 = vld [vmem:[%s2028 + $0x24] sm:$0xf]
      %v2039 = vld [vmem:[%s2028 + $0x28] sm:$0xf]
      %v2040 = vld [vmem:[%s2028 + $0x2c] sm:$0xf]
      %v2041 = vld [vmem:[%s2028 + $0x30] sm:$0xf]
      %v2042 = vld [vmem:[%s2028 + $0x34] sm:$0xf]
      %v2043 = vld [vmem:[%s2028 + $0x38] sm:$0xf]
      %v2044 = vld [vmem:[%s2028 + $0x3c] sm:$0xf]
      %v2077 = vunpack.c.l.b16 %v1996
      %v2078 = vunpack.c.l.b16 %v1997
      %v2079 = vunpack.c.l.b16 %v1998
      %v2080 = vunpack.c.l.b16 %v1999
      %v2081 = vunpack.c.l.b16 %v2000
      %v2082 = vunpack.c.l.b16 %v2001
      %v2083 = vunpack.c.l.b16 %v2002
      %v2084 = vunpack.c.l.b16 %v2003
      %v2085 = vunpack.c.l.b16 %v2004
      %v2086 = vunpack.c.l.b16 %v2005
      %v2087 = vunpack.c.l.b16 %v2006
      %v2088 = vunpack.c.l.b16 %v2007
      %v2089 = vunpack.c.l.b16 %v2008
      %v2090 = vunpack.c.l.b16 %v2009
      %v2091 = vunpack.c.l.b16 %v2010
      %v2092 = vunpack.c.l.b16 %v2011
      %v2093 = vunpack.c.l.b16 %v2012
      %v2094 = vunpack.c.l.b16 %v2013
      %v2095 = vunpack.c.l.b16 %v2014
      %v2096 = vunpack.c.l.b16 %v2015
      %v2097 = vunpack.c.l.b16 %v2016
      %v2098 = vunpack.c.l.b16 %v2017
      %v2099 = vunpack.c.l.b16 %v2018
      %v2100 = vunpack.c.l.b16 %v2019
      %v2101 = vunpack.c.l.b16 %v2020
      %v2102 = vunpack.c.l.b16 %v2021
      %v2103 = vunpack.c.l.b16 %v2022
      %v2104 = vunpack.c.l.b16 %v2023
      %v2105 = vunpack.c.l.b16 %v2024
      %v2106 = vunpack.c.l.b16 %v2025
      %v2107 = vunpack.c.l.b16 %v2026
      %v2108 = vunpack.c.l.b16 %v2027
      %v2109 = vpack.c.b16 %v2078, %v2077
      %v2110 = vpack.c.b16 %v2080, %v2079
      %v2111 = vpack.c.b16 %v2082, %v2081
      %v2112 = vpack.c.b16 %v2084, %v2083
      %v2113 = vpack.c.b16 %v2086, %v2085
      %v2114 = vpack.c.b16 %v2088, %v2087
      %v2115 = vpack.c.b16 %v2090, %v2089
      %v2116 = vpack.c.b16 %v2092, %v2091
      %v2117 = vpack.c.b16 %v2094, %v2093
      %v2118 = vpack.c.b16 %v2096, %v2095
      %v2119 = vpack.c.b16 %v2098, %v2097
      %v2120 = vpack.c.b16 %v2100, %v2099
      %v2121 = vpack.c.b16 %v2102, %v2101
      %v2122 = vpack.c.b16 %v2104, %v2103
      %v2123 = vpack.c.b16 %v2106, %v2105
      %v2124 = vpack.c.b16 %v2108, %v2107
      %v2157 = vunpack.c.l.b16 %v2029
      %v2158 = vunpack.c.l.b16 %v2030
      %v2159 = vunpack.c.l.b16 %v2031
      %v2160 = vunpack.c.l.b16 %v2032
      %v2161 = vunpack.c.l.b16 %v2033
      %v2162 = vunpack.c.l.b16 %v2034
      %v2163 = vunpack.c.l.b16 %v2035
      %v2164 = vunpack.c.l.b16 %v2036
      %v2165 = vunpack.c.l.b16 %v2037
      %v2166 = vunpack.c.l.b16 %v2038
      %v2167 = vunpack.c.l.b16 %v2039
      %v2168 = vunpack.c.l.b16 %v2040
      %v2169 = vunpack.c.l.b16 %v2041
      %v2170 = vunpack.c.l.b16 %v2042
      %v2171 = vunpack.c.l.b16 %v2043
      %v2172 = vunpack.c.l.b16 %v2044
      %v2173 = vpack.c.b16 %v2158, %v2157
      %v2174 = vpack.c.b16 %v2160, %v2159
      %v2175 = vpack.c.b16 %v2162, %v2161
      %v2176 = vpack.c.b16 %v2164, %v2163
      %v2177 = vpack.c.b16 %v2166, %v2165
      %v2178 = vpack.c.b16 %v2168, %v2167
      %v2179 = vpack.c.b16 %v2170, %v2169
      %v2180 = vpack.c.b16 %v2172, %v2171
      %2189 = vmatpush.bf16.msra.mxu0 %v2180
      %2190 = vmatpush.bf16.msra.mxu0 %v2179
      %2191 = vmatpush.bf16.msra.mxu0 %v2178
      %2192 = vmatpush.bf16.msra.mxu0 %v2177
      %2193 = vmatpush.bf16.msra.mxu0 %v2176
      %2194 = vmatpush.bf16.msra.mxu0 %v2175
      %2195 = vmatpush.bf16.msra.mxu0 %v2174
      %2196 = vmatpush.bf16.msra.mxu0 %v2173
      %2197 = vmatmul.bf16.gmra.mxu0 %v2109
      %v2198 = vpop.f32.mrf.mxu0
      %v2199 = vadd.f32 0.0, %v2198
      %v2200 = vpop.f32.mrf.mxu0
      %v2201 = vadd.f32 0.0, %v2200
      %2202 = vmatmul.bf16.gmra.mxu0 %v2110
      %v2203 = vpop.f32.mrf.mxu0
      %v2204 = vadd.f32 0.0, %v2203
      %v2205 = vpop.f32.mrf.mxu0
      %v2206 = vadd.f32 0.0, %v2205
      %2207 = vmatmul.bf16.gmra.mxu0 %v2111
      %v2208 = vpop.f32.mrf.mxu0
      %v2209 = vadd.f32 0.0, %v2208
      %v2210 = vpop.f32.mrf.mxu0
      %v2211 = vadd.f32 0.0, %v2210
      %2212 = vmatmul.bf16.gmra.mxu0 %v2112
      %v2213 = vpop.f32.mrf.mxu0
      %v2214 = vadd.f32 0.0, %v2213
      %v2215 = vpop.f32.mrf.mxu0
      %v2216 = vadd.f32 0.0, %v2215
      %2217 = vmatmul.bf16.gmra.mxu0 %v2113
      %v2218 = vpop.f32.mrf.mxu0
      %v2219 = vadd.f32 0.0, %v2218
      %v2220 = vpop.f32.mrf.mxu0
      %v2221 = vadd.f32 0.0, %v2220
      %2222 = vmatmul.bf16.gmra.mxu0 %v2114
      %v2223 = vpop.f32.mrf.mxu0
      %v2224 = vadd.f32 0.0, %v2223
      %v2225 = vpop.f32.mrf.mxu0
      %v2226 = vadd.f32 0.0, %v2225
      %2227 = vmatmul.bf16.gmra.mxu0 %v2115
      %v2228 = vpop.f32.mrf.mxu0
      %v2229 = vadd.f32 0.0, %v2228
      %v2230 = vpop.f32.mrf.mxu0
      %v2231 = vadd.f32 0.0, %v2230
      %2232 = vmatmul.bf16.gmra.mxu0 %v2116
      %v2233 = vpop.f32.mrf.mxu0
      %v2234 = vadd.f32 0.0, %v2233
      %v2235 = vpop.f32.mrf.mxu0
      %v2236 = vadd.f32 0.0, %v2235
      %2237 = vmatmul.bf16.gmra.mxu0 %v2117
      %v2238 = vpop.f32.mrf.mxu0
      %v2239 = vadd.f32 0.0, %v2238
      %v2240 = vpop.f32.mrf.mxu0
      %v2241 = vadd.f32 0.0, %v2240
      %2242 = vmatmul.bf16.gmra.mxu0 %v2118
      %v2243 = vpop.f32.mrf.mxu0
      %v2244 = vadd.f32 0.0, %v2243
      %v2245 = vpop.f32.mrf.mxu0
      %v2246 = vadd.f32 0.0, %v2245
      %2247 = vmatmul.bf16.gmra.mxu0 %v2119
      %v2248 = vpop.f32.mrf.mxu0
      %v2249 = vadd.f32 0.0, %v2248
      %v2250 = vpop.f32.mrf.mxu0
      %v2251 = vadd.f32 0.0, %v2250
      %2252 = vmatmul.bf16.gmra.mxu0 %v2120
      %v2253 = vpop.f32.mrf.mxu0
      %v2254 = vadd.f32 0.0, %v2253
      %v2255 = vpop.f32.mrf.mxu0
      %v2256 = vadd.f32 0.0, %v2255
      %2257 = vmatmul.bf16.gmra.mxu0 %v2121
      %v2258 = vpop.f32.mrf.mxu0
      %v2259 = vadd.f32 0.0, %v2258
      %v2260 = vpop.f32.mrf.mxu0
      %v2261 = vadd.f32 0.0, %v2260
      %2262 = vmatmul.bf16.gmra.mxu0 %v2122
      %v2263 = vpop.f32.mrf.mxu0
      %v2264 = vadd.f32 0.0, %v2263
      %v2265 = vpop.f32.mrf.mxu0
      %v2266 = vadd.f32 0.0, %v2265
      %2267 = vmatmul.bf16.gmra.mxu0 %v2123
      %v2268 = vpop.f32.mrf.mxu0
      %v2269 = vadd.f32 0.0, %v2268
      %v2270 = vpop.f32.mrf.mxu0
      %v2271 = vadd.f32 0.0, %v2270
      %2272 = vmatmul.bf16.gmra.mxu0 %v2124
      %v2273 = vpop.f32.mrf.mxu0
      %v2274 = vadd.f32 0.0, %v2273
      %v2275 = vpop.f32.mrf.mxu0
      %v2276 = vadd.f32 0.0, %v2275
      %2277 = vdwg.mxu0
      %v2278 = vadd.f32 %v1814, %v2199
      %v2279 = vadd.f32 %v1816, %v2201
      %v2280 = vadd.f32 %v1819, %v2204
      %v2281 = vadd.f32 %v1821, %v2206
      %v2282 = vadd.f32 %v1824, %v2209
      %v2283 = vadd.f32 %v1826, %v2211
      %v2284 = vadd.f32 %v1829, %v2214
      %v2285 = vadd.f32 %v1831, %v2216
      %v2286 = vadd.f32 %v1834, %v2219
      %v2287 = vadd.f32 %v1836, %v2221
      %v2288 = vadd.f32 %v1839, %v2224
      %v2289 = vadd.f32 %v1841, %v2226
      %v2290 = vadd.f32 %v1844, %v2229
      %v2291 = vadd.f32 %v1846, %v2231
      %v2292 = vadd.f32 %v1849, %v2234
      %v2293 = vadd.f32 %v1851, %v2236
      %v2294 = vadd.f32 %v1854, %v2239
      %v2295 = vadd.f32 %v1856, %v2241
      %v2296 = vadd.f32 %v1859, %v2244
      %v2297 = vadd.f32 %v1861, %v2246
      %v2298 = vadd.f32 %v1864, %v2249
      %v2299 = vadd.f32 %v1866, %v2251
      %v2300 = vadd.f32 %v1869, %v2254
      %v2301 = vadd.f32 %v1871, %v2256
      %v2302 = vadd.f32 %v1874, %v2259
      %v2303 = vadd.f32 %v1876, %v2261
      %v2304 = vadd.f32 %v1879, %v2264
      %v2305 = vadd.f32 %v1881, %v2266
      %v2306 = vadd.f32 %v1884, %v2269
      %v2307 = vadd.f32 %v1886, %v2271
      %v2308 = vadd.f32 %v1889, %v2274
      %v2309 = vadd.f32 %v1891, %v2276
      %v2310 = vld [vmem:[%s2 + $0x1] sm:$0x1]
      %v2311 = vperm.slane %v2310, 0
      %v2312 = vadd.f32 %v2278, %v2311
      %v2313 = vadd.f32 %v2279, %v2311
      %v2314 = vadd.f32 %v2280, %v2311
      %v2315 = vadd.f32 %v2281, %v2311
      %v2316 = vadd.f32 %v2282, %v2311
      %v2317 = vadd.f32 %v2283, %v2311
      %v2318 = vadd.f32 %v2284, %v2311
      %v2319 = vadd.f32 %v2285, %v2311
      %v2320 = vadd.f32 %v2286, %v2311
      %v2321 = vadd.f32 %v2287, %v2311
      %v2322 = vadd.f32 %v2288, %v2311
      %v2323 = vadd.f32 %v2289, %v2311
      %v2324 = vadd.f32 %v2290, %v2311
      %v2325 = vadd.f32 %v2291, %v2311
      %v2326 = vadd.f32 %v2292, %v2311
      %v2327 = vadd.f32 %v2293, %v2311
      %v2328 = vadd.f32 %v2294, %v2311
      %v2329 = vadd.f32 %v2295, %v2311
      %v2330 = vadd.f32 %v2296, %v2311
      %v2331 = vadd.f32 %v2297, %v2311
      %v2332 = vadd.f32 %v2298, %v2311
      %v2333 = vadd.f32 %v2299, %v2311
      %v2334 = vadd.f32 %v2300, %v2311
      %v2335 = vadd.f32 %v2301, %v2311
      %v2336 = vadd.f32 %v2302, %v2311
      %v2337 = vadd.f32 %v2303, %v2311
      %v2338 = vadd.f32 %v2304, %v2311
      %v2339 = vadd.f32 %v2305, %v2311
      %v2340 = vadd.f32 %v2306, %v2311
      %v2341 = vadd.f32 %v2307, %v2311
      %v2342 = vadd.f32 %v2308, %v2311
      %v2343 = vadd.f32 %v2309, %v2311
      %v2344 = vmax.f32 %v2312, 0.0
      %v2345 = vmax.f32 %v2313, 0.0
      %v2346 = vmax.f32 %v2314, 0.0
      %v2347 = vmax.f32 %v2315, 0.0
      %v2348 = vmax.f32 %v2316, 0.0
      %v2349 = vmax.f32 %v2317, 0.0
      %v2350 = vmax.f32 %v2318, 0.0
      %v2351 = vmax.f32 %v2319, 0.0
      %v2352 = vmax.f32 %v2320, 0.0
      %v2353 = vmax.f32 %v2321, 0.0
      %v2354 = vmax.f32 %v2322, 0.0
      %v2355 = vmax.f32 %v2323, 0.0
      %v2356 = vmax.f32 %v2324, 0.0
      %v2357 = vmax.f32 %v2325, 0.0
      %v2358 = vmax.f32 %v2326, 0.0
      %v2359 = vmax.f32 %v2327, 0.0
      %v2360 = vmax.f32 %v2328, 0.0
      %v2361 = vmax.f32 %v2329, 0.0
      %v2362 = vmax.f32 %v2330, 0.0
      %v2363 = vmax.f32 %v2331, 0.0
      %v2364 = vmax.f32 %v2332, 0.0
      %v2365 = vmax.f32 %v2333, 0.0
      %v2366 = vmax.f32 %v2334, 0.0
      %v2367 = vmax.f32 %v2335, 0.0
      %v2368 = vmax.f32 %v2336, 0.0
      %v2369 = vmax.f32 %v2337, 0.0
      %v2370 = vmax.f32 %v2338, 0.0
      %v2371 = vmax.f32 %v2339, 0.0
      %v2372 = vmax.f32 %v2340, 0.0
      %v2373 = vmax.f32 %v2341, 0.0
      %v2374 = vmax.f32 %v2342, 0.0
      %v2375 = vmax.f32 %v2343, 0.0
      %v2376 = vpack.c.bf16 %v2344, %v2344
      %v2377 = vpack.c.bf16 %v2345, %v2345
      %v2378 = vpack.c.bf16 %v2346, %v2346
      %v2379 = vpack.c.bf16 %v2347, %v2347
      %v2380 = vpack.c.bf16 %v2348, %v2348
      %v2381 = vpack.c.bf16 %v2349, %v2349
      %v2382 = vpack.c.bf16 %v2350, %v2350
      %v2383 = vpack.c.bf16 %v2351, %v2351
      %v2384 = vpack.c.bf16 %v2352, %v2352
      %v2385 = vpack.c.bf16 %v2353, %v2353
      %v2386 = vpack.c.bf16 %v2354, %v2354
      %v2387 = vpack.c.bf16 %v2355, %v2355
      %v2388 = vpack.c.bf16 %v2356, %v2356
      %v2389 = vpack.c.bf16 %v2357, %v2357
      %v2390 = vpack.c.bf16 %v2358, %v2358
      %v2391 = vpack.c.bf16 %v2359, %v2359
      %v2392 = vpack.c.bf16 %v2360, %v2360
      %v2393 = vpack.c.bf16 %v2361, %v2361
      %v2394 = vpack.c.bf16 %v2362, %v2362
      %v2395 = vpack.c.bf16 %v2363, %v2363
      %v2396 = vpack.c.bf16 %v2364, %v2364
      %v2397 = vpack.c.bf16 %v2365, %v2365
      %v2398 = vpack.c.bf16 %v2366, %v2366
      %v2399 = vpack.c.bf16 %v2367, %v2367
      %v2400 = vpack.c.bf16 %v2368, %v2368
      %v2401 = vpack.c.bf16 %v2369, %v2369
      %v2402 = vpack.c.bf16 %v2370, %v2370
      %v2403 = vpack.c.bf16 %v2371, %v2371
      %v2404 = vpack.c.bf16 %v2372, %v2372
      %v2405 = vpack.c.bf16 %v2373, %v2373
      %v2406 = vpack.c.bf16 %v2374, %v2374
      %v2407 = vpack.c.bf16 %v2375, %v2375
      %2408 = vst [vmem:[%s248] sm:$0xf] %v2376
      %2409 = vst [vmem:[%s248 + $0x4] sm:$0xf] %v2377
      %2410 = vst [vmem:[%s248 + $0x8] sm:$0xf] %v2378
      %2411 = vst [vmem:[%s248 + $0xc] sm:$0xf] %v2379
      %2412 = vst [vmem:[%s248 + $0x10] sm:$0xf] %v2380
      %2413 = vst [vmem:[%s248 + $0x14] sm:$0xf] %v2381
      %2414 = vst [vmem:[%s248 + $0x18] sm:$0xf] %v2382
      %2415 = vst [vmem:[%s248 + $0x1c] sm:$0xf] %v2383
      %2416 = vst [vmem:[%s248 + $0x20] sm:$0xf] %v2384
      %2417 = vst [vmem:[%s248 + $0x24] sm:$0xf] %v2385
      %2418 = vst [vmem:[%s248 + $0x28] sm:$0xf] %v2386
      %2419 = vst [vmem:[%s248 + $0x2c] sm:$0xf] %v2387
      %2420 = vst [vmem:[%s248 + $0x30] sm:$0xf] %v2388
      %2421 = vst [vmem:[%s248 + $0x34] sm:$0xf] %v2389
      %2422 = vst [vmem:[%s248 + $0x38] sm:$0xf] %v2390
      %2423 = vst [vmem:[%s248 + $0x3c] sm:$0xf] %v2391
      %2424 = vst [vmem:[%s248 + $0x40] sm:$0xf] %v2392
      %2425 = vst [vmem:[%s248 + $0x44] sm:$0xf] %v2393
      %2426 = vst [vmem:[%s248 + $0x48] sm:$0xf] %v2394
      %2427 = vst [vmem:[%s248 + $0x4c] sm:$0xf] %v2395
      %2428 = vst [vmem:[%s248 + $0x50] sm:$0xf] %v2396
      %2429 = vst [vmem:[%s248 + $0x54] sm:$0xf] %v2397
      %2430 = vst [vmem:[%s248 + $0x58] sm:$0xf] %v2398
      %2431 = vst [vmem:[%s248 + $0x5c] sm:$0xf] %v2399
      %2432 = vst [vmem:[%s248 + $0x60] sm:$0xf] %v2400
      %2433 = vst [vmem:[%s248 + $0x64] sm:$0xf] %v2401
      %2434 = vst [vmem:[%s248 + $0x68] sm:$0xf] %v2402
      %2435 = vst [vmem:[%s248 + $0x6c] sm:$0xf] %v2403
      %2436 = vst [vmem:[%s248 + $0x70] sm:$0xf] %v2404
      %2437 = vst [vmem:[%s248 + $0x74] sm:$0xf] %v2405
      %2438 = vst [vmem:[%s248 + $0x78] sm:$0xf] %v2406
      %2439 = vst [vmem:[%s248 + $0x7c] sm:$0xf] %v2407
      %v2440 = vld [vmem:[%s248] sm:$0xf]
      %v2441 = vld [vmem:[%s248 + $0x4] sm:$0xf]
      %v2442 = vld [vmem:[%s248 + $0x8] sm:$0xf]
      %v2443 = vld [vmem:[%s248 + $0xc] sm:$0xf]
      %v2444 = vld [vmem:[%s248 + $0x10] sm:$0xf]
      %v2445 = vld [vmem:[%s248 + $0x14] sm:$0xf]
      %v2446 = vld [vmem:[%s248 + $0x18] sm:$0xf]
      %v2447 = vld [vmem:[%s248 + $0x1c] sm:$0xf]
      %v2448 = vld [vmem:[%s248 + $0x20] sm:$0xf]
      %v2449 = vld [vmem:[%s248 + $0x24] sm:$0xf]
      %v2450 = vld [vmem:[%s248 + $0x28] sm:$0xf]
      %v2451 = vld [vmem:[%s248 + $0x2c] sm:$0xf]
      %v2452 = vld [vmem:[%s248 + $0x30] sm:$0xf]
      %v2453 = vld [vmem:[%s248 + $0x34] sm:$0xf]
      %v2454 = vld [vmem:[%s248 + $0x38] sm:$0xf]
      %v2455 = vld [vmem:[%s248 + $0x3c] sm:$0xf]
      %v2456 = vld [vmem:[%s248 + $0x40] sm:$0xf]
      %v2457 = vld [vmem:[%s248 + $0x44] sm:$0xf]
      %v2458 = vld [vmem:[%s248 + $0x48] sm:$0xf]
      %v2459 = vld [vmem:[%s248 + $0x4c] sm:$0xf]
      %v2460 = vld [vmem:[%s248 + $0x50] sm:$0xf]
      %v2461 = vld [vmem:[%s248 + $0x54] sm:$0xf]
      %v2462 = vld [vmem:[%s248 + $0x58] sm:$0xf]
      %v2463 = vld [vmem:[%s248 + $0x5c] sm:$0xf]
      %v2464 = vld [vmem:[%s248 + $0x60] sm:$0xf]
      %v2465 = vld [vmem:[%s248 + $0x64] sm:$0xf]
      %v2466 = vld [vmem:[%s248 + $0x68] sm:$0xf]
      %v2467 = vld [vmem:[%s248 + $0x6c] sm:$0xf]
      %v2468 = vld [vmem:[%s248 + $0x70] sm:$0xf]
      %v2469 = vld [vmem:[%s248 + $0x74] sm:$0xf]
      %v2470 = vld [vmem:[%s248 + $0x78] sm:$0xf]
      %v2471 = vld [vmem:[%s248 + $0x7c] sm:$0xf]
      %s2472 = scalar_lea.vmem %s1, 448
      %v2473 = vld [vmem:[%s2472] sm:$0xf]
      %v2474 = vld [vmem:[%s2472 + $0x4] sm:$0xf]
      %v2475 = vld [vmem:[%s2472 + $0x8] sm:$0xf]
      %v2476 = vld [vmem:[%s2472 + $0xc] sm:$0xf]
      %v2477 = vld [vmem:[%s2472 + $0x10] sm:$0xf]
      %v2478 = vld [vmem:[%s2472 + $0x14] sm:$0xf]
      %v2479 = vld [vmem:[%s2472 + $0x18] sm:$0xf]
      %v2480 = vld [vmem:[%s2472 + $0x1c] sm:$0xf]
      %v2481 = vld [vmem:[%s2472 + $0x20] sm:$0xf]
      %v2482 = vld [vmem:[%s2472 + $0x24] sm:$0xf]
      %v2483 = vld [vmem:[%s2472 + $0x28] sm:$0xf]
      %v2484 = vld [vmem:[%s2472 + $0x2c] sm:$0xf]
      %v2485 = vld [vmem:[%s2472 + $0x30] sm:$0xf]
      %v2486 = vld [vmem:[%s2472 + $0x34] sm:$0xf]
      %v2487 = vld [vmem:[%s2472 + $0x38] sm:$0xf]
      %v2488 = vld [vmem:[%s2472 + $0x3c] sm:$0xf]
      %v2489 = vld [vmem:[#allocation2] sm:$0xf]
      %v2490 = vld [vmem:[#allocation2 + $0x4] sm:$0xf]
      %v2491 = vld [vmem:[#allocation2 + $0x8] sm:$0xf]
      %v2492 = vld [vmem:[#allocation2 + $0xc] sm:$0xf]
      %v2493 = vld [vmem:[#allocation2 + $0x10] sm:$0xf]
      %v2494 = vld [vmem:[#allocation2 + $0x14] sm:$0xf]
      %v2495 = vld [vmem:[#allocation2 + $0x18] sm:$0xf]
      %v2496 = vld [vmem:[#allocation2 + $0x1c] sm:$0xf]
      %v2497 = vld [vmem:[#allocation2 + $0x20] sm:$0xf]
      %v2498 = vld [vmem:[#allocation2 + $0x24] sm:$0xf]
      %v2499 = vld [vmem:[#allocation2 + $0x28] sm:$0xf]
      %v2500 = vld [vmem:[#allocation2 + $0x2c] sm:$0xf]
      %v2501 = vld [vmem:[#allocation2 + $0x30] sm:$0xf]
      %v2502 = vld [vmem:[#allocation2 + $0x34] sm:$0xf]
      %v2503 = vld [vmem:[#allocation2 + $0x38] sm:$0xf]
      %v2504 = vld [vmem:[#allocation2 + $0x3c] sm:$0xf]
      %v2505 = vld [vmem:[#allocation2 + $0x40] sm:$0xf]
      %v2506 = vld [vmem:[#allocation2 + $0x44] sm:$0xf]
      %v2507 = vld [vmem:[#allocation2 + $0x48] sm:$0xf]
      %v2508 = vld [vmem:[#allocation2 + $0x4c] sm:$0xf]
      %v2509 = vld [vmem:[#allocation2 + $0x50] sm:$0xf]
      %v2510 = vld [vmem:[#allocation2 + $0x54] sm:$0xf]
      %v2511 = vld [vmem:[#allocation2 + $0x58] sm:$0xf]
      %v2512 = vld [vmem:[#allocation2 + $0x5c] sm:$0xf]
      %v2513 = vld [vmem:[#allocation2 + $0x60] sm:$0xf]
      %v2514 = vld [vmem:[#allocation2 + $0x64] sm:$0xf]
      %v2515 = vld [vmem:[#allocation2 + $0x68] sm:$0xf]
      %v2516 = vld [vmem:[#allocation2 + $0x6c] sm:$0xf]
      %v2517 = vld [vmem:[#allocation2 + $0x70] sm:$0xf]
      %v2518 = vld [vmem:[#allocation2 + $0x74] sm:$0xf]
      %v2519 = vld [vmem:[#allocation2 + $0x78] sm:$0xf]
      %v2520 = vld [vmem:[#allocation2 + $0x7c] sm:$0xf]
      %s2521 = scalar_lea.vmem %s1, 384
      %v2522 = vld [vmem:[%s2521] sm:$0xf]
      %v2523 = vld [vmem:[%s2521 + $0x4] sm:$0xf]
      %v2524 = vld [vmem:[%s2521 + $0x8] sm:$0xf]
      %v2525 = vld [vmem:[%s2521 + $0xc] sm:$0xf]
      %v2526 = vld [vmem:[%s2521 + $0x10] sm:$0xf]
      %v2527 = vld [vmem:[%s2521 + $0x14] sm:$0xf]
      %v2528 = vld [vmem:[%s2521 + $0x18] sm:$0xf]
      %v2529 = vld [vmem:[%s2521 + $0x1c] sm:$0xf]
      %v2530 = vld [vmem:[%s2521 + $0x20] sm:$0xf]
      %v2531 = vld [vmem:[%s2521 + $0x24] sm:$0xf]
      %v2532 = vld [vmem:[%s2521 + $0x28] sm:$0xf]
      %v2533 = vld [vmem:[%s2521 + $0x2c] sm:$0xf]
      %v2534 = vld [vmem:[%s2521 + $0x30] sm:$0xf]
      %v2535 = vld [vmem:[%s2521 + $0x34] sm:$0xf]
      %v2536 = vld [vmem:[%s2521 + $0x38] sm:$0xf]
      %v2537 = vld [vmem:[%s2521 + $0x3c] sm:$0xf]
      %v2570 = vunpack.c.l.b16 %v2489
      %v2571 = vunpack.c.l.b16 %v2490
      %v2572 = vunpack.c.l.b16 %v2491
      %v2573 = vunpack.c.l.b16 %v2492
      %v2574 = vunpack.c.l.b16 %v2493
      %v2575 = vunpack.c.l.b16 %v2494
      %v2576 = vunpack.c.l.b16 %v2495
      %v2577 = vunpack.c.l.b16 %v2496
      %v2578 = vunpack.c.l.b16 %v2497
      %v2579 = vunpack.c.l.b16 %v2498
      %v2580 = vunpack.c.l.b16 %v2499
      %v2581 = vunpack.c.l.b16 %v2500
      %v2582 = vunpack.c.l.b16 %v2501
      %v2583 = vunpack.c.l.b16 %v2502
      %v2584 = vunpack.c.l.b16 %v2503
      %v2585 = vunpack.c.l.b16 %v2504
      %v2586 = vunpack.c.l.b16 %v2505
      %v2587 = vunpack.c.l.b16 %v2506
      %v2588 = vunpack.c.l.b16 %v2507
      %v2589 = vunpack.c.l.b16 %v2508
      %v2590 = vunpack.c.l.b16 %v2509
      %v2591 = vunpack.c.l.b16 %v2510
      %v2592 = vunpack.c.l.b16 %v2511
      %v2593 = vunpack.c.l.b16 %v2512
      %v2594 = vunpack.c.l.b16 %v2513
      %v2595 = vunpack.c.l.b16 %v2514
      %v2596 = vunpack.c.l.b16 %v2515
      %v2597 = vunpack.c.l.b16 %v2516
      %v2598 = vunpack.c.l.b16 %v2517
      %v2599 = vunpack.c.l.b16 %v2518
      %v2600 = vunpack.c.l.b16 %v2519
      %v2601 = vunpack.c.l.b16 %v2520
      %v2602 = vpack.c.b16 %v2571, %v2570
      %v2603 = vpack.c.b16 %v2573, %v2572
      %v2604 = vpack.c.b16 %v2575, %v2574
      %v2605 = vpack.c.b16 %v2577, %v2576
      %v2606 = vpack.c.b16 %v2579, %v2578
      %v2607 = vpack.c.b16 %v2581, %v2580
      %v2608 = vpack.c.b16 %v2583, %v2582
      %v2609 = vpack.c.b16 %v2585, %v2584
      %v2610 = vpack.c.b16 %v2587, %v2586
      %v2611 = vpack.c.b16 %v2589, %v2588
      %v2612 = vpack.c.b16 %v2591, %v2590
      %v2613 = vpack.c.b16 %v2593, %v2592
      %v2614 = vpack.c.b16 %v2595, %v2594
      %v2615 = vpack.c.b16 %v2597, %v2596
      %v2616 = vpack.c.b16 %v2599, %v2598
      %v2617 = vpack.c.b16 %v2601, %v2600
      %v2650 = vunpack.c.l.b16 %v2522
      %v2651 = vunpack.c.l.b16 %v2523
      %v2652 = vunpack.c.l.b16 %v2524
      %v2653 = vunpack.c.l.b16 %v2525
      %v2654 = vunpack.c.l.b16 %v2526
      %v2655 = vunpack.c.l.b16 %v2527
      %v2656 = vunpack.c.l.b16 %v2528
      %v2657 = vunpack.c.l.b16 %v2529
      %v2658 = vunpack.c.l.b16 %v2530
      %v2659 = vunpack.c.l.b16 %v2531
      %v2660 = vunpack.c.l.b16 %v2532
      %v2661 = vunpack.c.l.b16 %v2533
      %v2662 = vunpack.c.l.b16 %v2534
      %v2663 = vunpack.c.l.b16 %v2535
      %v2664 = vunpack.c.l.b16 %v2536
      %v2665 = vunpack.c.l.b16 %v2537
      %v2666 = vpack.c.b16 %v2651, %v2650
      %v2667 = vpack.c.b16 %v2653, %v2652
      %v2668 = vpack.c.b16 %v2655, %v2654
      %v2669 = vpack.c.b16 %v2657, %v2656
      %v2670 = vpack.c.b16 %v2659, %v2658
      %v2671 = vpack.c.b16 %v2661, %v2660
      %v2672 = vpack.c.b16 %v2663, %v2662
      %v2673 = vpack.c.b16 %v2665, %v2664
      %2682 = vmatpush.bf16.msra.mxu0 %v2673
      %2683 = vmatpush.bf16.msra.mxu0 %v2672
      %2684 = vmatpush.bf16.msra.mxu0 %v2671
      %2685 = vmatpush.bf16.msra.mxu0 %v2670
      %2686 = vmatpush.bf16.msra.mxu0 %v2669
      %2687 = vmatpush.bf16.msra.mxu0 %v2668
      %2688 = vmatpush.bf16.msra.mxu0 %v2667
      %2689 = vmatpush.bf16.msra.mxu0 %v2666
      %2690 = vmatmul.bf16.gmra.mxu0 %v2602
      %v2691 = vpop.f32.mrf.mxu0
      %v2692 = vadd.f32 0.0, %v2691
      %v2693 = vpop.f32.mrf.mxu0
      %v2694 = vadd.f32 0.0, %v2693
      %2695 = vmatmul.bf16.gmra.mxu0 %v2603
      %v2696 = vpop.f32.mrf.mxu0
      %v2697 = vadd.f32 0.0, %v2696
      %v2698 = vpop.f32.mrf.mxu0
      %v2699 = vadd.f32 0.0, %v2698
      %2700 = vmatmul.bf16.gmra.mxu0 %v2604
      %v2701 = vpop.f32.mrf.mxu0
      %v2702 = vadd.f32 0.0, %v2701
      %v2703 = vpop.f32.mrf.mxu0
      %v2704 = vadd.f32 0.0, %v2703
      %2705 = vmatmul.bf16.gmra.mxu0 %v2605
      %v2706 = vpop.f32.mrf.mxu0
      %v2707 = vadd.f32 0.0, %v2706
      %v2708 = vpop.f32.mrf.mxu0
      %v2709 = vadd.f32 0.0, %v2708
      %2710 = vmatmul.bf16.gmra.mxu0 %v2606
      %v2711 = vpop.f32.mrf.mxu0
      %v2712 = vadd.f32 0.0, %v2711
      %v2713 = vpop.f32.mrf.mxu0
      %v2714 = vadd.f32 0.0, %v2713
      %2715 = vmatmul.bf16.gmra.mxu0 %v2607
      %v2716 = vpop.f32.mrf.mxu0
      %v2717 = vadd.f32 0.0, %v2716
      %v2718 = vpop.f32.mrf.mxu0
      %v2719 = vadd.f32 0.0, %v2718
      %2720 = vmatmul.bf16.gmra.mxu0 %v2608
      %v2721 = vpop.f32.mrf.mxu0
      %v2722 = vadd.f32 0.0, %v2721
      %v2723 = vpop.f32.mrf.mxu0
      %v2724 = vadd.f32 0.0, %v2723
      %2725 = vmatmul.bf16.gmra.mxu0 %v2609
      %v2726 = vpop.f32.mrf.mxu0
      %v2727 = vadd.f32 0.0, %v2726
      %v2728 = vpop.f32.mrf.mxu0
      %v2729 = vadd.f32 0.0, %v2728
      %2730 = vmatmul.bf16.gmra.mxu0 %v2610
      %v2731 = vpop.f32.mrf.mxu0
      %v2732 = vadd.f32 0.0, %v2731
      %v2733 = vpop.f32.mrf.mxu0
      %v2734 = vadd.f32 0.0, %v2733
      %2735 = vmatmul.bf16.gmra.mxu0 %v2611
      %v2736 = vpop.f32.mrf.mxu0
      %v2737 = vadd.f32 0.0, %v2736
      %v2738 = vpop.f32.mrf.mxu0
      %v2739 = vadd.f32 0.0, %v2738
      %2740 = vmatmul.bf16.gmra.mxu0 %v2612
      %v2741 = vpop.f32.mrf.mxu0
      %v2742 = vadd.f32 0.0, %v2741
      %v2743 = vpop.f32.mrf.mxu0
      %v2744 = vadd.f32 0.0, %v2743
      %2745 = vmatmul.bf16.gmra.mxu0 %v2613
      %v2746 = vpop.f32.mrf.mxu0
      %v2747 = vadd.f32 0.0, %v2746
      %v2748 = vpop.f32.mrf.mxu0
      %v2749 = vadd.f32 0.0, %v2748
      %2750 = vmatmul.bf16.gmra.mxu0 %v2614
      %v2751 = vpop.f32.mrf.mxu0
      %v2752 = vadd.f32 0.0, %v2751
      %v2753 = vpop.f32.mrf.mxu0
      %v2754 = vadd.f32 0.0, %v2753
      %2755 = vmatmul.bf16.gmra.mxu0 %v2615
      %v2756 = vpop.f32.mrf.mxu0
      %v2757 = vadd.f32 0.0, %v2756
      %v2758 = vpop.f32.mrf.mxu0
      %v2759 = vadd.f32 0.0, %v2758
      %2760 = vmatmul.bf16.gmra.mxu0 %v2616
      %v2761 = vpop.f32.mrf.mxu0
      %v2762 = vadd.f32 0.0, %v2761
      %v2763 = vpop.f32.mrf.mxu0
      %v2764 = vadd.f32 0.0, %v2763
      %2765 = vmatmul.bf16.gmra.mxu0 %v2617
      %v2766 = vpop.f32.mrf.mxu0
      %v2767 = vadd.f32 0.0, %v2766
      %v2768 = vpop.f32.mrf.mxu0
      %v2769 = vadd.f32 0.0, %v2768
      %2770 = vdwg.mxu0
      %v2803 = vunpack.c.l.b16 %v2440
      %v2804 = vunpack.c.l.b16 %v2441
      %v2805 = vunpack.c.l.b16 %v2442
      %v2806 = vunpack.c.l.b16 %v2443
      %v2807 = vunpack.c.l.b16 %v2444
      %v2808 = vunpack.c.l.b16 %v2445
      %v2809 = vunpack.c.l.b16 %v2446
      %v2810 = vunpack.c.l.b16 %v2447
      %v2811 = vunpack.c.l.b16 %v2448
      %v2812 = vunpack.c.l.b16 %v2449
      %v2813 = vunpack.c.l.b16 %v2450
      %v2814 = vunpack.c.l.b16 %v2451
      %v2815 = vunpack.c.l.b16 %v2452
      %v2816 = vunpack.c.l.b16 %v2453
      %v2817 = vunpack.c.l.b16 %v2454
      %v2818 = vunpack.c.l.b16 %v2455
      %v2819 = vunpack.c.l.b16 %v2456
      %v2820 = vunpack.c.l.b16 %v2457
      %v2821 = vunpack.c.l.b16 %v2458
      %v2822 = vunpack.c.l.b16 %v2459
      %v2823 = vunpack.c.l.b16 %v2460
      %v2824 = vunpack.c.l.b16 %v2461
      %v2825 = vunpack.c.l.b16 %v2462
      %v2826 = vunpack.c.l.b16 %v2463
      %v2827 = vunpack.c.l.b16 %v2464
      %v2828 = vunpack.c.l.b16 %v2465
      %v2829 = vunpack.c.l.b16 %v2466
      %v2830 = vunpack.c.l.b16 %v2467
      %v2831 = vunpack.c.l.b16 %v2468
      %v2832 = vunpack.c.l.b16 %v2469
      %v2833 = vunpack.c.l.b16 %v2470
      %v2834 = vunpack.c.l.b16 %v2471
      %v2835 = vpack.c.b16 %v2804, %v2803
      %v2836 = vpack.c.b16 %v2806, %v2805
      %v2837 = vpack.c.b16 %v2808, %v2807
      %v2838 = vpack.c.b16 %v2810, %v2809
      %v2839 = vpack.c.b16 %v2812, %v2811
      %v2840 = vpack.c.b16 %v2814, %v2813
      %v2841 = vpack.c.b16 %v2816, %v2815
      %v2842 = vpack.c.b16 %v2818, %v2817
      %v2843 = vpack.c.b16 %v2820, %v2819
      %v2844 = vpack.c.b16 %v2822, %v2821
      %v2845 = vpack.c.b16 %v2824, %v2823
      %v2846 = vpack.c.b16 %v2826, %v2825
      %v2847 = vpack.c.b16 %v2828, %v2827
      %v2848 = vpack.c.b16 %v2830, %v2829
      %v2849 = vpack.c.b16 %v2832, %v2831
      %v2850 = vpack.c.b16 %v2834, %v2833
      %v2883 = vunpack.c.l.b16 %v2473
      %v2884 = vunpack.c.l.b16 %v2474
      %v2885 = vunpack.c.l.b16 %v2475
      %v2886 = vunpack.c.l.b16 %v2476
      %v2887 = vunpack.c.l.b16 %v2477
      %v2888 = vunpack.c.l.b16 %v2478
      %v2889 = vunpack.c.l.b16 %v2479
      %v2890 = vunpack.c.l.b16 %v2480
      %v2891 = vunpack.c.l.b16 %v2481
      %v2892 = vunpack.c.l.b16 %v2482
      %v2893 = vunpack.c.l.b16 %v2483
      %v2894 = vunpack.c.l.b16 %v2484
      %v2895 = vunpack.c.l.b16 %v2485
      %v2896 = vunpack.c.l.b16 %v2486
      %v2897 = vunpack.c.l.b16 %v2487
      %v2898 = vunpack.c.l.b16 %v2488
      %v2899 = vpack.c.b16 %v2884, %v2883
      %v2900 = vpack.c.b16 %v2886, %v2885
      %v2901 = vpack.c.b16 %v2888, %v2887
      %v2902 = vpack.c.b16 %v2890, %v2889
      %v2903 = vpack.c.b16 %v2892, %v2891
      %v2904 = vpack.c.b16 %v2894, %v2893
      %v2905 = vpack.c.b16 %v2896, %v2895
      %v2906 = vpack.c.b16 %v2898, %v2897
      %2915 = vmatpush.bf16.msra.mxu0 %v2906
      %2916 = vmatpush.bf16.msra.mxu0 %v2905
      %2917 = vmatpush.bf16.msra.mxu0 %v2904
      %2918 = vmatpush.bf16.msra.mxu0 %v2903
      %2919 = vmatpush.bf16.msra.mxu0 %v2902
      %2920 = vmatpush.bf16.msra.mxu0 %v2901
      %2921 = vmatpush.bf16.msra.mxu0 %v2900
      %2922 = vmatpush.bf16.msra.mxu0 %v2899
      %2923 = vmatmul.bf16.gmra.mxu0 %v2835
      %v2924 = vpop.f32.mrf.mxu0
      %v2925 = vadd.f32 %v2692, %v2924
      %v2926 = vpop.f32.mrf.mxu0
      %v2927 = vadd.f32 %v2694, %v2926
      %2928 = vmatmul.bf16.gmra.mxu0 %v2836
      %v2929 = vpop.f32.mrf.mxu0
      %v2930 = vadd.f32 %v2697, %v2929
      %v2931 = vpop.f32.mrf.mxu0
      %v2932 = vadd.f32 %v2699, %v2931
      %2933 = vmatmul.bf16.gmra.mxu0 %v2837
      %v2934 = vpop.f32.mrf.mxu0
      %v2935 = vadd.f32 %v2702, %v2934
      %v2936 = vpop.f32.mrf.mxu0
      %v2937 = vadd.f32 %v2704, %v2936
      %2938 = vmatmul.bf16.gmra.mxu0 %v2838
      %v2939 = vpop.f32.mrf.mxu0
      %v2940 = vadd.f32 %v2707, %v2939
      %v2941 = vpop.f32.mrf.mxu0
      %v2942 = vadd.f32 %v2709, %v2941
      %2943 = vmatmul.bf16.gmra.mxu0 %v2839
      %v2944 = vpop.f32.mrf.mxu0
      %v2945 = vadd.f32 %v2712, %v2944
      %v2946 = vpop.f32.mrf.mxu0
      %v2947 = vadd.f32 %v2714, %v2946
      %2948 = vmatmul.bf16.gmra.mxu0 %v2840
      %v2949 = vpop.f32.mrf.mxu0
      %v2950 = vadd.f32 %v2717, %v2949
      %v2951 = vpop.f32.mrf.mxu0
      %v2952 = vadd.f32 %v2719, %v2951
      %2953 = vmatmul.bf16.gmra.mxu0 %v2841
      %v2954 = vpop.f32.mrf.mxu0
      %v2955 = vadd.f32 %v2722, %v2954
      %v2956 = vpop.f32.mrf.mxu0
      %v2957 = vadd.f32 %v2724, %v2956
      %2958 = vmatmul.bf16.gmra.mxu0 %v2842
      %v2959 = vpop.f32.mrf.mxu0
      %v2960 = vadd.f32 %v2727, %v2959
      %v2961 = vpop.f32.mrf.mxu0
      %v2962 = vadd.f32 %v2729, %v2961
      %2963 = vmatmul.bf16.gmra.mxu0 %v2843
      %v2964 = vpop.f32.mrf.mxu0
      %v2965 = vadd.f32 %v2732, %v2964
      %v2966 = vpop.f32.mrf.mxu0
      %v2967 = vadd.f32 %v2734, %v2966
      %2968 = vmatmul.bf16.gmra.mxu0 %v2844
      %v2969 = vpop.f32.mrf.mxu0
      %v2970 = vadd.f32 %v2737, %v2969
      %v2971 = vpop.f32.mrf.mxu0
      %v2972 = vadd.f32 %v2739, %v2971
      %2973 = vmatmul.bf16.gmra.mxu0 %v2845
      %v2974 = vpop.f32.mrf.mxu0
      %v2975 = vadd.f32 %v2742, %v2974
      %v2976 = vpop.f32.mrf.mxu0
      %v2977 = vadd.f32 %v2744, %v2976
      %2978 = vmatmul.bf16.gmra.mxu0 %v2846
      %v2979 = vpop.f32.mrf.mxu0
      %v2980 = vadd.f32 %v2747, %v2979
      %v2981 = vpop.f32.mrf.mxu0
      %v2982 = vadd.f32 %v2749, %v2981
      %2983 = vmatmul.bf16.gmra.mxu0 %v2847
      %v2984 = vpop.f32.mrf.mxu0
      %v2985 = vadd.f32 %v2752, %v2984
      %v2986 = vpop.f32.mrf.mxu0
      %v2987 = vadd.f32 %v2754, %v2986
      %2988 = vmatmul.bf16.gmra.mxu0 %v2848
      %v2989 = vpop.f32.mrf.mxu0
      %v2990 = vadd.f32 %v2757, %v2989
      %v2991 = vpop.f32.mrf.mxu0
      %v2992 = vadd.f32 %v2759, %v2991
      %2993 = vmatmul.bf16.gmra.mxu0 %v2849
      %v2994 = vpop.f32.mrf.mxu0
      %v2995 = vadd.f32 %v2762, %v2994
      %v2996 = vpop.f32.mrf.mxu0
      %v2997 = vadd.f32 %v2764, %v2996
      %2998 = vmatmul.bf16.gmra.mxu0 %v2850
      %v2999 = vpop.f32.mrf.mxu0
      %v3000 = vadd.f32 %v2767, %v2999
      %v3001 = vpop.f32.mrf.mxu0
      %v3002 = vadd.f32 %v2769, %v3001
      %3003 = vdwg.mxu0
      %s3004 = scalar_lea.vmem [#allocation2], 32
      %v3005 = vld [vmem:[%s3004] sm:$0xf]
      %v3006 = vld [vmem:[%s3004 + $0x4] sm:$0xf]
      %v3007 = vld [vmem:[%s3004 + $0x8] sm:$0xf]
      %v3008 = vld [vmem:[%s3004 + $0xc] sm:$0xf]
      %v3009 = vld [vmem:[%s3004 + $0x10] sm:$0xf]
      %v3010 = vld [vmem:[%s3004 + $0x14] sm:$0xf]
      %v3011 = vld [vmem:[%s3004 + $0x18] sm:$0xf]
      %v3012 = vld [vmem:[%s3004 + $0x1c] sm:$0xf]
      %v3013 = vld [vmem:[%s3004 + $0x20] sm:$0xf]
      %v3014 = vld [vmem:[%s3004 + $0x24] sm:$0xf]
      %v3015 = vld [vmem:[%s3004 + $0x28] sm:$0xf]
      %v3016 = vld [vmem:[%s3004 + $0x2c] sm:$0xf]
      %v3017 = vld [vmem:[%s3004 + $0x30] sm:$0xf]
      %v3018 = vld [vmem:[%s3004 + $0x34] sm:$0xf]
      %v3019 = vld [vmem:[%s3004 + $0x38] sm:$0xf]
      %v3020 = vld [vmem:[%s3004 + $0x3c] sm:$0xf]
      %v3021 = vld [vmem:[%s3004 + $0x40] sm:$0xf]
      %v3022 = vld [vmem:[%s3004 + $0x44] sm:$0xf]
      %v3023 = vld [vmem:[%s3004 + $0x48] sm:$0xf]
      %v3024 = vld [vmem:[%s3004 + $0x4c] sm:$0xf]
      %v3025 = vld [vmem:[%s3004 + $0x50] sm:$0xf]
      %v3026 = vld [vmem:[%s3004 + $0x54] sm:$0xf]
      %v3027 = vld [vmem:[%s3004 + $0x58] sm:$0xf]
      %v3028 = vld [vmem:[%s3004 + $0x5c] sm:$0xf]
      %v3029 = vld [vmem:[%s3004 + $0x60] sm:$0xf]
      %v3030 = vld [vmem:[%s3004 + $0x64] sm:$0xf]
      %v3031 = vld [vmem:[%s3004 + $0x68] sm:$0xf]
      %v3032 = vld [vmem:[%s3004 + $0x6c] sm:$0xf]
      %v3033 = vld [vmem:[%s3004 + $0x70] sm:$0xf]
      %v3034 = vld [vmem:[%s3004 + $0x74] sm:$0xf]
      %v3035 = vld [vmem:[%s3004 + $0x78] sm:$0xf]
      %v3036 = vld [vmem:[%s3004 + $0x7c] sm:$0xf]
      %s3037 = scalar_lea.vmem %s1, 512
      %v3038 = vld [vmem:[%s3037] sm:$0xf]
      %v3039 = vld [vmem:[%s3037 + $0x4] sm:$0xf]
      %v3040 = vld [vmem:[%s3037 + $0x8] sm:$0xf]
      %v3041 = vld [vmem:[%s3037 + $0xc] sm:$0xf]
      %v3042 = vld [vmem:[%s3037 + $0x10] sm:$0xf]
      %v3043 = vld [vmem:[%s3037 + $0x14] sm:$0xf]
      %v3044 = vld [vmem:[%s3037 + $0x18] sm:$0xf]
      %v3045 = vld [vmem:[%s3037 + $0x1c] sm:$0xf]
      %v3046 = vld [vmem:[%s3037 + $0x20] sm:$0xf]
      %v3047 = vld [vmem:[%s3037 + $0x24] sm:$0xf]
      %v3048 = vld [vmem:[%s3037 + $0x28] sm:$0xf]
      %v3049 = vld [vmem:[%s3037 + $0x2c] sm:$0xf]
      %v3050 = vld [vmem:[%s3037 + $0x30] sm:$0xf]
      %v3051 = vld [vmem:[%s3037 + $0x34] sm:$0xf]
      %v3052 = vld [vmem:[%s3037 + $0x38] sm:$0xf]
      %v3053 = vld [vmem:[%s3037 + $0x3c] sm:$0xf]
      %v3086 = vunpack.c.l.b16 %v3005
      %v3087 = vunpack.c.l.b16 %v3006
      %v3088 = vunpack.c.l.b16 %v3007
      %v3089 = vunpack.c.l.b16 %v3008
      %v3090 = vunpack.c.l.b16 %v3009
      %v3091 = vunpack.c.l.b16 %v3010
      %v3092 = vunpack.c.l.b16 %v3011
      %v3093 = vunpack.c.l.b16 %v3012
      %v3094 = vunpack.c.l.b16 %v3013
      %v3095 = vunpack.c.l.b16 %v3014
      %v3096 = vunpack.c.l.b16 %v3015
      %v3097 = vunpack.c.l.b16 %v3016
      %v3098 = vunpack.c.l.b16 %v3017
      %v3099 = vunpack.c.l.b16 %v3018
      %v3100 = vunpack.c.l.b16 %v3019
      %v3101 = vunpack.c.l.b16 %v3020
      %v3102 = vunpack.c.l.b16 %v3021
      %v3103 = vunpack.c.l.b16 %v3022
      %v3104 = vunpack.c.l.b16 %v3023
      %v3105 = vunpack.c.l.b16 %v3024
      %v3106 = vunpack.c.l.b16 %v3025
      %v3107 = vunpack.c.l.b16 %v3026
      %v3108 = vunpack.c.l.b16 %v3027
      %v3109 = vunpack.c.l.b16 %v3028
      %v3110 = vunpack.c.l.b16 %v3029
      %v3111 = vunpack.c.l.b16 %v3030
      %v3112 = vunpack.c.l.b16 %v3031
      %v3113 = vunpack.c.l.b16 %v3032
      %v3114 = vunpack.c.l.b16 %v3033
      %v3115 = vunpack.c.l.b16 %v3034
      %v3116 = vunpack.c.l.b16 %v3035
      %v3117 = vunpack.c.l.b16 %v3036
      %v3118 = vpack.c.b16 %v3087, %v3086
      %v3119 = vpack.c.b16 %v3089, %v3088
      %v3120 = vpack.c.b16 %v3091, %v3090
      %v3121 = vpack.c.b16 %v3093, %v3092
      %v3122 = vpack.c.b16 %v3095, %v3094
      %v3123 = vpack.c.b16 %v3097, %v3096
      %v3124 = vpack.c.b16 %v3099, %v3098
      %v3125 = vpack.c.b16 %v3101, %v3100
      %v3126 = vpack.c.b16 %v3103, %v3102
      %v3127 = vpack.c.b16 %v3105, %v3104
      %v3128 = vpack.c.b16 %v3107, %v3106
      %v3129 = vpack.c.b16 %v3109, %v3108
      %v3130 = vpack.c.b16 %v3111, %v3110
      %v3131 = vpack.c.b16 %v3113, %v3112
      %v3132 = vpack.c.b16 %v3115, %v3114
      %v3133 = vpack.c.b16 %v3117, %v3116
      %v3166 = vunpack.c.l.b16 %v3038
      %v3167 = vunpack.c.l.b16 %v3039
      %v3168 = vunpack.c.l.b16 %v3040
      %v3169 = vunpack.c.l.b16 %v3041
      %v3170 = vunpack.c.l.b16 %v3042
      %v3171 = vunpack.c.l.b16 %v3043
      %v3172 = vunpack.c.l.b16 %v3044
      %v3173 = vunpack.c.l.b16 %v3045
      %v3174 = vunpack.c.l.b16 %v3046
      %v3175 = vunpack.c.l.b16 %v3047
      %v3176 = vunpack.c.l.b16 %v3048
      %v3177 = vunpack.c.l.b16 %v3049
      %v3178 = vunpack.c.l.b16 %v3050
      %v3179 = vunpack.c.l.b16 %v3051
      %v3180 = vunpack.c.l.b16 %v3052
      %v3181 = vunpack.c.l.b16 %v3053
      %v3182 = vpack.c.b16 %v3167, %v3166
      %v3183 = vpack.c.b16 %v3169, %v3168
      %v3184 = vpack.c.b16 %v3171, %v3170
      %v3185 = vpack.c.b16 %v3173, %v3172
      %v3186 = vpack.c.b16 %v3175, %v3174
      %v3187 = vpack.c.b16 %v3177, %v3176
      %v3188 = vpack.c.b16 %v3179, %v3178
      %v3189 = vpack.c.b16 %v3181, %v3180
      %3198 = vmatpush.bf16.msra.mxu0 %v3189
      %3199 = vmatpush.bf16.msra.mxu0 %v3188
      %3200 = vmatpush.bf16.msra.mxu0 %v3187
      %3201 = vmatpush.bf16.msra.mxu0 %v3186
      %3202 = vmatpush.bf16.msra.mxu0 %v3185
      %3203 = vmatpush.bf16.msra.mxu0 %v3184
      %3204 = vmatpush.bf16.msra.mxu0 %v3183
      %3205 = vmatpush.bf16.msra.mxu0 %v3182
      %3206 = vmatmul.bf16.gmra.mxu0 %v3118
      %v3207 = vpop.f32.mrf.mxu0
      %v3208 = vadd.f32 0.0, %v3207
      %v3209 = vpop.f32.mrf.mxu0
      %v3210 = vadd.f32 0.0, %v3209
      %3211 = vmatmul.bf16.gmra.mxu0 %v3119
      %v3212 = vpop.f32.mrf.mxu0
      %v3213 = vadd.f32 0.0, %v3212
      %v3214 = vpop.f32.mrf.mxu0
      %v3215 = vadd.f32 0.0, %v3214
      %3216 = vmatmul.bf16.gmra.mxu0 %v3120
      %v3217 = vpop.f32.mrf.mxu0
      %v3218 = vadd.f32 0.0, %v3217
      %v3219 = vpop.f32.mrf.mxu0
      %v3220 = vadd.f32 0.0, %v3219
      %3221 = vmatmul.bf16.gmra.mxu0 %v3121
      %v3222 = vpop.f32.mrf.mxu0
      %v3223 = vadd.f32 0.0, %v3222
      %v3224 = vpop.f32.mrf.mxu0
      %v3225 = vadd.f32 0.0, %v3224
      %3226 = vmatmul.bf16.gmra.mxu0 %v3122
      %v3227 = vpop.f32.mrf.mxu0
      %v3228 = vadd.f32 0.0, %v3227
      %v3229 = vpop.f32.mrf.mxu0
      %v3230 = vadd.f32 0.0, %v3229
      %3231 = vmatmul.bf16.gmra.mxu0 %v3123
      %v3232 = vpop.f32.mrf.mxu0
      %v3233 = vadd.f32 0.0, %v3232
      %v3234 = vpop.f32.mrf.mxu0
      %v3235 = vadd.f32 0.0, %v3234
      %3236 = vmatmul.bf16.gmra.mxu0 %v3124
      %v3237 = vpop.f32.mrf.mxu0
      %v3238 = vadd.f32 0.0, %v3237
      %v3239 = vpop.f32.mrf.mxu0
      %v3240 = vadd.f32 0.0, %v3239
      %3241 = vmatmul.bf16.gmra.mxu0 %v3125
      %v3242 = vpop.f32.mrf.mxu0
      %v3243 = vadd.f32 0.0, %v3242
      %v3244 = vpop.f32.mrf.mxu0
      %v3245 = vadd.f32 0.0, %v3244
      %3246 = vmatmul.bf16.gmra.mxu0 %v3126
      %v3247 = vpop.f32.mrf.mxu0
      %v3248 = vadd.f32 0.0, %v3247
      %v3249 = vpop.f32.mrf.mxu0
      %v3250 = vadd.f32 0.0, %v3249
      %3251 = vmatmul.bf16.gmra.mxu0 %v3127
      %v3252 = vpop.f32.mrf.mxu0
      %v3253 = vadd.f32 0.0, %v3252
      %v3254 = vpop.f32.mrf.mxu0
      %v3255 = vadd.f32 0.0, %v3254
      %3256 = vmatmul.bf16.gmra.mxu0 %v3128
      %v3257 = vpop.f32.mrf.mxu0
      %v3258 = vadd.f32 0.0, %v3257
      %v3259 = vpop.f32.mrf.mxu0
      %v3260 = vadd.f32 0.0, %v3259
      %3261 = vmatmul.bf16.gmra.mxu0 %v3129
      %v3262 = vpop.f32.mrf.mxu0
      %v3263 = vadd.f32 0.0, %v3262
      %v3264 = vpop.f32.mrf.mxu0
      %v3265 = vadd.f32 0.0, %v3264
      %3266 = vmatmul.bf16.gmra.mxu0 %v3130
      %v3267 = vpop.f32.mrf.mxu0
      %v3268 = vadd.f32 0.0, %v3267
      %v3269 = vpop.f32.mrf.mxu0
      %v3270 = vadd.f32 0.0, %v3269
      %3271 = vmatmul.bf16.gmra.mxu0 %v3131
      %v3272 = vpop.f32.mrf.mxu0
      %v3273 = vadd.f32 0.0, %v3272
      %v3274 = vpop.f32.mrf.mxu0
      %v3275 = vadd.f32 0.0, %v3274
      %3276 = vmatmul.bf16.gmra.mxu0 %v3132
      %v3277 = vpop.f32.mrf.mxu0
      %v3278 = vadd.f32 0.0, %v3277
      %v3279 = vpop.f32.mrf.mxu0
      %v3280 = vadd.f32 0.0, %v3279
      %3281 = vmatmul.bf16.gmra.mxu0 %v3133
      %v3282 = vpop.f32.mrf.mxu0
      %v3283 = vadd.f32 0.0, %v3282
      %v3284 = vpop.f32.mrf.mxu0
      %v3285 = vadd.f32 0.0, %v3284
      %3286 = vdwg.mxu0
      %v3287 = vadd.f32 %v2925, %v3208
      %v3288 = vadd.f32 %v2927, %v3210
      %v3289 = vadd.f32 %v2930, %v3213
      %v3290 = vadd.f32 %v2932, %v3215
      %v3291 = vadd.f32 %v2935, %v3218
      %v3292 = vadd.f32 %v2937, %v3220
      %v3293 = vadd.f32 %v2940, %v3223
      %v3294 = vadd.f32 %v2942, %v3225
      %v3295 = vadd.f32 %v2945, %v3228
      %v3296 = vadd.f32 %v2947, %v3230
      %v3297 = vadd.f32 %v2950, %v3233
      %v3298 = vadd.f32 %v2952, %v3235
      %v3299 = vadd.f32 %v2955, %v3238
      %v3300 = vadd.f32 %v2957, %v3240
      %v3301 = vadd.f32 %v2960, %v3243
      %v3302 = vadd.f32 %v2962, %v3245
      %v3303 = vadd.f32 %v2965, %v3248
      %v3304 = vadd.f32 %v2967, %v3250
      %v3305 = vadd.f32 %v2970, %v3253
      %v3306 = vadd.f32 %v2972, %v3255
      %v3307 = vadd.f32 %v2975, %v3258
      %v3308 = vadd.f32 %v2977, %v3260
      %v3309 = vadd.f32 %v2980, %v3263
      %v3310 = vadd.f32 %v2982, %v3265
      %v3311 = vadd.f32 %v2985, %v3268
      %v3312 = vadd.f32 %v2987, %v3270
      %v3313 = vadd.f32 %v2990, %v3273
      %v3314 = vadd.f32 %v2992, %v3275
      %v3315 = vadd.f32 %v2995, %v3278
      %v3316 = vadd.f32 %v2997, %v3280
      %v3317 = vadd.f32 %v3000, %v3283
      %v3318 = vadd.f32 %v3002, %v3285
      %v3319 = vld [vmem:[%s2 + $0x2] sm:$0x1]
      %v3320 = vperm.slane %v3319, 0
      %v3321 = vadd.f32 %v3287, %v3320
      %v3322 = vadd.f32 %v3288, %v3320
      %v3323 = vadd.f32 %v3289, %v3320
      %v3324 = vadd.f32 %v3290, %v3320
      %v3325 = vadd.f32 %v3291, %v3320
      %v3326 = vadd.f32 %v3292, %v3320
      %v3327 = vadd.f32 %v3293, %v3320
      %v3328 = vadd.f32 %v3294, %v3320
      %v3329 = vadd.f32 %v3295, %v3320
      %v3330 = vadd.f32 %v3296, %v3320
      %v3331 = vadd.f32 %v3297, %v3320
      %v3332 = vadd.f32 %v3298, %v3320
      %v3333 = vadd.f32 %v3299, %v3320
      %v3334 = vadd.f32 %v3300, %v3320
      %v3335 = vadd.f32 %v3301, %v3320
      %v3336 = vadd.f32 %v3302, %v3320
      %v3337 = vadd.f32 %v3303, %v3320
      %v3338 = vadd.f32 %v3304, %v3320
      %v3339 = vadd.f32 %v3305, %v3320
      %v3340 = vadd.f32 %v3306, %v3320
      %v3341 = vadd.f32 %v3307, %v3320
      %v3342 = vadd.f32 %v3308, %v3320
      %v3343 = vadd.f32 %v3309, %v3320
      %v3344 = vadd.f32 %v3310, %v3320
      %v3345 = vadd.f32 %v3311, %v3320
      %v3346 = vadd.f32 %v3312, %v3320
      %v3347 = vadd.f32 %v3313, %v3320
      %v3348 = vadd.f32 %v3314, %v3320
      %v3349 = vadd.f32 %v3315, %v3320
      %v3350 = vadd.f32 %v3316, %v3320
      %v3351 = vadd.f32 %v3317, %v3320
      %v3352 = vadd.f32 %v3318, %v3320
      %v3353 = vmax.f32 %v3321, 0.0
      %v3354 = vmax.f32 %v3322, 0.0
      %v3355 = vmax.f32 %v3323, 0.0
      %v3356 = vmax.f32 %v3324, 0.0
      %v3357 = vmax.f32 %v3325, 0.0
      %v3358 = vmax.f32 %v3326, 0.0
      %v3359 = vmax.f32 %v3327, 0.0
      %v3360 = vmax.f32 %v3328, 0.0
      %v3361 = vmax.f32 %v3329, 0.0
      %v3362 = vmax.f32 %v3330, 0.0
      %v3363 = vmax.f32 %v3331, 0.0
      %v3364 = vmax.f32 %v3332, 0.0
      %v3365 = vmax.f32 %v3333, 0.0
      %v3366 = vmax.f32 %v3334, 0.0
      %v3367 = vmax.f32 %v3335, 0.0
      %v3368 = vmax.f32 %v3336, 0.0
      %v3369 = vmax.f32 %v3337, 0.0
      %v3370 = vmax.f32 %v3338, 0.0
      %v3371 = vmax.f32 %v3339, 0.0
      %v3372 = vmax.f32 %v3340, 0.0
      %v3373 = vmax.f32 %v3341, 0.0
      %v3374 = vmax.f32 %v3342, 0.0
      %v3375 = vmax.f32 %v3343, 0.0
      %v3376 = vmax.f32 %v3344, 0.0
      %v3377 = vmax.f32 %v3345, 0.0
      %v3378 = vmax.f32 %v3346, 0.0
      %v3379 = vmax.f32 %v3347, 0.0
      %v3380 = vmax.f32 %v3348, 0.0
      %v3381 = vmax.f32 %v3349, 0.0
      %v3382 = vmax.f32 %v3350, 0.0
      %v3383 = vmax.f32 %v3351, 0.0
      %v3384 = vmax.f32 %v3352, 0.0
      %v3385 = vpack.c.bf16 %v3353, %v3353
      %v3386 = vpack.c.bf16 %v3354, %v3354
      %v3387 = vpack.c.bf16 %v3355, %v3355
      %v3388 = vpack.c.bf16 %v3356, %v3356
      %v3389 = vpack.c.bf16 %v3357, %v3357
      %v3390 = vpack.c.bf16 %v3358, %v3358
      %v3391 = vpack.c.bf16 %v3359, %v3359
      %v3392 = vpack.c.bf16 %v3360, %v3360
      %v3393 = vpack.c.bf16 %v3361, %v3361
      %v3394 = vpack.c.bf16 %v3362, %v3362
      %v3395 = vpack.c.bf16 %v3363, %v3363
      %v3396 = vpack.c.bf16 %v3364, %v3364
      %v3397 = vpack.c.bf16 %v3365, %v3365
      %v3398 = vpack.c.bf16 %v3366, %v3366
      %v3399 = vpack.c.bf16 %v3367, %v3367
      %v3400 = vpack.c.bf16 %v3368, %v3368
      %v3401 = vpack.c.bf16 %v3369, %v3369
      %v3402 = vpack.c.bf16 %v3370, %v3370
      %v3403 = vpack.c.bf16 %v3371, %v3371
      %v3404 = vpack.c.bf16 %v3372, %v3372
      %v3405 = vpack.c.bf16 %v3373, %v3373
      %v3406 = vpack.c.bf16 %v3374, %v3374
      %v3407 = vpack.c.bf16 %v3375, %v3375
      %v3408 = vpack.c.bf16 %v3376, %v3376
      %v3409 = vpack.c.bf16 %v3377, %v3377
      %v3410 = vpack.c.bf16 %v3378, %v3378
      %v3411 = vpack.c.bf16 %v3379, %v3379
      %v3412 = vpack.c.bf16 %v3380, %v3380
      %v3413 = vpack.c.bf16 %v3381, %v3381
      %v3414 = vpack.c.bf16 %v3382, %v3382
      %v3415 = vpack.c.bf16 %v3383, %v3383
      %v3416 = vpack.c.bf16 %v3384, %v3384
      %s3417 = scalar_lea.vmem %s1, 640
      %v3418 = vld [vmem:[%s3417] sm:$0xf]
      %v3419 = vld [vmem:[%s3417 + $0x4] sm:$0xf]
      %v3420 = vld [vmem:[%s3417 + $0x8] sm:$0xf]
      %v3421 = vld [vmem:[%s3417 + $0xc] sm:$0xf]
      %v3422 = vld [vmem:[%s3417 + $0x10] sm:$0xf]
      %v3423 = vld [vmem:[%s3417 + $0x14] sm:$0xf]
      %v3424 = vld [vmem:[%s3417 + $0x18] sm:$0xf]
      %v3425 = vld [vmem:[%s3417 + $0x1c] sm:$0xf]
      %v3426 = vld [vmem:[%s3417 + $0x20] sm:$0xf]
      %v3427 = vld [vmem:[%s3417 + $0x24] sm:$0xf]
      %v3428 = vld [vmem:[%s3417 + $0x28] sm:$0xf]
      %v3429 = vld [vmem:[%s3417 + $0x2c] sm:$0xf]
      %v3430 = vld [vmem:[%s3417 + $0x30] sm:$0xf]
      %v3431 = vld [vmem:[%s3417 + $0x34] sm:$0xf]
      %v3432 = vld [vmem:[%s3417 + $0x38] sm:$0xf]
      %v3433 = vld [vmem:[%s3417 + $0x3c] sm:$0xf]
      %vm3434 = vcmp.ge.s32.totalorder %v182, 2
      %vm3435 = vcmp.ge.s32.totalorder %v183, 2
      %v3436 = vrot.slane %v3353, 6
      %v3437 = vrot.slane %v3355, 6
      %v3438 = vrot.slane %v3357, 6
      %v3439 = vrot.slane %v3359, 6
      %v3440 = vrot.slane %v3361, 6
      %v3441 = vrot.slane %v3363, 6
      %v3442 = vrot.slane %v3365, 6
      %v3443 = vrot.slane %v3367, 6
      %v3444 = vrot.slane %v3369, 6
      %v3445 = vrot.slane %v3371, 6
      %v3446 = vrot.slane %v3373, 6
      %v3447 = vrot.slane %v3375, 6
      %v3448 = vrot.slane %v3377, 6
      %v3449 = vrot.slane %v3379, 6
      %v3450 = vrot.slane %v3381, 6
      %v3451 = vrot.slane %v3383, 6
      %v3452 = vrot.slane %v3354, 6
      %v3453 = vrot.slane %v3356, 6
      %v3454 = vrot.slane %v3358, 6
      %v3455 = vrot.slane %v3360, 6
      %v3456 = vrot.slane %v3362, 6
      %v3457 = vrot.slane %v3364, 6
      %v3458 = vrot.slane %v3366, 6
      %v3459 = vrot.slane %v3368, 6
      %v3460 = vrot.slane %v3370, 6
      %v3461 = vrot.slane %v3372, 6
      %v3462 = vrot.slane %v3374, 6
      %v3463 = vrot.slane %v3376, 6
      %v3464 = vrot.slane %v3378, 6
      %v3465 = vrot.slane %v3380, 6
      %v3466 = vrot.slane %v3382, 6
      %v3467 = vrot.slane %v3384, 6
      %vm3468 = vcmp.lt.s32.totalorder %v182, 2
      %v3469 = vsel %vm3468, %v3436, %v3452
      %v3470 = vsel %vm3468, %v3437, %v3453
      %v3471 = vsel %vm3468, %v3438, %v3454
      %v3472 = vsel %vm3468, %v3439, %v3455
      %v3473 = vsel %vm3468, %v3440, %v3456
      %v3474 = vsel %vm3468, %v3441, %v3457
      %v3475 = vsel %vm3468, %v3442, %v3458
      %v3476 = vsel %vm3468, %v3443, %v3459
      %v3477 = vsel %vm3468, %v3444, %v3460
      %v3478 = vsel %vm3468, %v3445, %v3461
      %v3479 = vsel %vm3468, %v3446, %v3462
      %v3480 = vsel %vm3468, %v3447, %v3463
      %v3481 = vsel %vm3468, %v3448, %v3464
      %v3482 = vsel %vm3468, %v3449, %v3465
      %v3483 = vsel %vm3468, %v3450, %v3466
      %v3484 = vsel %vm3468, %v3451, %v3467
      %v3485 = vsel %vm3468, %v3452, %v3436
      %v3486 = vsel %vm3468, %v3453, %v3437
      %v3487 = vsel %vm3468, %v3454, %v3438
      %v3488 = vsel %vm3468, %v3455, %v3439
      %v3489 = vsel %vm3468, %v3456, %v3440
      %v3490 = vsel %vm3468, %v3457, %v3441
      %v3491 = vsel %vm3468, %v3458, %v3442
      %v3492 = vsel %vm3468, %v3459, %v3443
      %v3493 = vsel %vm3468, %v3460, %v3444
      %v3494 = vsel %vm3468, %v3461, %v3445
      %v3495 = vsel %vm3468, %v3462, %v3446
      %v3496 = vsel %vm3468, %v3463, %v3447
      %v3497 = vsel %vm3468, %v3464, %v3448
      %v3498 = vsel %vm3468, %v3465, %v3449
      %v3499 = vsel %vm3468, %v3466, %v3450
      %v3500 = vsel %vm3468, %v3467, %v3451
      %v3501 = vsel %vm3434, 1, 0
      %v3502 = vsel %vm3435, 1, 0
      %vm3503 = vcmp.eq.s32.totalorder %v3501, 1
      %vm3504 = vcmp.eq.s32.totalorder %v3502, 1
      %v3505 = vsel %vm3503, %v3485, 0.0
      %v3506 = vsel %vm3504, %v3469, 0.0
      %v3507 = vsel %vm3503, %v3486, 0.0
      %v3508 = vsel %vm3504, %v3470, 0.0
      %v3509 = vsel %vm3503, %v3487, 0.0
      %v3510 = vsel %vm3504, %v3471, 0.0
      %v3511 = vsel %vm3503, %v3488, 0.0
      %v3512 = vsel %vm3504, %v3472, 0.0
      %v3513 = vsel %vm3503, %v3489, 0.0
      %v3514 = vsel %vm3504, %v3473, 0.0
      %v3515 = vsel %vm3503, %v3490, 0.0
      %v3516 = vsel %vm3504, %v3474, 0.0
      %v3517 = vsel %vm3503, %v3491, 0.0
      %v3518 = vsel %vm3504, %v3475, 0.0
      %v3519 = vsel %vm3503, %v3492, 0.0
      %v3520 = vsel %vm3504, %v3476, 0.0
      %v3521 = vsel %vm3503, %v3493, 0.0
      %v3522 = vsel %vm3504, %v3477, 0.0
      %v3523 = vsel %vm3503, %v3494, 0.0
      %v3524 = vsel %vm3504, %v3478, 0.0
      %v3525 = vsel %vm3503, %v3495, 0.0
      %v3526 = vsel %vm3504, %v3479, 0.0
      %v3527 = vsel %vm3503, %v3496, 0.0
      %v3528 = vsel %vm3504, %v3480, 0.0
      %v3529 = vsel %vm3503, %v3497, 0.0
      %v3530 = vsel %vm3504, %v3481, 0.0
      %v3531 = vsel %vm3503, %v3498, 0.0
      %v3532 = vsel %vm3504, %v3482, 0.0
      %v3533 = vsel %vm3503, %v3499, 0.0
      %v3534 = vsel %vm3504, %v3483, 0.0
      %v3535 = vsel %vm3503, %v3500, 0.0
      %v3536 = vsel %vm3504, %v3484, 0.0
      %v3537 = vpack.c.bf16 %v3505, %v3505
      %v3538 = vpack.c.bf16 %v3506, %v3506
      %v3539 = vpack.c.bf16 %v3507, %v3507
      %v3540 = vpack.c.bf16 %v3508, %v3508
      %v3541 = vpack.c.bf16 %v3509, %v3509
      %v3542 = vpack.c.bf16 %v3510, %v3510
      %v3543 = vpack.c.bf16 %v3511, %v3511
      %v3544 = vpack.c.bf16 %v3512, %v3512
      %v3545 = vpack.c.bf16 %v3513, %v3513
      %v3546 = vpack.c.bf16 %v3514, %v3514
      %v3547 = vpack.c.bf16 %v3515, %v3515
      %v3548 = vpack.c.bf16 %v3516, %v3516
      %v3549 = vpack.c.bf16 %v3517, %v3517
      %v3550 = vpack.c.bf16 %v3518, %v3518
      %v3551 = vpack.c.bf16 %v3519, %v3519
      %v3552 = vpack.c.bf16 %v3520, %v3520
      %v3553 = vpack.c.bf16 %v3521, %v3521
      %v3554 = vpack.c.bf16 %v3522, %v3522
      %v3555 = vpack.c.bf16 %v3523, %v3523
      %v3556 = vpack.c.bf16 %v3524, %v3524
      %v3557 = vpack.c.bf16 %v3525, %v3525
      %v3558 = vpack.c.bf16 %v3526, %v3526
      %v3559 = vpack.c.bf16 %v3527, %v3527
      %v3560 = vpack.c.bf16 %v3528, %v3528
      %v3561 = vpack.c.bf16 %v3529, %v3529
      %v3562 = vpack.c.bf16 %v3530, %v3530
      %v3563 = vpack.c.bf16 %v3531, %v3531
      %v3564 = vpack.c.bf16 %v3532, %v3532
      %v3565 = vpack.c.bf16 %v3533, %v3533
      %v3566 = vpack.c.bf16 %v3534, %v3534
      %v3567 = vpack.c.bf16 %v3535, %v3535
      %v3568 = vpack.c.bf16 %v3536, %v3536
      %s3569 = scalar_lea.vmem %s1, 576
      %v3570 = vld [vmem:[%s3569] sm:$0xf]
      %v3571 = vld [vmem:[%s3569 + $0x4] sm:$0xf]
      %v3572 = vld [vmem:[%s3569 + $0x8] sm:$0xf]
      %v3573 = vld [vmem:[%s3569 + $0xc] sm:$0xf]
      %v3574 = vld [vmem:[%s3569 + $0x10] sm:$0xf]
      %v3575 = vld [vmem:[%s3569 + $0x14] sm:$0xf]
      %v3576 = vld [vmem:[%s3569 + $0x18] sm:$0xf]
      %v3577 = vld [vmem:[%s3569 + $0x1c] sm:$0xf]
      %v3578 = vld [vmem:[%s3569 + $0x20] sm:$0xf]
      %v3579 = vld [vmem:[%s3569 + $0x24] sm:$0xf]
      %v3580 = vld [vmem:[%s3569 + $0x28] sm:$0xf]
      %v3581 = vld [vmem:[%s3569 + $0x2c] sm:$0xf]
      %v3582 = vld [vmem:[%s3569 + $0x30] sm:$0xf]
      %v3583 = vld [vmem:[%s3569 + $0x34] sm:$0xf]
      %v3584 = vld [vmem:[%s3569 + $0x38] sm:$0xf]
      %v3585 = vld [vmem:[%s3569 + $0x3c] sm:$0xf]
      %v3618 = vunpack.c.l.b16 %v3537
      %v3619 = vunpack.c.l.b16 %v3538
      %v3620 = vunpack.c.l.b16 %v3539
      %v3621 = vunpack.c.l.b16 %v3540
      %v3622 = vunpack.c.l.b16 %v3541
      %v3623 = vunpack.c.l.b16 %v3542
      %v3624 = vunpack.c.l.b16 %v3543
      %v3625 = vunpack.c.l.b16 %v3544
      %v3626 = vunpack.c.l.b16 %v3545
      %v3627 = vunpack.c.l.b16 %v3546
      %v3628 = vunpack.c.l.b16 %v3547
      %v3629 = vunpack.c.l.b16 %v3548
      %v3630 = vunpack.c.l.b16 %v3549
      %v3631 = vunpack.c.l.b16 %v3550
      %v3632 = vunpack.c.l.b16 %v3551
      %v3633 = vunpack.c.l.b16 %v3552
      %v3634 = vunpack.c.l.b16 %v3553
      %v3635 = vunpack.c.l.b16 %v3554
      %v3636 = vunpack.c.l.b16 %v3555
      %v3637 = vunpack.c.l.b16 %v3556
      %v3638 = vunpack.c.l.b16 %v3557
      %v3639 = vunpack.c.l.b16 %v3558
      %v3640 = vunpack.c.l.b16 %v3559
      %v3641 = vunpack.c.l.b16 %v3560
      %v3642 = vunpack.c.l.b16 %v3561
      %v3643 = vunpack.c.l.b16 %v3562
      %v3644 = vunpack.c.l.b16 %v3563
      %v3645 = vunpack.c.l.b16 %v3564
      %v3646 = vunpack.c.l.b16 %v3565
      %v3647 = vunpack.c.l.b16 %v3566
      %v3648 = vunpack.c.l.b16 %v3567
      %v3649 = vunpack.c.l.b16 %v3568
      %v3650 = vpack.c.b16 %v3619, %v3618
      %v3651 = vpack.c.b16 %v3621, %v3620
      %v3652 = vpack.c.b16 %v3623, %v3622
      %v3653 = vpack.c.b16 %v3625, %v3624
      %v3654 = vpack.c.b16 %v3627, %v3626
      %v3655 = vpack.c.b16 %v3629, %v3628
      %v3656 = vpack.c.b16 %v3631, %v3630
      %v3657 = vpack.c.b16 %v3633, %v3632
      %v3658 = vpack.c.b16 %v3635, %v3634
      %v3659 = vpack.c.b16 %v3637, %v3636
      %v3660 = vpack.c.b16 %v3639, %v3638
      %v3661 = vpack.c.b16 %v3641, %v3640
      %v3662 = vpack.c.b16 %v3643, %v3642
      %v3663 = vpack.c.b16 %v3645, %v3644
      %v3664 = vpack.c.b16 %v3647, %v3646
      %v3665 = vpack.c.b16 %v3649, %v3648
      %v3698 = vunpack.c.l.b16 %v3570
      %v3699 = vunpack.c.l.b16 %v3571
      %v3700 = vunpack.c.l.b16 %v3572
      %v3701 = vunpack.c.l.b16 %v3573
      %v3702 = vunpack.c.l.b16 %v3574
      %v3703 = vunpack.c.l.b16 %v3575
      %v3704 = vunpack.c.l.b16 %v3576
      %v3705 = vunpack.c.l.b16 %v3577
      %v3706 = vunpack.c.l.b16 %v3578
      %v3707 = vunpack.c.l.b16 %v3579
      %v3708 = vunpack.c.l.b16 %v3580
      %v3709 = vunpack.c.l.b16 %v3581
      %v3710 = vunpack.c.l.b16 %v3582
      %v3711 = vunpack.c.l.b16 %v3583
      %v3712 = vunpack.c.l.b16 %v3584
      %v3713 = vunpack.c.l.b16 %v3585
      %v3714 = vpack.c.b16 %v3699, %v3698
      %v3715 = vpack.c.b16 %v3701, %v3700
      %v3716 = vpack.c.b16 %v3703, %v3702
      %v3717 = vpack.c.b16 %v3705, %v3704
      %v3718 = vpack.c.b16 %v3707, %v3706
      %v3719 = vpack.c.b16 %v3709, %v3708
      %v3720 = vpack.c.b16 %v3711, %v3710
      %v3721 = vpack.c.b16 %v3713, %v3712
      %3730 = vmatpush.bf16.msra.mxu0 %v3721
      %3731 = vmatpush.bf16.msra.mxu0 %v3720
      %3732 = vmatpush.bf16.msra.mxu0 %v3719
      %3733 = vmatpush.bf16.msra.mxu0 %v3718
      %3734 = vmatpush.bf16.msra.mxu0 %v3717
      %3735 = vmatpush.bf16.msra.mxu0 %v3716
      %3736 = vmatpush.bf16.msra.mxu0 %v3715
      %3737 = vmatpush.bf16.msra.mxu0 %v3714
      %3738 = vmatmul.bf16.gmra.mxu0 %v3650
      %v3739 = vpop.f32.mrf.mxu0
      %v3740 = vadd.f32 0.0, %v3739
      %v3741 = vpop.f32.mrf.mxu0
      %v3742 = vadd.f32 0.0, %v3741
      %3743 = vmatmul.bf16.gmra.mxu0 %v3651
      %v3744 = vpop.f32.mrf.mxu0
      %v3745 = vadd.f32 0.0, %v3744
      %v3746 = vpop.f32.mrf.mxu0
      %v3747 = vadd.f32 0.0, %v3746
      %3748 = vmatmul.bf16.gmra.mxu0 %v3652
      %v3749 = vpop.f32.mrf.mxu0
      %v3750 = vadd.f32 0.0, %v3749
      %v3751 = vpop.f32.mrf.mxu0
      %v3752 = vadd.f32 0.0, %v3751
      %3753 = vmatmul.bf16.gmra.mxu0 %v3653
      %v3754 = vpop.f32.mrf.mxu0
      %v3755 = vadd.f32 0.0, %v3754
      %v3756 = vpop.f32.mrf.mxu0
      %v3757 = vadd.f32 0.0, %v3756
      %3758 = vmatmul.bf16.gmra.mxu0 %v3654
      %v3759 = vpop.f32.mrf.mxu0
      %v3760 = vadd.f32 0.0, %v3759
      %v3761 = vpop.f32.mrf.mxu0
      %v3762 = vadd.f32 0.0, %v3761
      %3763 = vmatmul.bf16.gmra.mxu0 %v3655
      %v3764 = vpop.f32.mrf.mxu0
      %v3765 = vadd.f32 0.0, %v3764
      %v3766 = vpop.f32.mrf.mxu0
      %v3767 = vadd.f32 0.0, %v3766
      %3768 = vmatmul.bf16.gmra.mxu0 %v3656
      %v3769 = vpop.f32.mrf.mxu0
      %v3770 = vadd.f32 0.0, %v3769
      %v3771 = vpop.f32.mrf.mxu0
      %v3772 = vadd.f32 0.0, %v3771
      %3773 = vmatmul.bf16.gmra.mxu0 %v3657
      %v3774 = vpop.f32.mrf.mxu0
      %v3775 = vadd.f32 0.0, %v3774
      %v3776 = vpop.f32.mrf.mxu0
      %v3777 = vadd.f32 0.0, %v3776
      %3778 = vmatmul.bf16.gmra.mxu0 %v3658
      %v3779 = vpop.f32.mrf.mxu0
      %v3780 = vadd.f32 0.0, %v3779
      %v3781 = vpop.f32.mrf.mxu0
      %v3782 = vadd.f32 0.0, %v3781
      %3783 = vmatmul.bf16.gmra.mxu0 %v3659
      %v3784 = vpop.f32.mrf.mxu0
      %v3785 = vadd.f32 0.0, %v3784
      %v3786 = vpop.f32.mrf.mxu0
      %v3787 = vadd.f32 0.0, %v3786
      %3788 = vmatmul.bf16.gmra.mxu0 %v3660
      %v3789 = vpop.f32.mrf.mxu0
      %v3790 = vadd.f32 0.0, %v3789
      %v3791 = vpop.f32.mrf.mxu0
      %v3792 = vadd.f32 0.0, %v3791
      %3793 = vmatmul.bf16.gmra.mxu0 %v3661
      %v3794 = vpop.f32.mrf.mxu0
      %v3795 = vadd.f32 0.0, %v3794
      %v3796 = vpop.f32.mrf.mxu0
      %v3797 = vadd.f32 0.0, %v3796
      %3798 = vmatmul.bf16.gmra.mxu0 %v3662
      %v3799 = vpop.f32.mrf.mxu0
      %v3800 = vadd.f32 0.0, %v3799
      %v3801 = vpop.f32.mrf.mxu0
      %v3802 = vadd.f32 0.0, %v3801
      %3803 = vmatmul.bf16.gmra.mxu0 %v3663
      %v3804 = vpop.f32.mrf.mxu0
      %v3805 = vadd.f32 0.0, %v3804
      %v3806 = vpop.f32.mrf.mxu0
      %v3807 = vadd.f32 0.0, %v3806
      %3808 = vmatmul.bf16.gmra.mxu0 %v3664
      %v3809 = vpop.f32.mrf.mxu0
      %v3810 = vadd.f32 0.0, %v3809
      %v3811 = vpop.f32.mrf.mxu0
      %v3812 = vadd.f32 0.0, %v3811
      %3813 = vmatmul.bf16.gmra.mxu0 %v3665
      %v3814 = vpop.f32.mrf.mxu0
      %v3815 = vadd.f32 0.0, %v3814
      %v3816 = vpop.f32.mrf.mxu0
      %v3817 = vadd.f32 0.0, %v3816
      %3818 = vdwg.mxu0
      %v3851 = vunpack.c.l.b16 %v3385
      %v3852 = vunpack.c.l.b16 %v3386
      %v3853 = vunpack.c.l.b16 %v3387
      %v3854 = vunpack.c.l.b16 %v3388
      %v3855 = vunpack.c.l.b16 %v3389
      %v3856 = vunpack.c.l.b16 %v3390
      %v3857 = vunpack.c.l.b16 %v3391
      %v3858 = vunpack.c.l.b16 %v3392
      %v3859 = vunpack.c.l.b16 %v3393
      %v3860 = vunpack.c.l.b16 %v3394
      %v3861 = vunpack.c.l.b16 %v3395
      %v3862 = vunpack.c.l.b16 %v3396
      %v3863 = vunpack.c.l.b16 %v3397
      %v3864 = vunpack.c.l.b16 %v3398
      %v3865 = vunpack.c.l.b16 %v3399
      %v3866 = vunpack.c.l.b16 %v3400
      %v3867 = vunpack.c.l.b16 %v3401
      %v3868 = vunpack.c.l.b16 %v3402
      %v3869 = vunpack.c.l.b16 %v3403
      %v3870 = vunpack.c.l.b16 %v3404
      %v3871 = vunpack.c.l.b16 %v3405
      %v3872 = vunpack.c.l.b16 %v3406
      %v3873 = vunpack.c.l.b16 %v3407
      %v3874 = vunpack.c.l.b16 %v3408
      %v3875 = vunpack.c.l.b16 %v3409
      %v3876 = vunpack.c.l.b16 %v3410
      %v3877 = vunpack.c.l.b16 %v3411
      %v3878 = vunpack.c.l.b16 %v3412
      %v3879 = vunpack.c.l.b16 %v3413
      %v3880 = vunpack.c.l.b16 %v3414
      %v3881 = vunpack.c.l.b16 %v3415
      %v3882 = vunpack.c.l.b16 %v3416
      %v3883 = vpack.c.b16 %v3852, %v3851
      %v3884 = vpack.c.b16 %v3854, %v3853
      %v3885 = vpack.c.b16 %v3856, %v3855
      %v3886 = vpack.c.b16 %v3858, %v3857
      %v3887 = vpack.c.b16 %v3860, %v3859
      %v3888 = vpack.c.b16 %v3862, %v3861
      %v3889 = vpack.c.b16 %v3864, %v3863
      %v3890 = vpack.c.b16 %v3866, %v3865
      %v3891 = vpack.c.b16 %v3868, %v3867
      %v3892 = vpack.c.b16 %v3870, %v3869
      %v3893 = vpack.c.b16 %v3872, %v3871
      %v3894 = vpack.c.b16 %v3874, %v3873
      %v3895 = vpack.c.b16 %v3876, %v3875
      %v3896 = vpack.c.b16 %v3878, %v3877
      %v3897 = vpack.c.b16 %v3880, %v3879
      %v3898 = vpack.c.b16 %v3882, %v3881
      %v3931 = vunpack.c.l.b16 %v3418
      %v3932 = vunpack.c.l.b16 %v3419
      %v3933 = vunpack.c.l.b16 %v3420
      %v3934 = vunpack.c.l.b16 %v3421
      %v3935 = vunpack.c.l.b16 %v3422
      %v3936 = vunpack.c.l.b16 %v3423
      %v3937 = vunpack.c.l.b16 %v3424
      %v3938 = vunpack.c.l.b16 %v3425
      %v3939 = vunpack.c.l.b16 %v3426
      %v3940 = vunpack.c.l.b16 %v3427
      %v3941 = vunpack.c.l.b16 %v3428
      %v3942 = vunpack.c.l.b16 %v3429
      %v3943 = vunpack.c.l.b16 %v3430
      %v3944 = vunpack.c.l.b16 %v3431
      %v3945 = vunpack.c.l.b16 %v3432
      %v3946 = vunpack.c.l.b16 %v3433
      %v3947 = vpack.c.b16 %v3932, %v3931
      %v3948 = vpack.c.b16 %v3934, %v3933
      %v3949 = vpack.c.b16 %v3936, %v3935
      %v3950 = vpack.c.b16 %v3938, %v3937
      %v3951 = vpack.c.b16 %v3940, %v3939
      %v3952 = vpack.c.b16 %v3942, %v3941
      %v3953 = vpack.c.b16 %v3944, %v3943
      %v3954 = vpack.c.b16 %v3946, %v3945
      %3963 = vmatpush.bf16.msra.mxu0 %v3954
      %3964 = vmatpush.bf16.msra.mxu0 %v3953
      %3965 = vmatpush.bf16.msra.mxu0 %v3952
      %3966 = vmatpush.bf16.msra.mxu0 %v3951
      %3967 = vmatpush.bf16.msra.mxu0 %v3950
      %3968 = vmatpush.bf16.msra.mxu0 %v3949
      %3969 = vmatpush.bf16.msra.mxu0 %v3948
      %3970 = vmatpush.bf16.msra.mxu0 %v3947
      %3971 = vmatmul.bf16.gmra.mxu0 %v3883
      %v3972 = vpop.f32.mrf.mxu0
      %v3973 = vadd.f32 %v3740, %v3972
      %v3974 = vpop.f32.mrf.mxu0
      %v3975 = vadd.f32 %v3742, %v3974
      %3976 = vmatmul.bf16.gmra.mxu0 %v3884
      %v3977 = vpop.f32.mrf.mxu0
      %v3978 = vadd.f32 %v3745, %v3977
      %v3979 = vpop.f32.mrf.mxu0
      %v3980 = vadd.f32 %v3747, %v3979
      %3981 = vmatmul.bf16.gmra.mxu0 %v3885
      %v3982 = vpop.f32.mrf.mxu0
      %v3983 = vadd.f32 %v3750, %v3982
      %v3984 = vpop.f32.mrf.mxu0
      %v3985 = vadd.f32 %v3752, %v3984
      %3986 = vmatmul.bf16.gmra.mxu0 %v3886
      %v3987 = vpop.f32.mrf.mxu0
      %v3988 = vadd.f32 %v3755, %v3987
      %v3989 = vpop.f32.mrf.mxu0
      %v3990 = vadd.f32 %v3757, %v3989
      %3991 = vmatmul.bf16.gmra.mxu0 %v3887
      %v3992 = vpop.f32.mrf.mxu0
      %v3993 = vadd.f32 %v3760, %v3992
      %v3994 = vpop.f32.mrf.mxu0
      %v3995 = vadd.f32 %v3762, %v3994
      %3996 = vmatmul.bf16.gmra.mxu0 %v3888
      %v3997 = vpop.f32.mrf.mxu0
      %v3998 = vadd.f32 %v3765, %v3997
      %v3999 = vpop.f32.mrf.mxu0
      %v4000 = vadd.f32 %v3767, %v3999
      %4001 = vmatmul.bf16.gmra.mxu0 %v3889
      %v4002 = vpop.f32.mrf.mxu0
      %v4003 = vadd.f32 %v3770, %v4002
      %v4004 = vpop.f32.mrf.mxu0
      %v4005 = vadd.f32 %v3772, %v4004
      %4006 = vmatmul.bf16.gmra.mxu0 %v3890
      %v4007 = vpop.f32.mrf.mxu0
      %v4008 = vadd.f32 %v3775, %v4007
      %v4009 = vpop.f32.mrf.mxu0
      %v4010 = vadd.f32 %v3777, %v4009
      %4011 = vmatmul.bf16.gmra.mxu0 %v3891
      %v4012 = vpop.f32.mrf.mxu0
      %v4013 = vadd.f32 %v3780, %v4012
      %v4014 = vpop.f32.mrf.mxu0
      %v4015 = vadd.f32 %v3782, %v4014
      %4016 = vmatmul.bf16.gmra.mxu0 %v3892
      %v4017 = vpop.f32.mrf.mxu0
      %v4018 = vadd.f32 %v3785, %v4017
      %v4019 = vpop.f32.mrf.mxu0
      %v4020 = vadd.f32 %v3787, %v4019
      %4021 = vmatmul.bf16.gmra.mxu0 %v3893
      %v4022 = vpop.f32.mrf.mxu0
      %v4023 = vadd.f32 %v3790, %v4022
      %v4024 = vpop.f32.mrf.mxu0
      %v4025 = vadd.f32 %v3792, %v4024
      %4026 = vmatmul.bf16.gmra.mxu0 %v3894
      %v4027 = vpop.f32.mrf.mxu0
      %v4028 = vadd.f32 %v3795, %v4027
      %v4029 = vpop.f32.mrf.mxu0
      %v4030 = vadd.f32 %v3797, %v4029
      %4031 = vmatmul.bf16.gmra.mxu0 %v3895
      %v4032 = vpop.f32.mrf.mxu0
      %v4033 = vadd.f32 %v3800, %v4032
      %v4034 = vpop.f32.mrf.mxu0
      %v4035 = vadd.f32 %v3802, %v4034
      %4036 = vmatmul.bf16.gmra.mxu0 %v3896
      %v4037 = vpop.f32.mrf.mxu0
      %v4038 = vadd.f32 %v3805, %v4037
      %v4039 = vpop.f32.mrf.mxu0
      %v4040 = vadd.f32 %v3807, %v4039
      %4041 = vmatmul.bf16.gmra.mxu0 %v3897
      %v4042 = vpop.f32.mrf.mxu0
      %v4043 = vadd.f32 %v3810, %v4042
      %v4044 = vpop.f32.mrf.mxu0
      %v4045 = vadd.f32 %v3812, %v4044
      %4046 = vmatmul.bf16.gmra.mxu0 %v3898
      %v4047 = vpop.f32.mrf.mxu0
      %v4048 = vadd.f32 %v3815, %v4047
      %v4049 = vpop.f32.mrf.mxu0
      %v4050 = vadd.f32 %v3817, %v4049
      %4051 = vdwg.mxu0
      %vm4052 = vcmp.lt.s32.totalorder %v182, 14
      %vm4053 = vcmp.lt.s32.totalorder %v183, 14
      %v4054 = vrot.slane %v3353, 2
      %v4055 = vrot.slane %v3355, 2
      %v4056 = vrot.slane %v3357, 2
      %v4057 = vrot.slane %v3359, 2
      %v4058 = vrot.slane %v3361, 2
      %v4059 = vrot.slane %v3363, 2
      %v4060 = vrot.slane %v3365, 2
      %v4061 = vrot.slane %v3367, 2
      %v4062 = vrot.slane %v3369, 2
      %v4063 = vrot.slane %v3371, 2
      %v4064 = vrot.slane %v3373, 2
      %v4065 = vrot.slane %v3375, 2
      %v4066 = vrot.slane %v3377, 2
      %v4067 = vrot.slane %v3379, 2
      %v4068 = vrot.slane %v3381, 2
      %v4069 = vrot.slane %v3383, 2
      %v4070 = vrot.slane %v3354, 2
      %v4071 = vrot.slane %v3356, 2
      %v4072 = vrot.slane %v3358, 2
      %v4073 = vrot.slane %v3360, 2
      %v4074 = vrot.slane %v3362, 2
      %v4075 = vrot.slane %v3364, 2
      %v4076 = vrot.slane %v3366, 2
      %v4077 = vrot.slane %v3368, 2
      %v4078 = vrot.slane %v3370, 2
      %v4079 = vrot.slane %v3372, 2
      %v4080 = vrot.slane %v3374, 2
      %v4081 = vrot.slane %v3376, 2
      %v4082 = vrot.slane %v3378, 2
      %v4083 = vrot.slane %v3380, 2
      %v4084 = vrot.slane %v3382, 2
      %v4085 = vrot.slane %v3384, 2
      %vm4086 = vcmp.lt.s32.totalorder %v182, 6
      %v4087 = vsel %vm4086, %v4054, %v4070
      %v4088 = vsel %vm4086, %v4055, %v4071
      %v4089 = vsel %vm4086, %v4056, %v4072
      %v4090 = vsel %vm4086, %v4057, %v4073
      %v4091 = vsel %vm4086, %v4058, %v4074
      %v4092 = vsel %vm4086, %v4059, %v4075
      %v4093 = vsel %vm4086, %v4060, %v4076
      %v4094 = vsel %vm4086, %v4061, %v4077
      %v4095 = vsel %vm4086, %v4062, %v4078
      %v4096 = vsel %vm4086, %v4063, %v4079
      %v4097 = vsel %vm4086, %v4064, %v4080
      %v4098 = vsel %vm4086, %v4065, %v4081
      %v4099 = vsel %vm4086, %v4066, %v4082
      %v4100 = vsel %vm4086, %v4067, %v4083
      %v4101 = vsel %vm4086, %v4068, %v4084
      %v4102 = vsel %vm4086, %v4069, %v4085
      %v4103 = vsel %vm4086, %v4070, %v4054
      %v4104 = vsel %vm4086, %v4071, %v4055
      %v4105 = vsel %vm4086, %v4072, %v4056
      %v4106 = vsel %vm4086, %v4073, %v4057
      %v4107 = vsel %vm4086, %v4074, %v4058
      %v4108 = vsel %vm4086, %v4075, %v4059
      %v4109 = vsel %vm4086, %v4076, %v4060
      %v4110 = vsel %vm4086, %v4077, %v4061
      %v4111 = vsel %vm4086, %v4078, %v4062
      %v4112 = vsel %vm4086, %v4079, %v4063
      %v4113 = vsel %vm4086, %v4080, %v4064
      %v4114 = vsel %vm4086, %v4081, %v4065
      %v4115 = vsel %vm4086, %v4082, %v4066
      %v4116 = vsel %vm4086, %v4083, %v4067
      %v4117 = vsel %vm4086, %v4084, %v4068
      %v4118 = vsel %vm4086, %v4085, %v4069
      %v4119 = vsel %vm4052, 1, 0
      %v4120 = vsel %vm4053, 1, 0
      %vm4121 = vcmp.eq.s32.totalorder %v4119, 1
      %vm4122 = vcmp.eq.s32.totalorder %v4120, 1
      %v4123 = vsel %vm4121, %v4087, 0.0
      %v4124 = vsel %vm4122, %v4103, 0.0
      %v4125 = vsel %vm4121, %v4088, 0.0
      %v4126 = vsel %vm4122, %v4104, 0.0
      %v4127 = vsel %vm4121, %v4089, 0.0
      %v4128 = vsel %vm4122, %v4105, 0.0
      %v4129 = vsel %vm4121, %v4090, 0.0
      %v4130 = vsel %vm4122, %v4106, 0.0
      %v4131 = vsel %vm4121, %v4091, 0.0
      %v4132 = vsel %vm4122, %v4107, 0.0
      %v4133 = vsel %vm4121, %v4092, 0.0
      %v4134 = vsel %vm4122, %v4108, 0.0
      %v4135 = vsel %vm4121, %v4093, 0.0
      %v4136 = vsel %vm4122, %v4109, 0.0
      %v4137 = vsel %vm4121, %v4094, 0.0
      %v4138 = vsel %vm4122, %v4110, 0.0
      %v4139 = vsel %vm4121, %v4095, 0.0
      %v4140 = vsel %vm4122, %v4111, 0.0
      %v4141 = vsel %vm4121, %v4096, 0.0
      %v4142 = vsel %vm4122, %v4112, 0.0
      %v4143 = vsel %vm4121, %v4097, 0.0
      %v4144 = vsel %vm4122, %v4113, 0.0
      %v4145 = vsel %vm4121, %v4098, 0.0
      %v4146 = vsel %vm4122, %v4114, 0.0
      %v4147 = vsel %vm4121, %v4099, 0.0
      %v4148 = vsel %vm4122, %v4115, 0.0
      %v4149 = vsel %vm4121, %v4100, 0.0
      %v4150 = vsel %vm4122, %v4116, 0.0
      %v4151 = vsel %vm4121, %v4101, 0.0
      %v4152 = vsel %vm4122, %v4117, 0.0
      %v4153 = vsel %vm4121, %v4102, 0.0
      %v4154 = vsel %vm4122, %v4118, 0.0
      %v4155 = vpack.c.bf16 %v4123, %v4123
      %v4156 = vpack.c.bf16 %v4124, %v4124
      %v4157 = vpack.c.bf16 %v4125, %v4125
      %v4158 = vpack.c.bf16 %v4126, %v4126
      %v4159 = vpack.c.bf16 %v4127, %v4127
      %v4160 = vpack.c.bf16 %v4128, %v4128
      %v4161 = vpack.c.bf16 %v4129, %v4129
      %v4162 = vpack.c.bf16 %v4130, %v4130
      %v4163 = vpack.c.bf16 %v4131, %v4131
      %v4164 = vpack.c.bf16 %v4132, %v4132
      %v4165 = vpack.c.bf16 %v4133, %v4133
      %v4166 = vpack.c.bf16 %v4134, %v4134
      %v4167 = vpack.c.bf16 %v4135, %v4135
      %v4168 = vpack.c.bf16 %v4136, %v4136
      %v4169 = vpack.c.bf16 %v4137, %v4137
      %v4170 = vpack.c.bf16 %v4138, %v4138
      %v4171 = vpack.c.bf16 %v4139, %v4139
      %v4172 = vpack.c.bf16 %v4140, %v4140
      %v4173 = vpack.c.bf16 %v4141, %v4141
      %v4174 = vpack.c.bf16 %v4142, %v4142
      %v4175 = vpack.c.bf16 %v4143, %v4143
      %v4176 = vpack.c.bf16 %v4144, %v4144
      %v4177 = vpack.c.bf16 %v4145, %v4145
      %v4178 = vpack.c.bf16 %v4146, %v4146
      %v4179 = vpack.c.bf16 %v4147, %v4147
      %v4180 = vpack.c.bf16 %v4148, %v4148
      %v4181 = vpack.c.bf16 %v4149, %v4149
      %v4182 = vpack.c.bf16 %v4150, %v4150
      %v4183 = vpack.c.bf16 %v4151, %v4151
      %v4184 = vpack.c.bf16 %v4152, %v4152
      %v4185 = vpack.c.bf16 %v4153, %v4153
      %v4186 = vpack.c.bf16 %v4154, %v4154
      %s4187 = scalar_lea.vmem %s1, 704
      %v4188 = vld [vmem:[%s4187] sm:$0xf]
      %v4189 = vld [vmem:[%s4187 + $0x4] sm:$0xf]
      %v4190 = vld [vmem:[%s4187 + $0x8] sm:$0xf]
      %v4191 = vld [vmem:[%s4187 + $0xc] sm:$0xf]
      %v4192 = vld [vmem:[%s4187 + $0x10] sm:$0xf]
      %v4193 = vld [vmem:[%s4187 + $0x14] sm:$0xf]
      %v4194 = vld [vmem:[%s4187 + $0x18] sm:$0xf]
      %v4195 = vld [vmem:[%s4187 + $0x1c] sm:$0xf]
      %v4196 = vld [vmem:[%s4187 + $0x20] sm:$0xf]
      %v4197 = vld [vmem:[%s4187 + $0x24] sm:$0xf]
      %v4198 = vld [vmem:[%s4187 + $0x28] sm:$0xf]
      %v4199 = vld [vmem:[%s4187 + $0x2c] sm:$0xf]
      %v4200 = vld [vmem:[%s4187 + $0x30] sm:$0xf]
      %v4201 = vld [vmem:[%s4187 + $0x34] sm:$0xf]
      %v4202 = vld [vmem:[%s4187 + $0x38] sm:$0xf]
      %v4203 = vld [vmem:[%s4187 + $0x3c] sm:$0xf]
      %v4236 = vunpack.c.l.b16 %v4155
      %v4237 = vunpack.c.l.b16 %v4156
      %v4238 = vunpack.c.l.b16 %v4157
      %v4239 = vunpack.c.l.b16 %v4158
      %v4240 = vunpack.c.l.b16 %v4159
      %v4241 = vunpack.c.l.b16 %v4160
      %v4242 = vunpack.c.l.b16 %v4161
      %v4243 = vunpack.c.l.b16 %v4162
      %v4244 = vunpack.c.l.b16 %v4163
      %v4245 = vunpack.c.l.b16 %v4164
      %v4246 = vunpack.c.l.b16 %v4165
      %v4247 = vunpack.c.l.b16 %v4166
      %v4248 = vunpack.c.l.b16 %v4167
      %v4249 = vunpack.c.l.b16 %v4168
      %v4250 = vunpack.c.l.b16 %v4169
      %v4251 = vunpack.c.l.b16 %v4170
      %v4252 = vunpack.c.l.b16 %v4171
      %v4253 = vunpack.c.l.b16 %v4172
      %v4254 = vunpack.c.l.b16 %v4173
      %v4255 = vunpack.c.l.b16 %v4174
      %v4256 = vunpack.c.l.b16 %v4175
      %v4257 = vunpack.c.l.b16 %v4176
      %v4258 = vunpack.c.l.b16 %v4177
      %v4259 = vunpack.c.l.b16 %v4178
      %v4260 = vunpack.c.l.b16 %v4179
      %v4261 = vunpack.c.l.b16 %v4180
      %v4262 = vunpack.c.l.b16 %v4181
      %v4263 = vunpack.c.l.b16 %v4182
      %v4264 = vunpack.c.l.b16 %v4183
      %v4265 = vunpack.c.l.b16 %v4184
      %v4266 = vunpack.c.l.b16 %v4185
      %v4267 = vunpack.c.l.b16 %v4186
      %v4268 = vpack.c.b16 %v4237, %v4236
      %v4269 = vpack.c.b16 %v4239, %v4238
      %v4270 = vpack.c.b16 %v4241, %v4240
      %v4271 = vpack.c.b16 %v4243, %v4242
      %v4272 = vpack.c.b16 %v4245, %v4244
      %v4273 = vpack.c.b16 %v4247, %v4246
      %v4274 = vpack.c.b16 %v4249, %v4248
      %v4275 = vpack.c.b16 %v4251, %v4250
      %v4276 = vpack.c.b16 %v4253, %v4252
      %v4277 = vpack.c.b16 %v4255, %v4254
      %v4278 = vpack.c.b16 %v4257, %v4256
      %v4279 = vpack.c.b16 %v4259, %v4258
      %v4280 = vpack.c.b16 %v4261, %v4260
      %v4281 = vpack.c.b16 %v4263, %v4262
      %v4282 = vpack.c.b16 %v4265, %v4264
      %v4283 = vpack.c.b16 %v4267, %v4266
      %v4316 = vunpack.c.l.b16 %v4188
      %v4317 = vunpack.c.l.b16 %v4189
      %v4318 = vunpack.c.l.b16 %v4190
      %v4319 = vunpack.c.l.b16 %v4191
      %v4320 = vunpack.c.l.b16 %v4192
      %v4321 = vunpack.c.l.b16 %v4193
      %v4322 = vunpack.c.l.b16 %v4194
      %v4323 = vunpack.c.l.b16 %v4195
      %v4324 = vunpack.c.l.b16 %v4196
      %v4325 = vunpack.c.l.b16 %v4197
      %v4326 = vunpack.c.l.b16 %v4198
      %v4327 = vunpack.c.l.b16 %v4199
      %v4328 = vunpack.c.l.b16 %v4200
      %v4329 = vunpack.c.l.b16 %v4201
      %v4330 = vunpack.c.l.b16 %v4202
      %v4331 = vunpack.c.l.b16 %v4203
      %v4332 = vpack.c.b16 %v4317, %v4316
      %v4333 = vpack.c.b16 %v4319, %v4318
      %v4334 = vpack.c.b16 %v4321, %v4320
      %v4335 = vpack.c.b16 %v4323, %v4322
      %v4336 = vpack.c.b16 %v4325, %v4324
      %v4337 = vpack.c.b16 %v4327, %v4326
      %v4338 = vpack.c.b16 %v4329, %v4328
      %v4339 = vpack.c.b16 %v4331, %v4330
      %4348 = vmatpush.bf16.msra.mxu0 %v4339
      %4349 = vmatpush.bf16.msra.mxu0 %v4338
      %4350 = vmatpush.bf16.msra.mxu0 %v4337
      %4351 = vmatpush.bf16.msra.mxu0 %v4336
      %4352 = vmatpush.bf16.msra.mxu0 %v4335
      %4353 = vmatpush.bf16.msra.mxu0 %v4334
      %4354 = vmatpush.bf16.msra.mxu0 %v4333
      %4355 = vmatpush.bf16.msra.mxu0 %v4332
      %4356 = vmatmul.bf16.gmra.mxu0 %v4268
      %v4357 = vpop.f32.mrf.mxu0
      %v4358 = vadd.f32 0.0, %v4357
      %v4359 = vpop.f32.mrf.mxu0
      %v4360 = vadd.f32 0.0, %v4359
      %4361 = vmatmul.bf16.gmra.mxu0 %v4269
      %v4362 = vpop.f32.mrf.mxu0
      %v4363 = vadd.f32 0.0, %v4362
      %v4364 = vpop.f32.mrf.mxu0
      %v4365 = vadd.f32 0.0, %v4364
      %4366 = vmatmul.bf16.gmra.mxu0 %v4270
      %v4367 = vpop.f32.mrf.mxu0
      %v4368 = vadd.f32 0.0, %v4367
      %v4369 = vpop.f32.mrf.mxu0
      %v4370 = vadd.f32 0.0, %v4369
      %4371 = vmatmul.bf16.gmra.mxu0 %v4271
      %v4372 = vpop.f32.mrf.mxu0
      %v4373 = vadd.f32 0.0, %v4372
      %v4374 = vpop.f32.mrf.mxu0
      %v4375 = vadd.f32 0.0, %v4374
      %4376 = vmatmul.bf16.gmra.mxu0 %v4272
      %v4377 = vpop.f32.mrf.mxu0
      %v4378 = vadd.f32 0.0, %v4377
      %v4379 = vpop.f32.mrf.mxu0
      %v4380 = vadd.f32 0.0, %v4379
      %4381 = vmatmul.bf16.gmra.mxu0 %v4273
      %v4382 = vpop.f32.mrf.mxu0
      %v4383 = vadd.f32 0.0, %v4382
      %v4384 = vpop.f32.mrf.mxu0
      %v4385 = vadd.f32 0.0, %v4384
      %4386 = vmatmul.bf16.gmra.mxu0 %v4274
      %v4387 = vpop.f32.mrf.mxu0
      %v4388 = vadd.f32 0.0, %v4387
      %v4389 = vpop.f32.mrf.mxu0
      %v4390 = vadd.f32 0.0, %v4389
      %4391 = vmatmul.bf16.gmra.mxu0 %v4275
      %v4392 = vpop.f32.mrf.mxu0
      %v4393 = vadd.f32 0.0, %v4392
      %v4394 = vpop.f32.mrf.mxu0
      %v4395 = vadd.f32 0.0, %v4394
      %4396 = vmatmul.bf16.gmra.mxu0 %v4276
      %v4397 = vpop.f32.mrf.mxu0
      %v4398 = vadd.f32 0.0, %v4397
      %v4399 = vpop.f32.mrf.mxu0
      %v4400 = vadd.f32 0.0, %v4399
      %4401 = vmatmul.bf16.gmra.mxu0 %v4277
      %v4402 = vpop.f32.mrf.mxu0
      %v4403 = vadd.f32 0.0, %v4402
      %v4404 = vpop.f32.mrf.mxu0
      %v4405 = vadd.f32 0.0, %v4404
      %4406 = vmatmul.bf16.gmra.mxu0 %v4278
      %v4407 = vpop.f32.mrf.mxu0
      %v4408 = vadd.f32 0.0, %v4407
      %v4409 = vpop.f32.mrf.mxu0
      %v4410 = vadd.f32 0.0, %v4409
      %4411 = vmatmul.bf16.gmra.mxu0 %v4279
      %v4412 = vpop.f32.mrf.mxu0
      %v4413 = vadd.f32 0.0, %v4412
      %v4414 = vpop.f32.mrf.mxu0
      %v4415 = vadd.f32 0.0, %v4414
      %4416 = vmatmul.bf16.gmra.mxu0 %v4280
      %v4417 = vpop.f32.mrf.mxu0
      %v4418 = vadd.f32 0.0, %v4417
      %v4419 = vpop.f32.mrf.mxu0
      %v4420 = vadd.f32 0.0, %v4419
      %4421 = vmatmul.bf16.gmra.mxu0 %v4281
      %v4422 = vpop.f32.mrf.mxu0
      %v4423 = vadd.f32 0.0, %v4422
      %v4424 = vpop.f32.mrf.mxu0
      %v4425 = vadd.f32 0.0, %v4424
      %4426 = vmatmul.bf16.gmra.mxu0 %v4282
      %v4427 = vpop.f32.mrf.mxu0
      %v4428 = vadd.f32 0.0, %v4427
      %v4429 = vpop.f32.mrf.mxu0
      %v4430 = vadd.f32 0.0, %v4429
      %4431 = vmatmul.bf16.gmra.mxu0 %v4283
      %v4432 = vpop.f32.mrf.mxu0
      %v4433 = vadd.f32 0.0, %v4432
      %v4434 = vpop.f32.mrf.mxu0
      %v4435 = vadd.f32 0.0, %v4434
      %4436 = vdwg.mxu0
      %v4437 = vadd.f32 %v3973, %v4358
      %v4438 = vadd.f32 %v3975, %v4360
      %v4439 = vadd.f32 %v3978, %v4363
      %v4440 = vadd.f32 %v3980, %v4365
      %v4441 = vadd.f32 %v3983, %v4368
      %v4442 = vadd.f32 %v3985, %v4370
      %v4443 = vadd.f32 %v3988, %v4373
      %v4444 = vadd.f32 %v3990, %v4375
      %v4445 = vadd.f32 %v3993, %v4378
      %v4446 = vadd.f32 %v3995, %v4380
      %v4447 = vadd.f32 %v3998, %v4383
      %v4448 = vadd.f32 %v4000, %v4385
      %v4449 = vadd.f32 %v4003, %v4388
      %v4450 = vadd.f32 %v4005, %v4390
      %v4451 = vadd.f32 %v4008, %v4393
      %v4452 = vadd.f32 %v4010, %v4395
      %v4453 = vadd.f32 %v4013, %v4398
      %v4454 = vadd.f32 %v4015, %v4400
      %v4455 = vadd.f32 %v4018, %v4403
      %v4456 = vadd.f32 %v4020, %v4405
      %v4457 = vadd.f32 %v4023, %v4408
      %v4458 = vadd.f32 %v4025, %v4410
      %v4459 = vadd.f32 %v4028, %v4413
      %v4460 = vadd.f32 %v4030, %v4415
      %v4461 = vadd.f32 %v4033, %v4418
      %v4462 = vadd.f32 %v4035, %v4420
      %v4463 = vadd.f32 %v4038, %v4423
      %v4464 = vadd.f32 %v4040, %v4425
      %v4465 = vadd.f32 %v4043, %v4428
      %v4466 = vadd.f32 %v4045, %v4430
      %v4467 = vadd.f32 %v4048, %v4433
      %v4468 = vadd.f32 %v4050, %v4435
      %v4469 = vld [vmem:[%s2 + $0x3] sm:$0x1]
      %v4470 = vperm.slane %v4469, 0
      %v4471 = vadd.f32 %v4437, %v4470
      %v4472 = vadd.f32 %v4438, %v4470
      %v4473 = vadd.f32 %v4439, %v4470
      %v4474 = vadd.f32 %v4440, %v4470
      %v4475 = vadd.f32 %v4441, %v4470
      %v4476 = vadd.f32 %v4442, %v4470
      %v4477 = vadd.f32 %v4443, %v4470
      %v4478 = vadd.f32 %v4444, %v4470
      %v4479 = vadd.f32 %v4445, %v4470
      %v4480 = vadd.f32 %v4446, %v4470
      %v4481 = vadd.f32 %v4447, %v4470
      %v4482 = vadd.f32 %v4448, %v4470
      %v4483 = vadd.f32 %v4449, %v4470
      %v4484 = vadd.f32 %v4450, %v4470
      %v4485 = vadd.f32 %v4451, %v4470
      %v4486 = vadd.f32 %v4452, %v4470
      %v4487 = vadd.f32 %v4453, %v4470
      %v4488 = vadd.f32 %v4454, %v4470
      %v4489 = vadd.f32 %v4455, %v4470
      %v4490 = vadd.f32 %v4456, %v4470
      %v4491 = vadd.f32 %v4457, %v4470
      %v4492 = vadd.f32 %v4458, %v4470
      %v4493 = vadd.f32 %v4459, %v4470
      %v4494 = vadd.f32 %v4460, %v4470
      %v4495 = vadd.f32 %v4461, %v4470
      %v4496 = vadd.f32 %v4462, %v4470
      %v4497 = vadd.f32 %v4463, %v4470
      %v4498 = vadd.f32 %v4464, %v4470
      %v4499 = vadd.f32 %v4465, %v4470
      %v4500 = vadd.f32 %v4466, %v4470
      %v4501 = vadd.f32 %v4467, %v4470
      %v4502 = vadd.f32 %v4468, %v4470
      %v4503 = vld [vmem:[%s165] sm:$0xff]
      %v4504 = vld [vmem:[%s165 + $0x8] sm:$0xff]
      %v4505 = vld [vmem:[%s165 + $0x10] sm:$0xff]
      %v4506 = vld [vmem:[%s165 + $0x18] sm:$0xff]
      %v4507 = vld [vmem:[%s165 + $0x20] sm:$0xff]
      %v4508 = vld [vmem:[%s165 + $0x28] sm:$0xff]
      %v4509 = vld [vmem:[%s165 + $0x30] sm:$0xff]
      %v4510 = vld [vmem:[%s165 + $0x38] sm:$0xff]
      %v4511 = vld [vmem:[%s165 + $0x40] sm:$0xff]
      %v4512 = vld [vmem:[%s165 + $0x48] sm:$0xff]
      %v4513 = vld [vmem:[%s165 + $0x50] sm:$0xff]
      %v4514 = vld [vmem:[%s165 + $0x58] sm:$0xff]
      %v4515 = vld [vmem:[%s165 + $0x60] sm:$0xff]
      %v4516 = vld [vmem:[%s165 + $0x68] sm:$0xff]
      %v4517 = vld [vmem:[%s165 + $0x70] sm:$0xff]
      %v4518 = vld [vmem:[%s165 + $0x78] sm:$0xff]
      %v4519 = vld [vmem:[%s165 + $0x80] sm:$0xff]
      %v4520 = vld [vmem:[%s165 + $0x88] sm:$0xff]
      %v4521 = vld [vmem:[%s165 + $0x90] sm:$0xff]
      %v4522 = vld [vmem:[%s165 + $0x98] sm:$0xff]
      %v4523 = vld [vmem:[%s165 + $0xa0] sm:$0xff]
      %v4524 = vld [vmem:[%s165 + $0xa8] sm:$0xff]
      %v4525 = vld [vmem:[%s165 + $0xb0] sm:$0xff]
      %v4526 = vld [vmem:[%s165 + $0xb8] sm:$0xff]
      %v4527 = vld [vmem:[%s165 + $0xc0] sm:$0xff]
      %v4528 = vld [vmem:[%s165 + $0xc8] sm:$0xff]
      %v4529 = vld [vmem:[%s165 + $0xd0] sm:$0xff]
      %v4530 = vld [vmem:[%s165 + $0xd8] sm:$0xff]
      %v4531 = vld [vmem:[%s165 + $0xe0] sm:$0xff]
      %v4532 = vld [vmem:[%s165 + $0xe8] sm:$0xff]
      %v4533 = vld [vmem:[%s165 + $0xf0] sm:$0xff]
      %v4534 = vld [vmem:[%s165 + $0xf8] sm:$0xff]
      %v4535 = vadd.f32 %v4471, %v4503
      %v4536 = vadd.f32 %v4472, %v4504
      %v4537 = vadd.f32 %v4473, %v4505
      %v4538 = vadd.f32 %v4474, %v4506
      %v4539 = vadd.f32 %v4475, %v4507
      %v4540 = vadd.f32 %v4476, %v4508
      %v4541 = vadd.f32 %v4477, %v4509
      %v4542 = vadd.f32 %v4478, %v4510
      %v4543 = vadd.f32 %v4479, %v4511
      %v4544 = vadd.f32 %v4480, %v4512
      %v4545 = vadd.f32 %v4481, %v4513
      %v4546 = vadd.f32 %v4482, %v4514
      %v4547 = vadd.f32 %v4483, %v4515
      %v4548 = vadd.f32 %v4484, %v4516
      %v4549 = vadd.f32 %v4485, %v4517
      %v4550 = vadd.f32 %v4486, %v4518
      %v4551 = vadd.f32 %v4487, %v4519
      %v4552 = vadd.f32 %v4488, %v4520
      %v4553 = vadd.f32 %v4489, %v4521
      %v4554 = vadd.f32 %v4490, %v4522
      %v4555 = vadd.f32 %v4491, %v4523
      %v4556 = vadd.f32 %v4492, %v4524
      %v4557 = vadd.f32 %v4493, %v4525
      %v4558 = vadd.f32 %v4494, %v4526
      %v4559 = vadd.f32 %v4495, %v4527
      %v4560 = vadd.f32 %v4496, %v4528
      %v4561 = vadd.f32 %v4497, %v4529
      %v4562 = vadd.f32 %v4498, %v4530
      %v4563 = vadd.f32 %v4499, %v4531
      %v4564 = vadd.f32 %v4500, %v4532
      %v4565 = vadd.f32 %v4501, %v4533
      %v4566 = vadd.f32 %v4502, %v4534
      %v4567 = vmax.f32 %v4535, 0.0
      %v4568 = vmax.f32 %v4536, 0.0
      %v4569 = vmax.f32 %v4537, 0.0
      %v4570 = vmax.f32 %v4538, 0.0
      %v4571 = vmax.f32 %v4539, 0.0
      %v4572 = vmax.f32 %v4540, 0.0
      %v4573 = vmax.f32 %v4541, 0.0
      %v4574 = vmax.f32 %v4542, 0.0
      %v4575 = vmax.f32 %v4543, 0.0
      %v4576 = vmax.f32 %v4544, 0.0
      %v4577 = vmax.f32 %v4545, 0.0
      %v4578 = vmax.f32 %v4546, 0.0
      %v4579 = vmax.f32 %v4547, 0.0
      %v4580 = vmax.f32 %v4548, 0.0
      %v4581 = vmax.f32 %v4549, 0.0
      %v4582 = vmax.f32 %v4550, 0.0
      %v4583 = vmax.f32 %v4551, 0.0
      %v4584 = vmax.f32 %v4552, 0.0
      %v4585 = vmax.f32 %v4553, 0.0
      %v4586 = vmax.f32 %v4554, 0.0
      %v4587 = vmax.f32 %v4555, 0.0
      %v4588 = vmax.f32 %v4556, 0.0
      %v4589 = vmax.f32 %v4557, 0.0
      %v4590 = vmax.f32 %v4558, 0.0
      %v4591 = vmax.f32 %v4559, 0.0
      %v4592 = vmax.f32 %v4560, 0.0
      %v4593 = vmax.f32 %v4561, 0.0
      %v4594 = vmax.f32 %v4562, 0.0
      %v4595 = vmax.f32 %v4563, 0.0
      %v4596 = vmax.f32 %v4564, 0.0
      %v4597 = vmax.f32 %v4565, 0.0
      %v4598 = vmax.f32 %v4566, 0.0
      %4599 = vst [vmem:[%s170] sm:$0xff] %v4567
      %4600 = vst [vmem:[%s170 + $0x8] sm:$0xff] %v4568
      %4601 = vst [vmem:[%s170 + $0x10] sm:$0xff] %v4569
      %4602 = vst [vmem:[%s170 + $0x18] sm:$0xff] %v4570
      %4603 = vst [vmem:[%s170 + $0x20] sm:$0xff] %v4571
      %4604 = vst [vmem:[%s170 + $0x28] sm:$0xff] %v4572
      %4605 = vst [vmem:[%s170 + $0x30] sm:$0xff] %v4573
      %4606 = vst [vmem:[%s170 + $0x38] sm:$0xff] %v4574
      %4607 = vst [vmem:[%s170 + $0x40] sm:$0xff] %v4575
      %4608 = vst [vmem:[%s170 + $0x48] sm:$0xff] %v4576
      %4609 = vst [vmem:[%s170 + $0x50] sm:$0xff] %v4577
      %4610 = vst [vmem:[%s170 + $0x58] sm:$0xff] %v4578
      %4611 = vst [vmem:[%s170 + $0x60] sm:$0xff] %v4579
      %4612 = vst [vmem:[%s170 + $0x68] sm:$0xff] %v4580
      %4613 = vst [vmem:[%s170 + $0x70] sm:$0xff] %v4581
      %4614 = vst [vmem:[%s170 + $0x78] sm:$0xff] %v4582
      %4615 = vst [vmem:[%s170 + $0x80] sm:$0xff] %v4583
      %4616 = vst [vmem:[%s170 + $0x88] sm:$0xff] %v4584
      %4617 = vst [vmem:[%s170 + $0x90] sm:$0xff] %v4585
      %4618 = vst [vmem:[%s170 + $0x98] sm:$0xff] %v4586
      %4619 = vst [vmem:[%s170 + $0xa0] sm:$0xff] %v4587
      %4620 = vst [vmem:[%s170 + $0xa8] sm:$0xff] %v4588
      %4621 = vst [vmem:[%s170 + $0xb0] sm:$0xff] %v4589
      %4622 = vst [vmem:[%s170 + $0xb8] sm:$0xff] %v4590
      %4623 = vst [vmem:[%s170 + $0xc0] sm:$0xff] %v4591
      %4624 = vst [vmem:[%s170 + $0xc8] sm:$0xff] %v4592
      %4625 = vst [vmem:[%s170 + $0xd0] sm:$0xff] %v4593
      %4626 = vst [vmem:[%s170 + $0xd8] sm:$0xff] %v4594
      %4627 = vst [vmem:[%s170 + $0xe0] sm:$0xff] %v4595
      %4628 = vst [vmem:[%s170 + $0xe8] sm:$0xff] %v4596
      %4629 = vst [vmem:[%s170 + $0xf0] sm:$0xff] %v4597
      %4630 = vst [vmem:[%s170 + $0xf8] sm:$0xff] %v4598
      %p4631 = scmp.lt.s32.totalorder %s14, 1
      %s4632 = scalar_select %p4631, %s14, 1
      %s4633 = smul.addr %s4632, 32
      %s4634 = smul.addr %s4633, 8
      %s4635 = scalar_lea.vmem %s3, %s4634
      // Predicated region
      $region33: #{non_bottleneck_1d_forward.1} parent=31 // pred_check
        %p4636 = pneg %p100
      $region34: #{non_bottleneck_1d_forward.1} parent=31 // pred_check_branch
        %4638 = sbr.rel (%p4636) target = $region36
      $region35: #{non_bottleneck_1d_forward.1} parent=31 // pred_region
        _
      $region36: #{non_bottleneck_1d_forward.1} parent=31 // pred_fallthru
        _
    $region32: #{non_bottleneck_1d_forward.1} parent=5 // pred_fallthru
      _
    %p4639 = scmp.le.s32.totalorder 2, %s9
    // Predicated region
    $region37: #{non_bottleneck_1d_forward.1} parent=5 // pred_check
      %p4640 = pneg %p4639
    $region38: #{non_bottleneck_1d_forward.1} parent=5 // pred_check_branch
      %4642 = sbr.rel (%p4640) target = $region40
    $region39: #{non_bottleneck_1d_forward.1} parent=5 // pred_region
      %s4643 = ssub.s32 %s9, 2
      // Predicated region
      $region41: #{non_bottleneck_1d_forward.1} parent=39 // pred_check
        %p4644 = pneg %p106
      $region42: #{non_bottleneck_1d_forward.1} parent=39 // pred_check_branch
        %4646 = sbr.rel (%p4644) target = $region44
      $region43: #{non_bottleneck_1d_forward.1} parent=39 // pred_region
        %p4647 = scmp.lt.s32.totalorder %s15, 1
        %s4648 = scalar_select %p4647, %s15, 1
        %s4649 = smul.addr %s4648, 32
        %s4650 = smul.addr %s4649, 8
        %s4651 = scalar_lea.vmem %s3, %s4650
      $region44: #{non_bottleneck_1d_forward.1} parent=39 // pred_fallthru
        _
    $region40: #{non_bottleneck_1d_forward.1} parent=5 // pred_fallthru
      _
  $region6: #{non_bottleneck_1d_forward.1} parent=0 // loop_footer
    %s13 = sadd.s32 1, %s9
  $region7: #{non_bottleneck_1d_forward.1} parent=0 // loop_footer_branch
    %8 = sbr.rel target = $region3
  $region8: #{non_bottleneck_1d_forward.1} parent=0 // loop_exit
    _

</llo_original>
